<compile_context>
chip_gen: v5e
topology: v5e:2x2
jax: 0.10.0
libtpu: 0.0.40
codegen_flags: <defaults>
</compile_context>

<pallas_src>
import jax
import jax.numpy as jnp
from jax.experimental import pallas as pl
from jax.experimental.pallas import tpu as pltpu

LANES = 128


def _round_up(x, m):
    return ((x + m - 1) // m) * m


# ----------------------------- Pallas kernel --------------------------------
def classifier_kernel(feat_ref,        # [TB, HW, 1792]  trunk feature map (bf16)
                      wbp_ref,         # [1792, 512]     wb * bn_scale / HW (bf16)
                      bn_bias_ref,     # [1, 512]        beta - mean*scale (f32)
                      w1_ref, b1_ref,  # [512, 512] bf16, [1, 512] f32
                      w2_ref, b2_ref,  # [512, 128] bf16, [1, 128] f32
                      w3_ref,          # [1, 128] f32    final-linear weight row
                      b3_ref,          # [1, 1]   f32
                      out_ref):        # [TB, 128] f32   (lane-dense, col 0 used)
    # AdaptiveAvgPool2d(1): sum over spatial positions (1/HW folded into wbp).
    pooled = jnp.sum(feat_ref[...].astype(jnp.float32), axis=1)      # [TB, 1792]

    # Dropout (eval) -> identity.  last_linear (no bias) with BN scale folded in.
    emb = jnp.dot(pooled.astype(wbp_ref.dtype), wbp_ref[...],
                  preferred_element_type=jnp.float32)                # [TB, 512]
    emb = emb + bn_bias_ref[...]                                     # BN (eval) bias

    # F.normalize(emb, p=2, dim=1): rsqrt on the EUP instead of sqrt + divide.
    sumsq = jnp.sum(emb * emb, axis=-1, keepdims=True)
    emb = emb * jax.lax.rsqrt(jnp.maximum(sumsq, 1e-24))

    # classifier head (Dropouts are identity in eval mode).
    h1 = jnp.dot(emb.astype(w1_ref.dtype), w1_ref[...],
                 preferred_element_type=jnp.float32) + b1_ref[...]
    h1 = jnp.maximum(h1, 0.0)                                        # ReLU
    h2 = jnp.dot(h1.astype(w2_ref.dtype), w2_ref[...],
                 preferred_element_type=jnp.float32) + b2_ref[...]
    h2 = jnp.maximum(h2, 0.0)                                        # ReLU

    # Linear(128, 1): VPU multiply + lane-reduce (avoid 1-lane-wide MXU matmul).
    logit = jnp.sum(h2 * w3_ref[...], axis=-1, keepdims=True) + b3_ref[...]

    # Lane-dense unmasked store; wrapper slices out column 0.
    out_ref[...] = jnp.broadcast_to(jax.nn.sigmoid(logit), out_ref.shape)


# ------------------------------ Wrapper --------------------------------------
def real_classifier_forward(feat_map, params, *, tb=128,
                            compute_dtype=jnp.bfloat16):
    """feat_map: [B, HW, 1792] float32 (trunk output, NHWC, spatial flattened)."""
    B, HW, C = feat_map.shape

    # Batch tile: multiple of 8 sublanes, capped at `tb`; pad batch to a multiple.
    tb = min(tb, _round_up(B, 8))
    Bp = _round_up(B, tb)
    if Bp != B:
        feat_map = jnp.pad(feat_map, ((0, Bp - B), (0, 0), (0, 0)))

    # Trace-time folding: BN scale and the mean-pool 1/HW go into the
    # (bias-free) last_linear weight.  Streamed/matmul operands -> bf16.
    wbp = (params["wb"] * params["bn_scale"] / HW).astype(compute_dtype)
    feat = feat_map.astype(compute_dtype)
    w1 = params["w1"].astype(compute_dtype)
    w2 = params["w2"].astype(compute_dtype)
    w3_row = params["w3"].reshape(1, -1).astype(jnp.float32)

    args = (feat, wbp, params["bn_bias"], w1, params["b1"],
            w2, params["b2"], w3_row, params["b3"])

    grid = (Bp // tb,)
    out = pl.pallas_call(
        classifier_kernel,
        out_shape=jax.ShapeDtypeStruct((Bp, LANES), jnp.float32),
        grid=grid,
        in_specs=[
            # Streamed per-tile feature map.
            pl.BlockSpec((tb, HW, C), lambda i: (i, 0, 0)),
            # Weights / biases: constant index_map -> resident in VMEM, no re-DMA.
            pl.BlockSpec(wbp.shape, lambda i: (0, 0)),
            pl.BlockSpec(params["bn_bias"].shape, lambda i: (0, 0)),
            pl.BlockSpec(w1.shape, lambda i: (0, 0)),
            pl.BlockSpec(params["b1"].shape, lambda i: (0, 0)),
            pl.BlockSpec(w2.shape, lambda i: (0, 0)),
            pl.BlockSpec(params["b2"].shape, lambda i: (0, 0)),
            pl.BlockSpec(w3_row.shape, lambda i: (0, 0)),
            pl.BlockSpec(params["b3"].shape, lambda i: (0, 0)),
        ],
        out_specs=pl.BlockSpec((tb, LANES), lambda i: (i, 0)),
        compiler_params=pltpu.CompilerParams(
            dimension_semantics=("parallel",),      # megacore sharding on v7x
            vmem_limit_bytes=40 * 1024 * 1024,      # fits TB=128 on v7x/v5e too
        ),
    )(*args)
    return out[:B, :1]


# ------------------------- deterministic parameters ---------------------------
def make_params(key):
    ks = jax.random.split(key, 12)
    eps = 1e-3  # BatchNorm1d eps in facenet-pytorch last_bn

    gamma = jax.random.uniform(ks[0], (512,), jnp.float32, 0.5, 1.5)
    beta = 0.1 * jax.random.normal(ks[1], (512,), jnp.float32)
    run_mean = 0.1 * jax.random.normal(ks[2], (512,), jnp.float32)
    run_var = jax.random.uniform(ks[3], (512,), jnp.float32, 0.5, 1.5)
    bn_scale = gamma / jnp.sqrt(run_var + eps)
    bn_bias = beta - run_mean * bn_scale

    return {
        "wb": 0.02 * jax.random.normal(ks[4], (1792, 512), jnp.float32),
        "bn_scale": bn_scale.reshape(1, 512),
        "bn_bias": bn_bias.reshape(1, 512),
        "w1": 0.05 * jax.random.normal(ks[5], (512, 512), jnp.float32),
        "b1": 0.01 * jax.random.normal(ks[6], (1, 512), jnp.float32),
        "w2": 0.05 * jax.random.normal(ks[7], (512, 128), jnp.float32),
        "b2": 0.01 * jax.random.normal(ks[8], (1, 128), jnp.float32),
        "w3": 0.05 * jax.random.normal(ks[9], (128, 1), jnp.float32),
        "b3": 0.01 * jax.random.normal(ks[10], (1, 1), jnp.float32),
    }


# ------------------------------ reference -------------------------------------
def reference_forward(feat_map, p):
    pooled = jnp.mean(feat_map, axis=1)
    emb = pooled @ p["wb"]
    emb = emb * p["bn_scale"] + p["bn_bias"]
    emb = emb / jnp.maximum(
        jnp.sqrt(jnp.sum(emb * emb, axis=1, keepdims=True)), 1e-12)
    h1 = jnp.maximum(emb @ p["w1"] + p["b1"], 0.0)
    h2 = jnp.maximum(h1 @ p["w2"] + p["b2"], 0.0)
    return jax.nn.sigmoid(h2 @ p["w3"] + p["b3"])


if __name__ == "__main__":
    key = jax.random.PRNGKey(0)
    k_feat, k_params = jax.random.split(key)

    # Small shapes: batch=2, trunk feature map 1792 channels over a 3x3 spatial
    # grid (what InceptionResnetV1 produces right before its global avg pool).
    B, H, W, C = 2, 3, 3, 1792
    feat_map = jax.random.normal(k_feat, (B, H * W, C), jnp.float32)
    params = make_params(k_params)

    out = real_classifier_forward(feat_map, params)
    out = jax.block_until_ready(out)

    ref = jax.block_until_ready(reference_forward(feat_map, params))
    assert out.shape == (B, 1) and out.dtype == jnp.float32
    # bf16 streaming / f32 accumulation vs pure-f32 reference.
    assert jnp.allclose(out, ref, atol=1e-2, rtol=1e-2), (out, ref)

    print("KERNEL_OK")
</pallas_src>

<mosaic_0001>
module attributes {stable_mosaic.version = 11 : i64} {
  func.func @classifier_kernel(%arg0: i32, %arg1: memref<8x9x1792xbf16, #tpu.memory_space<vmem>>, %arg2: memref<1792x512xbf16, #tpu.memory_space<vmem>>, %arg3: memref<1x512xf32, #tpu.memory_space<vmem>>, %arg4: memref<512x512xbf16, #tpu.memory_space<vmem>>, %arg5: memref<1x512xf32, #tpu.memory_space<vmem>>, %arg6: memref<512x128xbf16, #tpu.memory_space<vmem>>, %arg7: memref<1x128xf32, #tpu.memory_space<vmem>>, %arg8: memref<1x128xf32, #tpu.memory_space<vmem>>, %arg9: memref<1x1xf32, #tpu.memory_space<vmem>>, %arg10: memref<8x128xf32, #tpu.memory_space<vmem>>) attributes {dimension_semantics = [#tpu.dimension_semantics<parallel>], iteration_bounds = array<i64: 1>, scalar_prefetch = 0 : i64, scratch_operands = 0 : i64, tpu.core_type = #tpu.core_type<tc>, window_params = [{transform_indices = @transform_0, window_bounds = array<i64: 8, 9, 1792>}, {pipeline_mode = #tpu.pipeline_mode<synchronous>, transform_indices = @transform_1, window_bounds = array<i64: 1792, 512>}, {pipeline_mode = #tpu.pipeline_mode<synchronous>, transform_indices = @transform_2, window_bounds = array<i64: 1, 512>}, {pipeline_mode = #tpu.pipeline_mode<synchronous>, transform_indices = @transform_3, window_bounds = array<i64: 512, 512>}, {pipeline_mode = #tpu.pipeline_mode<synchronous>, transform_indices = @transform_4, window_bounds = array<i64: 1, 512>}, {pipeline_mode = #tpu.pipeline_mode<synchronous>, transform_indices = @transform_5, window_bounds = array<i64: 512, 128>}, {pipeline_mode = #tpu.pipeline_mode<synchronous>, transform_indices = @transform_6, window_bounds = array<i64: 1, 128>}, {pipeline_mode = #tpu.pipeline_mode<synchronous>, transform_indices = @transform_7, window_bounds = array<i64: 1, 128>}, {pipeline_mode = #tpu.pipeline_mode<synchronous>, transform_indices = @transform_8, window_bounds = array<i64: 1, 1>}, {transform_indices = @transform_9, window_bounds = array<i64: 8, 128>}]} {
    %c0 = arith.constant 0 : index
    %c0_0 = arith.constant 0 : index
    %c0_1 = arith.constant 0 : index
    %0 = vector.load %arg1[%c0, %c0_0, %c0_1] : memref<8x9x1792xbf16, #tpu.memory_space<vmem>>, vector<8x9x1792xbf16>
    %1 = arith.extf %0 : vector<8x9x1792xbf16> to vector<8x9x1792xf32>
    %cst = arith.constant dense<0.000000e+00> : vector<8x1792xf32>
    %2 = vector.multi_reduction <add>, %1, %cst [1] : vector<8x9x1792xf32> to vector<8x1792xf32>
    %3 = arith.truncf %2 : vector<8x1792xf32> to vector<8x1792xbf16>
    %c0_2 = arith.constant 0 : index
    %c0_3 = arith.constant 0 : index
    %4 = vector.load %arg2[%c0_2, %c0_3] : memref<1792x512xbf16, #tpu.memory_space<vmem>>, vector<1792x512xbf16>
    %cst_4 = arith.constant dense<0.000000e+00> : vector<8x512xf32>
    %5 = tpu.matmul %3, %4, %cst_4 {dimension_numbers = #tpu.dot_dimension_numbers<[1], [0], [0], [1], [0, 0, 1, 1], [], []>} : vector<8x1792xbf16>, vector<1792x512xbf16>, vector<8x512xf32> -> vector<8x512xf32>
    %c0_5 = arith.constant 0 : index
    %c0_6 = arith.constant 0 : index
    %6 = vector.load %arg3[%c0_5, %c0_6] : memref<1x512xf32, #tpu.memory_space<vmem>>, vector<1x512xf32>
    %7 = vector.broadcast %6 : vector<1x512xf32> to vector<8x512xf32>
    %8 = arith.addf %5, %7 : vector<8x512xf32>
    %9 = arith.mulf %8, %8 : vector<8x512xf32>
    %cst_7 = arith.constant dense<0.000000e+00> : vector<8xf32>
    %10 = vector.multi_reduction <add>, %9, %cst_7 [1] : vector<8x512xf32> to vector<8xf32>
    %11 = vector.shape_cast %10 : vector<8xf32> to vector<8x1xf32>
    %cst_8 = arith.constant 1.000000e-24 : f32
    %12 = vector.broadcast %cst_8 : f32 to vector<8x1xf32>
    %13 = arith.maximumf %11, %12 : vector<8x1xf32>
    %14 = math.rsqrt %13 : vector<8x1xf32>
    %15 = vector.broadcast %14 : vector<8x1xf32> to vector<8x512xf32>
    %16 = arith.mulf %8, %15 : vector<8x512xf32>
    %17 = arith.truncf %16 : vector<8x512xf32> to vector<8x512xbf16>
    %c0_9 = arith.constant 0 : index
    %c0_10 = arith.constant 0 : index
    %18 = vector.load %arg4[%c0_9, %c0_10] : memref<512x512xbf16, #tpu.memory_space<vmem>>, vector<512x512xbf16>
    %cst_11 = arith.constant dense<0.000000e+00> : vector<8x512xf32>
    %19 = tpu.matmul %17, %18, %cst_11 {dimension_numbers = #tpu.dot_dimension_numbers<[1], [0], [0], [1], [0, 0, 1, 1], [], []>} : vector<8x512xbf16>, vector<512x512xbf16>, vector<8x512xf32> -> vector<8x512xf32>
    %c0_12 = arith.constant 0 : index
    %c0_13 = arith.constant 0 : index
    %20 = vector.load %arg5[%c0_12, %c0_13] : memref<1x512xf32, #tpu.memory_space<vmem>>, vector<1x512xf32>
    %21 = vector.broadcast %20 : vector<1x512xf32> to vector<8x512xf32>
    %22 = arith.addf %19, %21 : vector<8x512xf32>
    %cst_14 = arith.constant 0.000000e+00 : f32
    %23 = vector.broadcast %cst_14 : f32 to vector<8x512xf32>
    %24 = arith.maximumf %22, %23 : vector<8x512xf32>
    %25 = arith.truncf %24 : vector<8x512xf32> to vector<8x512xbf16>
    %c0_15 = arith.constant 0 : index
    %c0_16 = arith.constant 0 : index
    %26 = vector.load %arg6[%c0_15, %c0_16] : memref<512x128xbf16, #tpu.memory_space<vmem>>, vector<512x128xbf16>
    %cst_17 = arith.constant dense<0.000000e+00> : vector<8x128xf32>
    %27 = tpu.matmul %25, %26, %cst_17 {dimension_numbers = #tpu.dot_dimension_numbers<[1], [0], [0], [1], [0, 0, 1, 1], [], []>} : vector<8x512xbf16>, vector<512x128xbf16>, vector<8x128xf32> -> vector<8x128xf32>
    %c0_18 = arith.constant 0 : index
    %c0_19 = arith.constant 0 : index
    %28 = vector.load %arg7[%c0_18, %c0_19] : memref<1x128xf32, #tpu.memory_space<vmem>>, vector<1x128xf32>
    %29 = vector.broadcast %28 : vector<1x128xf32> to vector<8x128xf32>
    %30 = arith.addf %27, %29 : vector<8x128xf32>
    %cst_20 = arith.constant 0.000000e+00 : f32
    %31 = vector.broadcast %cst_20 : f32 to vector<8x128xf32>
    %32 = arith.maximumf %30, %31 : vector<8x128xf32>
    %c0_21 = arith.constant 0 : index
    %c0_22 = arith.constant 0 : index
    %33 = vector.load %arg8[%c0_21, %c0_22] : memref<1x128xf32, #tpu.memory_space<vmem>>, vector<1x128xf32>
    %34 = vector.broadcast %33 : vector<1x128xf32> to vector<8x128xf32>
    %35 = arith.mulf %32, %34 : vector<8x128xf32>
    %cst_23 = arith.constant dense<0.000000e+00> : vector<8xf32>
    %36 = vector.multi_reduction <add>, %35, %cst_23 [1] : vector<8x128xf32> to vector<8xf32>
    %37 = vector.shape_cast %36 : vector<8xf32> to vector<8x1xf32>
    %c0_24 = arith.constant 0 : index
    %c0_25 = arith.constant 0 : index
    %38 = vector.load %arg9[%c0_24, %c0_25] : memref<1x1xf32, #tpu.memory_space<vmem>>, vector<1x1xf32>
    %39 = vector.broadcast %38 : vector<1x1xf32> to vector<8x1xf32>
    %40 = arith.addf %37, %39 : vector<8x1xf32>
    %41 = arith.negf %40 : vector<8x1xf32>
    %42 = math.exp %41 : vector<8x1xf32>
    %cst_26 = arith.constant 1.000000e+00 : f32
    %43 = vector.broadcast %cst_26 : f32 to vector<8x1xf32>
    %44 = arith.addf %43, %42 : vector<8x1xf32>
    %45 = arith.divf %43, %44 : vector<8x1xf32>
    %46 = vector.shape_cast %45 : vector<8x1xf32> to vector<8x1xf32>
    %47 = vector.broadcast %46 : vector<8x1xf32> to vector<8x128xf32>
    %c0_27 = arith.constant 0 : index
    %c0_28 = arith.constant 0 : index
    %48 = vector.load %arg10[%c0_27, %c0_28] : memref<8x128xf32, #tpu.memory_space<vmem>>, vector<8x128xf32>
    tpu.vector_store %arg10[%c0_27, %c0_28], %47 {strides = array<i32>} : memref<8x128xf32, #tpu.memory_space<vmem>>, vector<8x128xf32>,
    return
  }
  func.func @transform_0(%arg0: i32) -> (i32, i32, i32) {
    %c0_i32 = arith.constant 0 : i32
    %c0_i32_0 = arith.constant 0 : i32
    %c0_i32_1 = arith.constant 0 : i32
    return %arg0, %c0_i32, %c0_i32_0 : i32, i32, i32
  }
  func.func @transform_1(%arg0: i32) -> (i32, i32) {
    %c0_i32 = arith.constant 0 : i32
    %c0_i32_0 = arith.constant 0 : i32
    %c0_i32_1 = arith.constant 0 : i32
    return %c0_i32, %c0_i32_0 : i32, i32
  }
  func.func @transform_2(%arg0: i32) -> (i32, i32) {
    %c0_i32 = arith.constant 0 : i32
    %c0_i32_0 = arith.constant 0 : i32
    %c0_i32_1 = arith.constant 0 : i32
    return %c0_i32, %c0_i32_0 : i32, i32
  }
  func.func @transform_3(%arg0: i32) -> (i32, i32) {
    %c0_i32 = arith.constant 0 : i32
    %c0_i32_0 = arith.constant 0 : i32
    %c0_i32_1 = arith.constant 0 : i32
    return %c0_i32, %c0_i32_0 : i32, i32
  }
  func.func @transform_4(%arg0: i32) -> (i32, i32) {
    %c0_i32 = arith.constant 0 : i32
    %c0_i32_0 = arith.constant 0 : i32
    %c0_i32_1 = arith.constant 0 : i32
    return %c0_i32, %c0_i32_0 : i32, i32
  }
  func.func @transform_5(%arg0: i32) -> (i32, i32) {
    %c0_i32 = arith.constant 0 : i32
    %c0_i32_0 = arith.constant 0 : i32
    %c0_i32_1 = arith.constant 0 : i32
    return %c0_i32, %c0_i32_0 : i32, i32
  }
  func.func @transform_6(%arg0: i32) -> (i32, i32) {
    %c0_i32 = arith.constant 0 : i32
    %c0_i32_0 = arith.constant 0 : i32
    %c0_i32_1 = arith.constant 0 : i32
    return %c0_i32, %c0_i32_0 : i32, i32
  }
  func.func @transform_7(%arg0: i32) -> (i32, i32) {
    %c0_i32 = arith.constant 0 : i32
    %c0_i32_0 = arith.constant 0 : i32
    %c0_i32_1 = arith.constant 0 : i32
    return %c0_i32, %c0_i32_0 : i32, i32
  }
  func.func @transform_8(%arg0: i32) -> (i32, i32) {
    %c0_i32 = arith.constant 0 : i32
    %c0_i32_0 = arith.constant 0 : i32
    %c0_i32_1 = arith.constant 0 : i32
    return %c0_i32, %c0_i32_0 : i32, i32
  }
  func.func @transform_9(%arg0: i32) -> (i32, i32) {
    %c0_i32 = arith.constant 0 : i32
    %c0_i32_0 = arith.constant 0 : i32
    return %arg0, %c0_i32 : i32, i32
  }
}

</mosaic_0001>

<llo_original>
// kernel: tpu_custom_call.1
$region0: #{tpu_custom_call.1}
  #allocation0 [shape = 'u32[]', space=smem, size = 0x4, offset = 0x4, fixed_abs, tag = 'smem constant byte address 0x4 - core index']
  #allocation1 [shape = 'u32[72,128]{1,0:T(1,128)}', space=vmem, size = 0x9000, scoped, tag = 'internal scratch']
  #allocation2 [shape = 'f32[1,1]{1,0:T(1,128)S(1)}', space=vmem, size = 0x200, scoped, tag = 'scoped memory for tpu_custom_call.1']
  %s0 = inlined_call_operand.vmem [shape: bf16[8,9,1792], index: 0, kind: input, shape index: {}]
  %s1 = inlined_call_operand.hbm [shape: bf16[1792,512], index: 1, kind: input, shape index: {}]
  %s2 = inlined_call_operand.hbm [shape: f32[1,512], index: 2, kind: input, shape index: {}]
  %s3 = inlined_call_operand.hbm [shape: bf16[512,512], index: 3, kind: input, shape index: {}]
  %s4 = inlined_call_operand.hbm [shape: f32[1,512], index: 4, kind: input, shape index: {}]
  %s5 = inlined_call_operand.hbm [shape: bf16[512,128], index: 5, kind: input, shape index: {}]
  %s6 = inlined_call_operand.hbm [shape: f32[1,128], index: 6, kind: input, shape index: {}]
  %s7 = inlined_call_operand.hbm [shape: f32[1,128], index: 7, kind: input, shape index: {}]
  %s8 = inlined_call_operand.<no memory space> [shape: f32[1,1], index: 8, kind: input, shape index: {}]
  %s9 = inlined_call_operand.hbm [shape: f32[8,128], index: 9, kind: output, shape index: {}]
  %s10 = sld [smem:[#allocation0]]
  $region74: #{tpu_custom_call.1} parent=0
    _
  %s12 = ssub.s32 1, %s10
  %s13 = scalar_select 0, %s12, %s10
  %v14 = vstv %s8
  %15 = vst [vmem:[#allocation2] sm:$0x1] %v14
  $region1: #{tpu_custom_call.1} parent=0
    #allocation3 [shape = 'u8[1835008]{0}', space=vmem, size = 0x1c0000, scoped, tag = 'input window, operand 1, single buffered']
    #allocation4 [shape = 's32[1]{0}', space=sflag, size = 0x4, scoped, tag = 'scoped memory for tpu_custom_call.1']
    #allocation5 [shape = 's32[1]{0}', space=sflag, size = 0x4, scoped, tag = 'scoped memory for tpu_custom_call.1']
    #allocation6 [shape = 'u8[2048]{0}', space=vmem, size = 0x800, scoped, tag = 'input window, operand 2, single buffered']
    #allocation7 [shape = 's32[1]{0}', space=sflag, size = 0x4, scoped, tag = 'scoped memory for tpu_custom_call.1']
    #allocation8 [shape = 'u8[524288]{0}', space=vmem, size = 0x80000, scoped, tag = 'input window, operand 3, single buffered']
    #allocation9 [shape = 'u8[2048]{0}', space=vmem, size = 0x800, scoped, tag = 'input window, operand 4, single buffered']
    #allocation10 [shape = 's32[1]{0}', space=sflag, size = 0x4, scoped, tag = 'scoped memory for tpu_custom_call.1']
    #allocation11 [shape = 'u8[131072]{0}', space=vmem, size = 0x20000, scoped, tag = 'input window, operand 5, single buffered']
    #allocation12 [shape = 'u8[512]{0}', space=vmem, size = 0x400, scoped, tag = 'input window, operand 6, single buffered']
    #allocation13 [shape = 's32[1]{0}', space=sflag, size = 0x4, scoped, tag = 'scoped memory for tpu_custom_call.1']
    #allocation14 [shape = 'u8[512]{0}', space=vmem, size = 0x400, scoped, tag = 'input window, operand 7, single buffered']
    #allocation15 [shape = 'u8[4096]{0}', space=vmem, size = 0x1000, scoped, tag = 'output window, operand 0, single buffered']
    %16 = vsyncpa [#allocation4], 0
    %17 = vsyncpa [#allocation7], 0
    %18 = vsyncpa [#allocation10], 0
    %19 = vsyncpa [#allocation13], 0
    %20 = vsyncpa [#allocation5], 0
    // Predicated region
    $region2: #{tpu_custom_call.1} parent=1 // pred_check
      _
    $region3: #{tpu_custom_call.1} parent=1 // pred_check_branch
      %22 = sbr.rel (0) target = $region5
    $region4: #{tpu_custom_call.1} parent=1 // pred_region
      _
    $region5: #{tpu_custom_call.1} parent=1 // pred_fallthru
      _
    // Predicated region
    $region6: #{tpu_custom_call.1} parent=1 // pred_check
      _
    $region7: #{tpu_custom_call.1} parent=1 // pred_check_branch
      %24 = sbr.rel (0) target = $region9
    $region8: #{tpu_custom_call.1} parent=1 // pred_region
      %26 = vsyncadd [#allocation4], 0
      %s27 = sshll.u32 %s1, 4
      %s28 = int_to_ptr.hbm [resolvable:$true] %s27
      %s29 = sshll.u32 [#allocation3], 4
      %s30 = int_to_ptr.vmem [resolvable:$true] %s29
      %35 = dma.hbm_to_vmem [thread:$0]  %s28, 57344, %s30, [#allocation4], 256, 256, 16
    $region9: #{tpu_custom_call.1} parent=1 // pred_fallthru
      _
    // Predicated region
    $region10: #{tpu_custom_call.1} parent=1 // pred_check
      _
    $region11: #{tpu_custom_call.1} parent=1 // pred_check_branch
      %37 = sbr.rel (0) target = $region13
    $region12: #{tpu_custom_call.1} parent=1 // pred_region
      %39 = vsyncadd [#allocation7], 0
      %s41 = sshll.u32 %s2, 4
      %s42 = int_to_ptr.hbm [resolvable:$true] %s41
      %s43 = sshll.u32 [#allocation6], 4
      %s44 = int_to_ptr.vmem [resolvable:$true] %s43
      %46 = dma.hbm_to_vmem [thread:$0]  %s42, 64, %s44, [#allocation7]
    $region13: #{tpu_custom_call.1} parent=1 // pred_fallthru
      _
    // Predicated region
    $region14: #{tpu_custom_call.1} parent=1 // pred_check
      _
    $region15: #{tpu_custom_call.1} parent=1 // pred_check_branch
      %48 = sbr.rel (0) target = $region17
    $region16: #{tpu_custom_call.1} parent=1 // pred_region
      %50 = vsyncadd [#allocation7], 0
      %s51 = sshll.u32 %s3, 4
      %s52 = int_to_ptr.hbm [resolvable:$true] %s51
      %s53 = sshll.u32 [#allocation8], 4
      %s54 = int_to_ptr.vmem [resolvable:$true] %s53
      %59 = dma.hbm_to_vmem [thread:$0]  %s52, 16384, %s54, [#allocation7], 256, 256, 16
    $region17: #{tpu_custom_call.1} parent=1 // pred_fallthru
      _
    // Predicated region
    $region18: #{tpu_custom_call.1} parent=1 // pred_check
      _
    $region19: #{tpu_custom_call.1} parent=1 // pred_check_branch
      %61 = sbr.rel (0) target = $region21
    $region20: #{tpu_custom_call.1} parent=1 // pred_region
      %63 = vsyncadd [#allocation10], 0
      %s65 = sshll.u32 %s4, 4
      %s66 = int_to_ptr.hbm [resolvable:$true] %s65
      %s67 = sshll.u32 [#allocation9], 4
      %s68 = int_to_ptr.vmem [resolvable:$true] %s67
      %70 = dma.hbm_to_vmem [thread:$0]  %s66, 64, %s68, [#allocation10]
    $region21: #{tpu_custom_call.1} parent=1 // pred_fallthru
      _
    // Predicated region
    $region22: #{tpu_custom_call.1} parent=1 // pred_check
      _
    $region23: #{tpu_custom_call.1} parent=1 // pred_check_branch
      %72 = sbr.rel (0) target = $region25
    $region24: #{tpu_custom_call.1} parent=1 // pred_region
      %74 = vsyncadd [#allocation10], 0
      %s75 = sshll.u32 %s5, 4
      %s76 = int_to_ptr.hbm [resolvable:$true] %s75
      %s77 = sshll.u32 [#allocation11], 4
      %s78 = int_to_ptr.vmem [resolvable:$true] %s77
      %83 = dma.hbm_to_vmem [thread:$0]  %s76, 4096, %s78, [#allocation10], 64, 64, 4
    $region25: #{tpu_custom_call.1} parent=1 // pred_fallthru
      _
    // Predicated region
    $region26: #{tpu_custom_call.1} parent=1 // pred_check
      _
    $region27: #{tpu_custom_call.1} parent=1 // pred_check_branch
      %85 = sbr.rel (0) target = $region29
    $region28: #{tpu_custom_call.1} parent=1 // pred_region
      %87 = vsyncadd [#allocation13], 0
      %s89 = sshll.u32 %s6, 4
      %s90 = int_to_ptr.hbm [resolvable:$true] %s89
      %s91 = sshll.u32 [#allocation12], 4
      %s92 = int_to_ptr.vmem [resolvable:$true] %s91
      %94 = dma.hbm_to_vmem [thread:$0]  %s90, 16, %s92, [#allocation13]
    $region29: #{tpu_custom_call.1} parent=1 // pred_fallthru
      _
    // Predicated region
    $region30: #{tpu_custom_call.1} parent=1 // pred_check
      _
    $region31: #{tpu_custom_call.1} parent=1 // pred_check_branch
      %96 = sbr.rel (0) target = $region33
    $region32: #{tpu_custom_call.1} parent=1 // pred_region
      %98 = vsyncadd [#allocation13], 0
      %s100 = sshll.u32 %s7, 4
      %s101 = int_to_ptr.hbm [resolvable:$true] %s100
      %s102 = sshll.u32 [#allocation14], 4
      %s103 = int_to_ptr.vmem [resolvable:$true] %s102
      %105 = dma.hbm_to_vmem [thread:$0]  %s101, 16, %s103, [#allocation13]
    $region33: #{tpu_custom_call.1} parent=1 // pred_fallthru
      _
    // Predicated region
    $region34: #{tpu_custom_call.1} parent=1 // pred_check
      _
    $region35: #{tpu_custom_call.1} parent=1 // pred_check_branch
      %107 = sbr.rel (0) target = $region37
    $region36: #{tpu_custom_call.1} parent=1 // pred_region
      _
    $region37: #{tpu_custom_call.1} parent=1 // pred_fallthru
      _
    // Predicated region
    $region38: #{tpu_custom_call.1} parent=1 // pred_check
      _
    $region39: #{tpu_custom_call.1} parent=1 // pred_check_branch
      %109 = sbr.rel (0) target = $region41
    $region40: #{tpu_custom_call.1} parent=1 // pred_region
      %111 = dma.done [#allocation4], 57344
    $region41: #{tpu_custom_call.1} parent=1 // pred_fallthru
      _
    // Predicated region
    $region42: #{tpu_custom_call.1} parent=1 // pred_check
      _
    $region43: #{tpu_custom_call.1} parent=1 // pred_check_branch
      %113 = sbr.rel (0) target = $region45
    $region44: #{tpu_custom_call.1} parent=1 // pred_region
      %115 = dma.done [#allocation7], 64
    $region45: #{tpu_custom_call.1} parent=1 // pred_fallthru
      _
    // Predicated region
    $region46: #{tpu_custom_call.1} parent=1 // pred_check
      _
    $region47: #{tpu_custom_call.1} parent=1 // pred_check_branch
      %117 = sbr.rel (0) target = $region49
    $region48: #{tpu_custom_call.1} parent=1 // pred_region
      %119 = dma.done [#allocation7], 16384
    $region49: #{tpu_custom_call.1} parent=1 // pred_fallthru
      _
    // Predicated region
    $region50: #{tpu_custom_call.1} parent=1 // pred_check
      _
    $region51: #{tpu_custom_call.1} parent=1 // pred_check_branch
      %121 = sbr.rel (0) target = $region53
    $region52: #{tpu_custom_call.1} parent=1 // pred_region
      %123 = dma.done [#allocation10], 64
    $region53: #{tpu_custom_call.1} parent=1 // pred_fallthru
      _
    // Predicated region
    $region54: #{tpu_custom_call.1} parent=1 // pred_check
      _
    $region55: #{tpu_custom_call.1} parent=1 // pred_check_branch
      %125 = sbr.rel (0) target = $region57
    $region56: #{tpu_custom_call.1} parent=1 // pred_region
      %127 = dma.done [#allocation10], 4096
    $region57: #{tpu_custom_call.1} parent=1 // pred_fallthru
      _
    // Predicated region
    $region58: #{tpu_custom_call.1} parent=1 // pred_check
      _
    $region59: #{tpu_custom_call.1} parent=1 // pred_check_branch
      %129 = sbr.rel (0) target = $region61
    $region60: #{tpu_custom_call.1} parent=1 // pred_region
      %131 = dma.done [#allocation13], 16
    $region61: #{tpu_custom_call.1} parent=1 // pred_fallthru
      _
    // Predicated region
    $region62: #{tpu_custom_call.1} parent=1 // pred_check
      _
    $region63: #{tpu_custom_call.1} parent=1 // pred_check_branch
      %133 = sbr.rel (0) target = $region65
    $region64: #{tpu_custom_call.1} parent=1 // pred_region
      %135 = dma.done [#allocation13], 16
    $region65: #{tpu_custom_call.1} parent=1 // pred_fallthru
      _
    %v136 = vld [vmem:[%s0] sm:$0xff]
    %v137 = vld [vmem:[%s0 + $0x8] sm:$0xff]
    %v138 = vld [vmem:[%s0 + $0x10] sm:$0xff]
    %v139 = vld [vmem:[%s0 + $0x18] sm:$0xff]
    %v140 = vld [vmem:[%s0 + $0x20] sm:$0xff]
    %v141 = vld [vmem:[%s0 + $0x28] sm:$0xff]
    %v142 = vld [vmem:[%s0 + $0x30] sm:$0xff]
    %v143 = vld [vmem:[%s0 + $0x38] sm:$0x11]
    %v144 = vld [vmem:[%s0 + $0x40] sm:$0x11]
    %v145 = vld [vmem:[%s0 + $0x48] sm:$0x11]
    %v146 = vld [vmem:[%s0 + $0x50] sm:$0x11]
    %v147 = vld [vmem:[%s0 + $0x58] sm:$0x11]
    %v148 = vld [vmem:[%s0 + $0x60] sm:$0x11]
    %v149 = vld [vmem:[%s0 + $0x68] sm:$0x11]
    %v150 = vld [vmem:[%s0 + $0x70] sm:$0xff]
    %v151 = vld [vmem:[%s0 + $0x78] sm:$0xff]
    %v152 = vld [vmem:[%s0 + $0x80] sm:$0xff]
    %v153 = vld [vmem:[%s0 + $0x88] sm:$0xff]
    %v154 = vld [vmem:[%s0 + $0x90] sm:$0xff]
    %v155 = vld [vmem:[%s0 + $0x98] sm:$0xff]
    %v156 = vld [vmem:[%s0 + $0xa0] sm:$0xff]
    %v157 = vld [vmem:[%s0 + $0xa8] sm:$0x11]
    %v158 = vld [vmem:[%s0 + $0xb0] sm:$0x11]
    %v159 = vld [vmem:[%s0 + $0xb8] sm:$0x11]
    %v160 = vld [vmem:[%s0 + $0xc0] sm:$0x11]
    %v161 = vld [vmem:[%s0 + $0xc8] sm:$0x11]
    %v162 = vld [vmem:[%s0 + $0xd0] sm:$0x11]
    %v163 = vld [vmem:[%s0 + $0xd8] sm:$0x11]
    %v164 = vld [vmem:[%s0 + $0xe0] sm:$0xff]
    %v165 = vld [vmem:[%s0 + $0xe8] sm:$0xff]
    %v166 = vld [vmem:[%s0 + $0xf0] sm:$0xff]
    %v167 = vld [vmem:[%s0 + $0xf8] sm:$0xff]
    %v168 = vld [vmem:[%s0 + $0x100] sm:$0xff]
    %v169 = vld [vmem:[%s0 + $0x108] sm:$0xff]
    %v170 = vld [vmem:[%s0 + $0x110] sm:$0xff]
    %v171 = vld [vmem:[%s0 + $0x118] sm:$0x11]
    %v172 = vld [vmem:[%s0 + $0x120] sm:$0x11]
    %v173 = vld [vmem:[%s0 + $0x128] sm:$0x11]
    %v174 = vld [vmem:[%s0 + $0x130] sm:$0x11]
    %v175 = vld [vmem:[%s0 + $0x138] sm:$0x11]
    %v176 = vld [vmem:[%s0 + $0x140] sm:$0x11]
    %v177 = vld [vmem:[%s0 + $0x148] sm:$0x11]
    %v178 = vld [vmem:[%s0 + $0x150] sm:$0xff]
    %v179 = vld [vmem:[%s0 + $0x158] sm:$0xff]
    %v180 = vld [vmem:[%s0 + $0x160] sm:$0xff]
    %v181 = vld [vmem:[%s0 + $0x168] sm:$0xff]
    %v182 = vld [vmem:[%s0 + $0x170] sm:$0xff]
    %v183 = vld [vmem:[%s0 + $0x178] sm:$0xff]
    %v184 = vld [vmem:[%s0 + $0x180] sm:$0xff]
    %v185 = vld [vmem:[%s0 + $0x188] sm:$0x11]
    %v186 = vld [vmem:[%s0 + $0x190] sm:$0x11]
    %v187 = vld [vmem:[%s0 + $0x198] sm:$0x11]
    %v188 = vld [vmem:[%s0 + $0x1a0] sm:$0x11]
    %v189 = vld [vmem:[%s0 + $0x1a8] sm:$0x11]
    %v190 = vld [vmem:[%s0 + $0x1b0] sm:$0x11]
    %v191 = vld [vmem:[%s0 + $0x1b8] sm:$0x11]
    %v192 = vld [vmem:[%s0 + $0x1c0] sm:$0xff]
    %v193 = vld [vmem:[%s0 + $0x1c8] sm:$0xff]
    %v194 = vld [vmem:[%s0 + $0x1d0] sm:$0xff]
    %v195 = vld [vmem:[%s0 + $0x1d8] sm:$0xff]
    %v196 = vld [vmem:[%s0 + $0x1e0] sm:$0xff]
    %v197 = vld [vmem:[%s0 + $0x1e8] sm:$0xff]
    %v198 = vld [vmem:[%s0 + $0x1f0] sm:$0xff]
    %v199 = vld [vmem:[%s0 + $0x1f8] sm:$0x11]
    %v200 = vld [vmem:[%s0 + $0x200] sm:$0x11]
    %v201 = vld [vmem:[%s0 + $0x208] sm:$0x11]
    %v202 = vld [vmem:[%s0 + $0x210] sm:$0x11]
    %v203 = vld [vmem:[%s0 + $0x218] sm:$0x11]
    %v204 = vld [vmem:[%s0 + $0x220] sm:$0x11]
    %v205 = vld [vmem:[%s0 + $0x228] sm:$0x11]
    %v206 = vld [vmem:[%s0 + $0x230] sm:$0xff]
    %v207 = vld [vmem:[%s0 + $0x238] sm:$0xff]
    %v208 = vld [vmem:[%s0 + $0x240] sm:$0xff]
    %v209 = vld [vmem:[%s0 + $0x248] sm:$0xff]
    %v210 = vld [vmem:[%s0 + $0x250] sm:$0xff]
    %v211 = vld [vmem:[%s0 + $0x258] sm:$0xff]
    %v212 = vld [vmem:[%s0 + $0x260] sm:$0xff]
    %v213 = vld [vmem:[%s0 + $0x268] sm:$0x11]
    %v214 = vld [vmem:[%s0 + $0x270] sm:$0x11]
    %v215 = vld [vmem:[%s0 + $0x278] sm:$0x11]
    %v216 = vld [vmem:[%s0 + $0x280] sm:$0x11]
    %v217 = vld [vmem:[%s0 + $0x288] sm:$0x11]
    %v218 = vld [vmem:[%s0 + $0x290] sm:$0x11]
    %v219 = vld [vmem:[%s0 + $0x298] sm:$0x11]
    %v220 = vld [vmem:[%s0 + $0x2a0] sm:$0xff]
    %v221 = vld [vmem:[%s0 + $0x2a8] sm:$0xff]
    %v222 = vld [vmem:[%s0 + $0x2b0] sm:$0xff]
    %v223 = vld [vmem:[%s0 + $0x2b8] sm:$0xff]
    %v224 = vld [vmem:[%s0 + $0x2c0] sm:$0xff]
    %v225 = vld [vmem:[%s0 + $0x2c8] sm:$0xff]
    %v226 = vld [vmem:[%s0 + $0x2d0] sm:$0xff]
    %v227 = vld [vmem:[%s0 + $0x2d8] sm:$0x11]
    %v228 = vld [vmem:[%s0 + $0x2e0] sm:$0x11]
    %v229 = vld [vmem:[%s0 + $0x2e8] sm:$0x11]
    %v230 = vld [vmem:[%s0 + $0x2f0] sm:$0x11]
    %v231 = vld [vmem:[%s0 + $0x2f8] sm:$0x11]
    %v232 = vld [vmem:[%s0 + $0x300] sm:$0x11]
    %v233 = vld [vmem:[%s0 + $0x308] sm:$0x11]
    %v234 = vld [vmem:[%s0 + $0x310] sm:$0xff]
    %v235 = vld [vmem:[%s0 + $0x318] sm:$0xff]
    %v236 = vld [vmem:[%s0 + $0x320] sm:$0xff]
    %v237 = vld [vmem:[%s0 + $0x328] sm:$0xff]
    %v238 = vld [vmem:[%s0 + $0x330] sm:$0xff]
    %v239 = vld [vmem:[%s0 + $0x338] sm:$0xff]
    %v240 = vld [vmem:[%s0 + $0x340] sm:$0xff]
    %v241 = vld [vmem:[%s0 + $0x348] sm:$0x11]
    %v242 = vld [vmem:[%s0 + $0x350] sm:$0x11]
    %v243 = vld [vmem:[%s0 + $0x358] sm:$0x11]
    %v244 = vld [vmem:[%s0 + $0x360] sm:$0x11]
    %v245 = vld [vmem:[%s0 + $0x368] sm:$0x11]
    %v246 = vld [vmem:[%s0 + $0x370] sm:$0x11]
    %v247 = vld [vmem:[%s0 + $0x378] sm:$0x11]
    %v248 = vunpack.c.l.bf16 %v136
    %v249 = vunpack.c.h.bf16 %v136
    %v250 = vunpack.c.l.bf16 %v137
    %v251 = vunpack.c.h.bf16 %v137
    %v252 = vunpack.c.l.bf16 %v138
    %v253 = vunpack.c.h.bf16 %v138
    %v254 = vunpack.c.l.bf16 %v139
    %v255 = vunpack.c.h.bf16 %v139
    %v256 = vunpack.c.l.bf16 %v140
    %v257 = vunpack.c.h.bf16 %v140
    %v258 = vunpack.c.l.bf16 %v141
    %v259 = vunpack.c.h.bf16 %v141
    %v260 = vunpack.c.l.bf16 %v142
    %v261 = vunpack.c.h.bf16 %v142
    %v262 = vunpack.c.l.bf16 %v143
    %v263 = vunpack.c.h.bf16 %v143
    %v264 = vunpack.c.l.bf16 %v144
    %v265 = vunpack.c.h.bf16 %v144
    %v266 = vunpack.c.l.bf16 %v145
    %v267 = vunpack.c.h.bf16 %v145
    %v268 = vunpack.c.l.bf16 %v146
    %v269 = vunpack.c.h.bf16 %v146
    %v270 = vunpack.c.l.bf16 %v147
    %v271 = vunpack.c.h.bf16 %v147
    %v272 = vunpack.c.l.bf16 %v148
    %v273 = vunpack.c.h.bf16 %v148
    %v274 = vunpack.c.l.bf16 %v149
    %v275 = vunpack.c.h.bf16 %v149
    %v276 = vunpack.c.l.bf16 %v150
    %v277 = vunpack.c.h.bf16 %v150
    %v278 = vunpack.c.l.bf16 %v151
    %v279 = vunpack.c.h.bf16 %v151
    %v280 = vunpack.c.l.bf16 %v152
    %v281 = vunpack.c.h.bf16 %v152
    %v282 = vunpack.c.l.bf16 %v153
    %v283 = vunpack.c.h.bf16 %v153
    %v284 = vunpack.c.l.bf16 %v154
    %v285 = vunpack.c.h.bf16 %v154
    %v286 = vunpack.c.l.bf16 %v155
    %v287 = vunpack.c.h.bf16 %v155
    %v288 = vunpack.c.l.bf16 %v156
    %v289 = vunpack.c.h.bf16 %v156
    %v290 = vunpack.c.l.bf16 %v157
    %v291 = vunpack.c.h.bf16 %v157
    %v292 = vunpack.c.l.bf16 %v158
    %v293 = vunpack.c.h.bf16 %v158
    %v294 = vunpack.c.l.bf16 %v159
    %v295 = vunpack.c.h.bf16 %v159
    %v296 = vunpack.c.l.bf16 %v160
    %v297 = vunpack.c.h.bf16 %v160
    %v298 = vunpack.c.l.bf16 %v161
    %v299 = vunpack.c.h.bf16 %v161
    %v300 = vunpack.c.l.bf16 %v162
    %v301 = vunpack.c.h.bf16 %v162
    %v302 = vunpack.c.l.bf16 %v163
    %v303 = vunpack.c.h.bf16 %v163
    %v304 = vunpack.c.l.bf16 %v164
    %v305 = vunpack.c.h.bf16 %v164
    %v306 = vunpack.c.l.bf16 %v165
    %v307 = vunpack.c.h.bf16 %v165
    %v308 = vunpack.c.l.bf16 %v166
    %v309 = vunpack.c.h.bf16 %v166
    %v310 = vunpack.c.l.bf16 %v167
    %v311 = vunpack.c.h.bf16 %v167
    %v312 = vunpack.c.l.bf16 %v168
    %v313 = vunpack.c.h.bf16 %v168
    %v314 = vunpack.c.l.bf16 %v169
    %v315 = vunpack.c.h.bf16 %v169
    %v316 = vunpack.c.l.bf16 %v170
    %v317 = vunpack.c.h.bf16 %v170
    %v318 = vunpack.c.l.bf16 %v171
    %v319 = vunpack.c.h.bf16 %v171
    %v320 = vunpack.c.l.bf16 %v172
    %v321 = vunpack.c.h.bf16 %v172
    %v322 = vunpack.c.l.bf16 %v173
    %v323 = vunpack.c.h.bf16 %v173
    %v324 = vunpack.c.l.bf16 %v174
    %v325 = vunpack.c.h.bf16 %v174
    %v326 = vunpack.c.l.bf16 %v175
    %v327 = vunpack.c.h.bf16 %v175
    %v328 = vunpack.c.l.bf16 %v176
    %v329 = vunpack.c.h.bf16 %v176
    %v330 = vunpack.c.l.bf16 %v177
    %v331 = vunpack.c.h.bf16 %v177
    %v332 = vunpack.c.l.bf16 %v178
    %v333 = vunpack.c.h.bf16 %v178
    %v334 = vunpack.c.l.bf16 %v179
    %v335 = vunpack.c.h.bf16 %v179
    %v336 = vunpack.c.l.bf16 %v180
    %v337 = vunpack.c.h.bf16 %v180
    %v338 = vunpack.c.l.bf16 %v181
    %v339 = vunpack.c.h.bf16 %v181
    %v340 = vunpack.c.l.bf16 %v182
    %v341 = vunpack.c.h.bf16 %v182
    %v342 = vunpack.c.l.bf16 %v183
    %v343 = vunpack.c.h.bf16 %v183
    %v344 = vunpack.c.l.bf16 %v184
    %v345 = vunpack.c.h.bf16 %v184
    %v346 = vunpack.c.l.bf16 %v185
    %v347 = vunpack.c.h.bf16 %v185
    %v348 = vunpack.c.l.bf16 %v186
    %v349 = vunpack.c.h.bf16 %v186
    %v350 = vunpack.c.l.bf16 %v187
    %v351 = vunpack.c.h.bf16 %v187
    %v352 = vunpack.c.l.bf16 %v188
    %v353 = vunpack.c.h.bf16 %v188
    %v354 = vunpack.c.l.bf16 %v189
    %v355 = vunpack.c.h.bf16 %v189
    %v356 = vunpack.c.l.bf16 %v190
    %v357 = vunpack.c.h.bf16 %v190
    %v358 = vunpack.c.l.bf16 %v191
    %v359 = vunpack.c.h.bf16 %v191
    %v360 = vunpack.c.l.bf16 %v192
    %v361 = vunpack.c.h.bf16 %v192
    %v362 = vunpack.c.l.bf16 %v193
    %v363 = vunpack.c.h.bf16 %v193
    %v364 = vunpack.c.l.bf16 %v194
    %v365 = vunpack.c.h.bf16 %v194
    %v366 = vunpack.c.l.bf16 %v195
    %v367 = vunpack.c.h.bf16 %v195
    %v368 = vunpack.c.l.bf16 %v196
    %v369 = vunpack.c.h.bf16 %v196
    %v370 = vunpack.c.l.bf16 %v197
    %v371 = vunpack.c.h.bf16 %v197
    %v372 = vunpack.c.l.bf16 %v198
    %v373 = vunpack.c.h.bf16 %v198
    %v374 = vunpack.c.l.bf16 %v199
    %v375 = vunpack.c.h.bf16 %v199
    %v376 = vunpack.c.l.bf16 %v200
    %v377 = vunpack.c.h.bf16 %v200
    %v378 = vunpack.c.l.bf16 %v201
    %v379 = vunpack.c.h.bf16 %v201
    %v380 = vunpack.c.l.bf16 %v202
    %v381 = vunpack.c.h.bf16 %v202
    %v382 = vunpack.c.l.bf16 %v203
    %v383 = vunpack.c.h.bf16 %v203
    %v384 = vunpack.c.l.bf16 %v204
    %v385 = vunpack.c.h.bf16 %v204
    %v386 = vunpack.c.l.bf16 %v205
    %v387 = vunpack.c.h.bf16 %v205
    %v388 = vunpack.c.l.bf16 %v206
    %v389 = vunpack.c.h.bf16 %v206
    %v390 = vunpack.c.l.bf16 %v207
    %v391 = vunpack.c.h.bf16 %v207
    %v392 = vunpack.c.l.bf16 %v208
    %v393 = vunpack.c.h.bf16 %v208
    %v394 = vunpack.c.l.bf16 %v209
    %v395 = vunpack.c.h.bf16 %v209
    %v396 = vunpack.c.l.bf16 %v210
    %v397 = vunpack.c.h.bf16 %v210
    %v398 = vunpack.c.l.bf16 %v211
    %v399 = vunpack.c.h.bf16 %v211
    %v400 = vunpack.c.l.bf16 %v212
    %v401 = vunpack.c.h.bf16 %v212
    %v402 = vunpack.c.l.bf16 %v213
    %v403 = vunpack.c.h.bf16 %v213
    %v404 = vunpack.c.l.bf16 %v214
    %v405 = vunpack.c.h.bf16 %v214
    %v406 = vunpack.c.l.bf16 %v215
    %v407 = vunpack.c.h.bf16 %v215
    %v408 = vunpack.c.l.bf16 %v216
    %v409 = vunpack.c.h.bf16 %v216
    %v410 = vunpack.c.l.bf16 %v217
    %v411 = vunpack.c.h.bf16 %v217
    %v412 = vunpack.c.l.bf16 %v218
    %v413 = vunpack.c.h.bf16 %v218
    %v414 = vunpack.c.l.bf16 %v219
    %v415 = vunpack.c.h.bf16 %v219
    %v416 = vunpack.c.l.bf16 %v220
    %v417 = vunpack.c.h.bf16 %v220
    %v418 = vunpack.c.l.bf16 %v221
    %v419 = vunpack.c.h.bf16 %v221
    %v420 = vunpack.c.l.bf16 %v222
    %v421 = vunpack.c.h.bf16 %v222
    %v422 = vunpack.c.l.bf16 %v223
    %v423 = vunpack.c.h.bf16 %v223
    %v424 = vunpack.c.l.bf16 %v224
    %v425 = vunpack.c.h.bf16 %v224
    %v426 = vunpack.c.l.bf16 %v225
    %v427 = vunpack.c.h.bf16 %v225
    %v428 = vunpack.c.l.bf16 %v226
    %v429 = vunpack.c.h.bf16 %v226
    %v430 = vunpack.c.l.bf16 %v227
    %v431 = vunpack.c.h.bf16 %v227
    %v432 = vunpack.c.l.bf16 %v228
    %v433 = vunpack.c.h.bf16 %v228
    %v434 = vunpack.c.l.bf16 %v229
    %v435 = vunpack.c.h.bf16 %v229
    %v436 = vunpack.c.l.bf16 %v230
    %v437 = vunpack.c.h.bf16 %v230
    %v438 = vunpack.c.l.bf16 %v231
    %v439 = vunpack.c.h.bf16 %v231
    %v440 = vunpack.c.l.bf16 %v232
    %v441 = vunpack.c.h.bf16 %v232
    %v442 = vunpack.c.l.bf16 %v233
    %v443 = vunpack.c.h.bf16 %v233
    %v444 = vunpack.c.l.bf16 %v234
    %v445 = vunpack.c.h.bf16 %v234
    %v446 = vunpack.c.l.bf16 %v235
    %v447 = vunpack.c.h.bf16 %v235
    %v448 = vunpack.c.l.bf16 %v236
    %v449 = vunpack.c.h.bf16 %v236
    %v450 = vunpack.c.l.bf16 %v237
    %v451 = vunpack.c.h.bf16 %v237
    %v452 = vunpack.c.l.bf16 %v238
    %v453 = vunpack.c.h.bf16 %v238
    %v454 = vunpack.c.l.bf16 %v239
    %v455 = vunpack.c.h.bf16 %v239
    %v456 = vunpack.c.l.bf16 %v240
    %v457 = vunpack.c.h.bf16 %v240
    %v458 = vunpack.c.l.bf16 %v241
    %v459 = vunpack.c.h.bf16 %v241
    %v460 = vunpack.c.l.bf16 %v242
    %v461 = vunpack.c.h.bf16 %v242
    %v462 = vunpack.c.l.bf16 %v243
    %v463 = vunpack.c.h.bf16 %v243
    %v464 = vunpack.c.l.bf16 %v244
    %v465 = vunpack.c.h.bf16 %v244
    %v466 = vunpack.c.l.bf16 %v245
    %v467 = vunpack.c.h.bf16 %v245
    %v468 = vunpack.c.l.bf16 %v246
    %v469 = vunpack.c.h.bf16 %v246
    %v470 = vunpack.c.l.bf16 %v247
    %v471 = vunpack.c.h.bf16 %v247
    %vm472 = vcmask 1040384
    %v473 = vsel %vm472, %v262, 0.0
    %v474 = vadd.f32 %v248, %v473
    %v475 = vrot.slane %v474, 4
    %v476 = vadd.f32 %v474, %v475
    %v477 = vrot.slane %v476, 2
    %v478 = vadd.f32 %v476, %v477
    %v479 = vrot.slane %v478, 1
    %v480 = vadd.f32 %v478, %v479
    %v481 = vsel %vm472, %v263, 0.0
    %v482 = vadd.f32 %v249, %v481
    %v483 = vrot.slane %v482, 4
    %v484 = vadd.f32 %v482, %v483
    %v485 = vrot.slane %v484, 2
    %v486 = vadd.f32 %v484, %v485
    %v487 = vrot.slane %v486, 1
    %v488 = vadd.f32 %v486, %v487
    %v489 = vsel %vm472, %v264, 0.0
    %v490 = vadd.f32 %v250, %v489
    %v491 = vrot.slane %v490, 4
    %v492 = vadd.f32 %v490, %v491
    %v493 = vrot.slane %v492, 2
    %v494 = vadd.f32 %v492, %v493
    %v495 = vrot.slane %v494, 1
    %v496 = vadd.f32 %v494, %v495
    %v497 = vsel %vm472, %v265, 0.0
    %v498 = vadd.f32 %v251, %v497
    %v499 = vrot.slane %v498, 4
    %v500 = vadd.f32 %v498, %v499
    %v501 = vrot.slane %v500, 2
    %v502 = vadd.f32 %v500, %v501
    %v503 = vrot.slane %v502, 1
    %v504 = vadd.f32 %v502, %v503
    %v505 = vsel %vm472, %v266, 0.0
    %v506 = vadd.f32 %v252, %v505
    %v507 = vrot.slane %v506, 4
    %v508 = vadd.f32 %v506, %v507
    %v509 = vrot.slane %v508, 2
    %v510 = vadd.f32 %v508, %v509
    %v511 = vrot.slane %v510, 1
    %v512 = vadd.f32 %v510, %v511
    %v513 = vsel %vm472, %v267, 0.0
    %v514 = vadd.f32 %v253, %v513
    %v515 = vrot.slane %v514, 4
    %v516 = vadd.f32 %v514, %v515
    %v517 = vrot.slane %v516, 2
    %v518 = vadd.f32 %v516, %v517
    %v519 = vrot.slane %v518, 1
    %v520 = vadd.f32 %v518, %v519
    %v521 = vsel %vm472, %v268, 0.0
    %v522 = vadd.f32 %v254, %v521
    %v523 = vrot.slane %v522, 4
    %v524 = vadd.f32 %v522, %v523
    %v525 = vrot.slane %v524, 2
    %v526 = vadd.f32 %v524, %v525
    %v527 = vrot.slane %v526, 1
    %v528 = vadd.f32 %v526, %v527
    %v529 = vsel %vm472, %v269, 0.0
    %v530 = vadd.f32 %v255, %v529
    %v531 = vrot.slane %v530, 4
    %v532 = vadd.f32 %v530, %v531
    %v533 = vrot.slane %v532, 2
    %v534 = vadd.f32 %v532, %v533
    %v535 = vrot.slane %v534, 1
    %v536 = vadd.f32 %v534, %v535
    %v537 = vsel %vm472, %v270, 0.0
    %v538 = vadd.f32 %v256, %v537
    %v539 = vrot.slane %v538, 4
    %v540 = vadd.f32 %v538, %v539
    %v541 = vrot.slane %v540, 2
    %v542 = vadd.f32 %v540, %v541
    %v543 = vrot.slane %v542, 1
    %v544 = vadd.f32 %v542, %v543
    %v545 = vsel %vm472, %v271, 0.0
    %v546 = vadd.f32 %v257, %v545
    %v547 = vrot.slane %v546, 4
    %v548 = vadd.f32 %v546, %v547
    %v549 = vrot.slane %v548, 2
    %v550 = vadd.f32 %v548, %v549
    %v551 = vrot.slane %v550, 1
    %v552 = vadd.f32 %v550, %v551
    %v553 = vsel %vm472, %v272, 0.0
    %v554 = vadd.f32 %v258, %v553
    %v555 = vrot.slane %v554, 4
    %v556 = vadd.f32 %v554, %v555
    %v557 = vrot.slane %v556, 2
    %v558 = vadd.f32 %v556, %v557
    %v559 = vrot.slane %v558, 1
    %v560 = vadd.f32 %v558, %v559
    %v561 = vsel %vm472, %v273, 0.0
    %v562 = vadd.f32 %v259, %v561
    %v563 = vrot.slane %v562, 4
    %v564 = vadd.f32 %v562, %v563
    %v565 = vrot.slane %v564, 2
    %v566 = vadd.f32 %v564, %v565
    %v567 = vrot.slane %v566, 1
    %v568 = vadd.f32 %v566, %v567
    %v569 = vsel %vm472, %v274, 0.0
    %v570 = vadd.f32 %v260, %v569
    %v571 = vrot.slane %v570, 4
    %v572 = vadd.f32 %v570, %v571
    %v573 = vrot.slane %v572, 2
    %v574 = vadd.f32 %v572, %v573
    %v575 = vrot.slane %v574, 1
    %v576 = vadd.f32 %v574, %v575
    %v577 = vsel %vm472, %v275, 0.0
    %v578 = vadd.f32 %v261, %v577
    %v579 = vrot.slane %v578, 4
    %v580 = vadd.f32 %v578, %v579
    %v581 = vrot.slane %v580, 2
    %v582 = vadd.f32 %v580, %v581
    %v583 = vrot.slane %v582, 1
    %v584 = vadd.f32 %v582, %v583
    %v585 = vsel %vm472, %v290, 0.0
    %v586 = vadd.f32 %v276, %v585
    %v587 = vrot.slane %v586, 4
    %v588 = vadd.f32 %v586, %v587
    %v589 = vrot.slane %v588, 2
    %v590 = vadd.f32 %v588, %v589
    %v591 = vrot.slane %v590, 1
    %v592 = vadd.f32 %v590, %v591
    %v593 = vsel %vm472, %v291, 0.0
    %v594 = vadd.f32 %v277, %v593
    %v595 = vrot.slane %v594, 4
    %v596 = vadd.f32 %v594, %v595
    %v597 = vrot.slane %v596, 2
    %v598 = vadd.f32 %v596, %v597
    %v599 = vrot.slane %v598, 1
    %v600 = vadd.f32 %v598, %v599
    %v601 = vsel %vm472, %v292, 0.0
    %v602 = vadd.f32 %v278, %v601
    %v603 = vrot.slane %v602, 4
    %v604 = vadd.f32 %v602, %v603
    %v605 = vrot.slane %v604, 2
    %v606 = vadd.f32 %v604, %v605
    %v607 = vrot.slane %v606, 1
    %v608 = vadd.f32 %v606, %v607
    %v609 = vsel %vm472, %v293, 0.0
    %v610 = vadd.f32 %v279, %v609
    %v611 = vrot.slane %v610, 4
    %v612 = vadd.f32 %v610, %v611
    %v613 = vrot.slane %v612, 2
    %v614 = vadd.f32 %v612, %v613
    %v615 = vrot.slane %v614, 1
    %v616 = vadd.f32 %v614, %v615
    %v617 = vsel %vm472, %v294, 0.0
    %v618 = vadd.f32 %v280, %v617
    %v619 = vrot.slane %v618, 4
    %v620 = vadd.f32 %v618, %v619
    %v621 = vrot.slane %v620, 2
    %v622 = vadd.f32 %v620, %v621
    %v623 = vrot.slane %v622, 1
    %v624 = vadd.f32 %v622, %v623
    %v625 = vsel %vm472, %v295, 0.0
    %v626 = vadd.f32 %v281, %v625
    %v627 = vrot.slane %v626, 4
    %v628 = vadd.f32 %v626, %v627
    %v629 = vrot.slane %v628, 2
    %v630 = vadd.f32 %v628, %v629
    %v631 = vrot.slane %v630, 1
    %v632 = vadd.f32 %v630, %v631
    %v633 = vsel %vm472, %v296, 0.0
    %v634 = vadd.f32 %v282, %v633
    %v635 = vrot.slane %v634, 4
    %v636 = vadd.f32 %v634, %v635
    %v637 = vrot.slane %v636, 2
    %v638 = vadd.f32 %v636, %v637
    %v639 = vrot.slane %v638, 1
    %v640 = vadd.f32 %v638, %v639
    %v641 = vsel %vm472, %v297, 0.0
    %v642 = vadd.f32 %v283, %v641
    %v643 = vrot.slane %v642, 4
    %v644 = vadd.f32 %v642, %v643
    %v645 = vrot.slane %v644, 2
    %v646 = vadd.f32 %v644, %v645
    %v647 = vrot.slane %v646, 1
    %v648 = vadd.f32 %v646, %v647
    %v649 = vsel %vm472, %v298, 0.0
    %v650 = vadd.f32 %v284, %v649
    %v651 = vrot.slane %v650, 4
    %v652 = vadd.f32 %v650, %v651
    %v653 = vrot.slane %v652, 2
    %v654 = vadd.f32 %v652, %v653
    %v655 = vrot.slane %v654, 1
    %v656 = vadd.f32 %v654, %v655
    %v657 = vsel %vm472, %v299, 0.0
    %v658 = vadd.f32 %v285, %v657
    %v659 = vrot.slane %v658, 4
    %v660 = vadd.f32 %v658, %v659
    %v661 = vrot.slane %v660, 2
    %v662 = vadd.f32 %v660, %v661
    %v663 = vrot.slane %v662, 1
    %v664 = vadd.f32 %v662, %v663
    %v665 = vsel %vm472, %v300, 0.0
    %v666 = vadd.f32 %v286, %v665
    %v667 = vrot.slane %v666, 4
    %v668 = vadd.f32 %v666, %v667
    %v669 = vrot.slane %v668, 2
    %v670 = vadd.f32 %v668, %v669
    %v671 = vrot.slane %v670, 1
    %v672 = vadd.f32 %v670, %v671
    %v673 = vsel %vm472, %v301, 0.0
    %v674 = vadd.f32 %v287, %v673
    %v675 = vrot.slane %v674, 4
    %v676 = vadd.f32 %v674, %v675
    %v677 = vrot.slane %v676, 2
    %v678 = vadd.f32 %v676, %v677
    %v679 = vrot.slane %v678, 1
    %v680 = vadd.f32 %v678, %v679
    %v681 = vsel %vm472, %v302, 0.0
    %v682 = vadd.f32 %v288, %v681
    %v683 = vrot.slane %v682, 4
    %v684 = vadd.f32 %v682, %v683
    %v685 = vrot.slane %v684, 2
    %v686 = vadd.f32 %v684, %v685
    %v687 = vrot.slane %v686, 1
    %v688 = vadd.f32 %v686, %v687
    %v689 = vsel %vm472, %v303, 0.0
    %v690 = vadd.f32 %v289, %v689
    %v691 = vrot.slane %v690, 4
    %v692 = vadd.f32 %v690, %v691
    %v693 = vrot.slane %v692, 2
    %v694 = vadd.f32 %v692, %v693
    %v695 = vrot.slane %v694, 1
    %v696 = vadd.f32 %v694, %v695
    %v697 = vsel %vm472, %v318, 0.0
    %v698 = vadd.f32 %v304, %v697
    %v699 = vrot.slane %v698, 4
    %v700 = vadd.f32 %v698, %v699
    %v701 = vrot.slane %v700, 2
    %v702 = vadd.f32 %v700, %v701
    %v703 = vrot.slane %v702, 1
    %v704 = vadd.f32 %v702, %v703
    %v705 = vsel %vm472, %v319, 0.0
    %v706 = vadd.f32 %v305, %v705
    %v707 = vrot.slane %v706, 4
    %v708 = vadd.f32 %v706, %v707
    %v709 = vrot.slane %v708, 2
    %v710 = vadd.f32 %v708, %v709
    %v711 = vrot.slane %v710, 1
    %v712 = vadd.f32 %v710, %v711
    %v713 = vsel %vm472, %v320, 0.0
    %v714 = vadd.f32 %v306, %v713
    %v715 = vrot.slane %v714, 4
    %v716 = vadd.f32 %v714, %v715
    %v717 = vrot.slane %v716, 2
    %v718 = vadd.f32 %v716, %v717
    %v719 = vrot.slane %v718, 1
    %v720 = vadd.f32 %v718, %v719
    %v721 = vsel %vm472, %v321, 0.0
    %v722 = vadd.f32 %v307, %v721
    %v723 = vrot.slane %v722, 4
    %v724 = vadd.f32 %v722, %v723
    %v725 = vrot.slane %v724, 2
    %v726 = vadd.f32 %v724, %v725
    %v727 = vrot.slane %v726, 1
    %v728 = vadd.f32 %v726, %v727
    %v729 = vsel %vm472, %v322, 0.0
    %v730 = vadd.f32 %v308, %v729
    %v731 = vrot.slane %v730, 4
    %v732 = vadd.f32 %v730, %v731
    %v733 = vrot.slane %v732, 2
    %v734 = vadd.f32 %v732, %v733
    %v735 = vrot.slane %v734, 1
    %v736 = vadd.f32 %v734, %v735
    %v737 = vsel %vm472, %v323, 0.0
    %v738 = vadd.f32 %v309, %v737
    %v739 = vrot.slane %v738, 4
    %v740 = vadd.f32 %v738, %v739
    %v741 = vrot.slane %v740, 2
    %v742 = vadd.f32 %v740, %v741
    %v743 = vrot.slane %v742, 1
    %v744 = vadd.f32 %v742, %v743
    %v745 = vsel %vm472, %v324, 0.0
    %v746 = vadd.f32 %v310, %v745
    %v747 = vrot.slane %v746, 4
    %v748 = vadd.f32 %v746, %v747
    %v749 = vrot.slane %v748, 2
    %v750 = vadd.f32 %v748, %v749
    %v751 = vrot.slane %v750, 1
    %v752 = vadd.f32 %v750, %v751
    %v753 = vsel %vm472, %v325, 0.0
    %v754 = vadd.f32 %v311, %v753
    %v755 = vrot.slane %v754, 4
    %v756 = vadd.f32 %v754, %v755
    %v757 = vrot.slane %v756, 2
    %v758 = vadd.f32 %v756, %v757
    %v759 = vrot.slane %v758, 1
    %v760 = vadd.f32 %v758, %v759
    %v761 = vsel %vm472, %v326, 0.0
    %v762 = vadd.f32 %v312, %v761
    %v763 = vrot.slane %v762, 4
    %v764 = vadd.f32 %v762, %v763
    %v765 = vrot.slane %v764, 2
    %v766 = vadd.f32 %v764, %v765
    %v767 = vrot.slane %v766, 1
    %v768 = vadd.f32 %v766, %v767
    %v769 = vsel %vm472, %v327, 0.0
    %v770 = vadd.f32 %v313, %v769
    %v771 = vrot.slane %v770, 4
    %v772 = vadd.f32 %v770, %v771
    %v773 = vrot.slane %v772, 2
    %v774 = vadd.f32 %v772, %v773
    %v775 = vrot.slane %v774, 1
    %v776 = vadd.f32 %v774, %v775
    %v777 = vsel %vm472, %v328, 0.0
    %v778 = vadd.f32 %v314, %v777
    %v779 = vrot.slane %v778, 4
    %v780 = vadd.f32 %v778, %v779
    %v781 = vrot.slane %v780, 2
    %v782 = vadd.f32 %v780, %v781
    %v783 = vrot.slane %v782, 1
    %v784 = vadd.f32 %v782, %v783
    %v785 = vsel %vm472, %v329, 0.0
    %v786 = vadd.f32 %v315, %v785
    %v787 = vrot.slane %v786, 4
    %v788 = vadd.f32 %v786, %v787
    %v789 = vrot.slane %v788, 2
    %v790 = vadd.f32 %v788, %v789
    %v791 = vrot.slane %v790, 1
    %v792 = vadd.f32 %v790, %v791
    %v793 = vsel %vm472, %v330, 0.0
    %v794 = vadd.f32 %v316, %v793
    %v795 = vrot.slane %v794, 4
    %v796 = vadd.f32 %v794, %v795
    %v797 = vrot.slane %v796, 2
    %v798 = vadd.f32 %v796, %v797
    %v799 = vrot.slane %v798, 1
    %v800 = vadd.f32 %v798, %v799
    %v801 = vsel %vm472, %v331, 0.0
    %v802 = vadd.f32 %v317, %v801
    %v803 = vrot.slane %v802, 4
    %v804 = vadd.f32 %v802, %v803
    %v805 = vrot.slane %v804, 2
    %v806 = vadd.f32 %v804, %v805
    %v807 = vrot.slane %v806, 1
    %v808 = vadd.f32 %v806, %v807
    %v809 = vsel %vm472, %v346, 0.0
    %v810 = vadd.f32 %v332, %v809
    %v811 = vrot.slane %v810, 4
    %v812 = vadd.f32 %v810, %v811
    %v813 = vrot.slane %v812, 2
    %v814 = vadd.f32 %v812, %v813
    %v815 = vrot.slane %v814, 1
    %v816 = vadd.f32 %v814, %v815
    %v817 = vsel %vm472, %v347, 0.0
    %v818 = vadd.f32 %v333, %v817
    %v819 = vrot.slane %v818, 4
    %v820 = vadd.f32 %v818, %v819
    %v821 = vrot.slane %v820, 2
    %v822 = vadd.f32 %v820, %v821
    %v823 = vrot.slane %v822, 1
    %v824 = vadd.f32 %v822, %v823
    %v825 = vsel %vm472, %v348, 0.0
    %v826 = vadd.f32 %v334, %v825
    %v827 = vrot.slane %v826, 4
    %v828 = vadd.f32 %v826, %v827
    %v829 = vrot.slane %v828, 2
    %v830 = vadd.f32 %v828, %v829
    %v831 = vrot.slane %v830, 1
    %v832 = vadd.f32 %v830, %v831
    %v833 = vsel %vm472, %v349, 0.0
    %v834 = vadd.f32 %v335, %v833
    %v835 = vrot.slane %v834, 4
    %v836 = vadd.f32 %v834, %v835
    %v837 = vrot.slane %v836, 2
    %v838 = vadd.f32 %v836, %v837
    %v839 = vrot.slane %v838, 1
    %v840 = vadd.f32 %v838, %v839
    %v841 = vsel %vm472, %v350, 0.0
    %v842 = vadd.f32 %v336, %v841
    %v843 = vrot.slane %v842, 4
    %v844 = vadd.f32 %v842, %v843
    %v845 = vrot.slane %v844, 2
    %v846 = vadd.f32 %v844, %v845
    %v847 = vrot.slane %v846, 1
    %v848 = vadd.f32 %v846, %v847
    %v849 = vsel %vm472, %v351, 0.0
    %v850 = vadd.f32 %v337, %v849
    %v851 = vrot.slane %v850, 4
    %v852 = vadd.f32 %v850, %v851
    %v853 = vrot.slane %v852, 2
    %v854 = vadd.f32 %v852, %v853
    %v855 = vrot.slane %v854, 1
    %v856 = vadd.f32 %v854, %v855
    %v857 = vsel %vm472, %v352, 0.0
    %v858 = vadd.f32 %v338, %v857
    %v859 = vrot.slane %v858, 4
    %v860 = vadd.f32 %v858, %v859
    %v861 = vrot.slane %v860, 2
    %v862 = vadd.f32 %v860, %v861
    %v863 = vrot.slane %v862, 1
    %v864 = vadd.f32 %v862, %v863
    %v865 = vsel %vm472, %v353, 0.0
    %v866 = vadd.f32 %v339, %v865
    %v867 = vrot.slane %v866, 4
    %v868 = vadd.f32 %v866, %v867
    %v869 = vrot.slane %v868, 2
    %v870 = vadd.f32 %v868, %v869
    %v871 = vrot.slane %v870, 1
    %v872 = vadd.f32 %v870, %v871
    %v873 = vsel %vm472, %v354, 0.0
    %v874 = vadd.f32 %v340, %v873
    %v875 = vrot.slane %v874, 4
    %v876 = vadd.f32 %v874, %v875
    %v877 = vrot.slane %v876, 2
    %v878 = vadd.f32 %v876, %v877
    %v879 = vrot.slane %v878, 1
    %v880 = vadd.f32 %v878, %v879
    %v881 = vsel %vm472, %v355, 0.0
    %v882 = vadd.f32 %v341, %v881
    %v883 = vrot.slane %v882, 4
    %v884 = vadd.f32 %v882, %v883
    %v885 = vrot.slane %v884, 2
    %v886 = vadd.f32 %v884, %v885
    %v887 = vrot.slane %v886, 1
    %v888 = vadd.f32 %v886, %v887
    %v889 = vsel %vm472, %v356, 0.0
    %v890 = vadd.f32 %v342, %v889
    %v891 = vrot.slane %v890, 4
    %v892 = vadd.f32 %v890, %v891
    %v893 = vrot.slane %v892, 2
    %v894 = vadd.f32 %v892, %v893
    %v895 = vrot.slane %v894, 1
    %v896 = vadd.f32 %v894, %v895
    %v897 = vsel %vm472, %v357, 0.0
    %v898 = vadd.f32 %v343, %v897
    %v899 = vrot.slane %v898, 4
    %v900 = vadd.f32 %v898, %v899
    %v901 = vrot.slane %v900, 2
    %v902 = vadd.f32 %v900, %v901
    %v903 = vrot.slane %v902, 1
    %v904 = vadd.f32 %v902, %v903
    %v905 = vsel %vm472, %v358, 0.0
    %v906 = vadd.f32 %v344, %v905
    %v907 = vrot.slane %v906, 4
    %v908 = vadd.f32 %v906, %v907
    %v909 = vrot.slane %v908, 2
    %v910 = vadd.f32 %v908, %v909
    %v911 = vrot.slane %v910, 1
    %v912 = vadd.f32 %v910, %v911
    %v913 = vsel %vm472, %v359, 0.0
    %v914 = vadd.f32 %v345, %v913
    %v915 = vrot.slane %v914, 4
    %v916 = vadd.f32 %v914, %v915
    %v917 = vrot.slane %v916, 2
    %v918 = vadd.f32 %v916, %v917
    %v919 = vrot.slane %v918, 1
    %v920 = vadd.f32 %v918, %v919
    %v921 = vsel %vm472, %v374, 0.0
    %v922 = vadd.f32 %v360, %v921
    %v923 = vrot.slane %v922, 4
    %v924 = vadd.f32 %v922, %v923
    %v925 = vrot.slane %v924, 2
    %v926 = vadd.f32 %v924, %v925
    %v927 = vrot.slane %v926, 1
    %v928 = vadd.f32 %v926, %v927
    %v929 = vsel %vm472, %v375, 0.0
    %v930 = vadd.f32 %v361, %v929
    %v931 = vrot.slane %v930, 4
    %v932 = vadd.f32 %v930, %v931
    %v933 = vrot.slane %v932, 2
    %v934 = vadd.f32 %v932, %v933
    %v935 = vrot.slane %v934, 1
    %v936 = vadd.f32 %v934, %v935
    %v937 = vsel %vm472, %v376, 0.0
    %v938 = vadd.f32 %v362, %v937
    %v939 = vrot.slane %v938, 4
    %v940 = vadd.f32 %v938, %v939
    %v941 = vrot.slane %v940, 2
    %v942 = vadd.f32 %v940, %v941
    %v943 = vrot.slane %v942, 1
    %v944 = vadd.f32 %v942, %v943
    %v945 = vsel %vm472, %v377, 0.0
    %v946 = vadd.f32 %v363, %v945
    %v947 = vrot.slane %v946, 4
    %v948 = vadd.f32 %v946, %v947
    %v949 = vrot.slane %v948, 2
    %v950 = vadd.f32 %v948, %v949
    %v951 = vrot.slane %v950, 1
    %v952 = vadd.f32 %v950, %v951
    %v953 = vsel %vm472, %v378, 0.0
    %v954 = vadd.f32 %v364, %v953
    %v955 = vrot.slane %v954, 4
    %v956 = vadd.f32 %v954, %v955
    %v957 = vrot.slane %v956, 2
    %v958 = vadd.f32 %v956, %v957
    %v959 = vrot.slane %v958, 1
    %v960 = vadd.f32 %v958, %v959
    %v961 = vsel %vm472, %v379, 0.0
    %v962 = vadd.f32 %v365, %v961
    %v963 = vrot.slane %v962, 4
    %v964 = vadd.f32 %v962, %v963
    %v965 = vrot.slane %v964, 2
    %v966 = vadd.f32 %v964, %v965
    %v967 = vrot.slane %v966, 1
    %v968 = vadd.f32 %v966, %v967
    %v969 = vsel %vm472, %v380, 0.0
    %v970 = vadd.f32 %v366, %v969
    %v971 = vrot.slane %v970, 4
    %v972 = vadd.f32 %v970, %v971
    %v973 = vrot.slane %v972, 2
    %v974 = vadd.f32 %v972, %v973
    %v975 = vrot.slane %v974, 1
    %v976 = vadd.f32 %v974, %v975
    %v977 = vsel %vm472, %v381, 0.0
    %v978 = vadd.f32 %v367, %v977
    %v979 = vrot.slane %v978, 4
    %v980 = vadd.f32 %v978, %v979
    %v981 = vrot.slane %v980, 2
    %v982 = vadd.f32 %v980, %v981
    %v983 = vrot.slane %v982, 1
    %v984 = vadd.f32 %v982, %v983
    %v985 = vsel %vm472, %v382, 0.0
    %v986 = vadd.f32 %v368, %v985
    %v987 = vrot.slane %v986, 4
    %v988 = vadd.f32 %v986, %v987
    %v989 = vrot.slane %v988, 2
    %v990 = vadd.f32 %v988, %v989
    %v991 = vrot.slane %v990, 1
    %v992 = vadd.f32 %v990, %v991
    %v993 = vsel %vm472, %v383, 0.0
    %v994 = vadd.f32 %v369, %v993
    %v995 = vrot.slane %v994, 4
    %v996 = vadd.f32 %v994, %v995
    %v997 = vrot.slane %v996, 2
    %v998 = vadd.f32 %v996, %v997
    %v999 = vrot.slane %v998, 1
    %v1000 = vadd.f32 %v998, %v999
    %v1001 = vsel %vm472, %v384, 0.0
    %v1002 = vadd.f32 %v370, %v1001
    %v1003 = vrot.slane %v1002, 4
    %v1004 = vadd.f32 %v1002, %v1003
    %v1005 = vrot.slane %v1004, 2
    %v1006 = vadd.f32 %v1004, %v1005
    %v1007 = vrot.slane %v1006, 1
    %v1008 = vadd.f32 %v1006, %v1007
    %v1009 = vsel %vm472, %v385, 0.0
    %v1010 = vadd.f32 %v371, %v1009
    %v1011 = vrot.slane %v1010, 4
    %v1012 = vadd.f32 %v1010, %v1011
    %v1013 = vrot.slane %v1012, 2
    %v1014 = vadd.f32 %v1012, %v1013
    %v1015 = vrot.slane %v1014, 1
    %v1016 = vadd.f32 %v1014, %v1015
    %v1017 = vsel %vm472, %v386, 0.0
    %v1018 = vadd.f32 %v372, %v1017
    %v1019 = vrot.slane %v1018, 4
    %v1020 = vadd.f32 %v1018, %v1019
    %v1021 = vrot.slane %v1020, 2
    %v1022 = vadd.f32 %v1020, %v1021
    %v1023 = vrot.slane %v1022, 1
    %v1024 = vadd.f32 %v1022, %v1023
    %v1025 = vsel %vm472, %v387, 0.0
    %v1026 = vadd.f32 %v373, %v1025
    %v1027 = vrot.slane %v1026, 4
    %v1028 = vadd.f32 %v1026, %v1027
    %v1029 = vrot.slane %v1028, 2
    %v1030 = vadd.f32 %v1028, %v1029
    %v1031 = vrot.slane %v1030, 1
    %v1032 = vadd.f32 %v1030, %v1031
    %v1033 = vsel %vm472, %v402, 0.0
    %v1034 = vadd.f32 %v388, %v1033
    %v1035 = vrot.slane %v1034, 4
    %v1036 = vadd.f32 %v1034, %v1035
    %v1037 = vrot.slane %v1036, 2
    %v1038 = vadd.f32 %v1036, %v1037
    %v1039 = vrot.slane %v1038, 1
    %v1040 = vadd.f32 %v1038, %v1039
    %v1041 = vsel %vm472, %v403, 0.0
    %v1042 = vadd.f32 %v389, %v1041
    %v1043 = vrot.slane %v1042, 4
    %v1044 = vadd.f32 %v1042, %v1043
    %v1045 = vrot.slane %v1044, 2
    %v1046 = vadd.f32 %v1044, %v1045
    %v1047 = vrot.slane %v1046, 1
    %v1048 = vadd.f32 %v1046, %v1047
    %v1049 = vsel %vm472, %v404, 0.0
    %v1050 = vadd.f32 %v390, %v1049
    %v1051 = vrot.slane %v1050, 4
    %v1052 = vadd.f32 %v1050, %v1051
    %v1053 = vrot.slane %v1052, 2
    %v1054 = vadd.f32 %v1052, %v1053
    %v1055 = vrot.slane %v1054, 1
    %v1056 = vadd.f32 %v1054, %v1055
    %v1057 = vsel %vm472, %v405, 0.0
    %v1058 = vadd.f32 %v391, %v1057
    %v1059 = vrot.slane %v1058, 4
    %v1060 = vadd.f32 %v1058, %v1059
    %v1061 = vrot.slane %v1060, 2
    %v1062 = vadd.f32 %v1060, %v1061
    %v1063 = vrot.slane %v1062, 1
    %v1064 = vadd.f32 %v1062, %v1063
    %v1065 = vsel %vm472, %v406, 0.0
    %v1066 = vadd.f32 %v392, %v1065
    %v1067 = vrot.slane %v1066, 4
    %v1068 = vadd.f32 %v1066, %v1067
    %v1069 = vrot.slane %v1068, 2
    %v1070 = vadd.f32 %v1068, %v1069
    %v1071 = vrot.slane %v1070, 1
    %v1072 = vadd.f32 %v1070, %v1071
    %v1073 = vsel %vm472, %v407, 0.0
    %v1074 = vadd.f32 %v393, %v1073
    %v1075 = vrot.slane %v1074, 4
    %v1076 = vadd.f32 %v1074, %v1075
    %v1077 = vrot.slane %v1076, 2
    %v1078 = vadd.f32 %v1076, %v1077
    %v1079 = vrot.slane %v1078, 1
    %v1080 = vadd.f32 %v1078, %v1079
    %v1081 = vsel %vm472, %v408, 0.0
    %v1082 = vadd.f32 %v394, %v1081
    %v1083 = vrot.slane %v1082, 4
    %v1084 = vadd.f32 %v1082, %v1083
    %v1085 = vrot.slane %v1084, 2
    %v1086 = vadd.f32 %v1084, %v1085
    %v1087 = vrot.slane %v1086, 1
    %v1088 = vadd.f32 %v1086, %v1087
    %v1089 = vsel %vm472, %v409, 0.0
    %v1090 = vadd.f32 %v395, %v1089
    %v1091 = vrot.slane %v1090, 4
    %v1092 = vadd.f32 %v1090, %v1091
    %v1093 = vrot.slane %v1092, 2
    %v1094 = vadd.f32 %v1092, %v1093
    %v1095 = vrot.slane %v1094, 1
    %v1096 = vadd.f32 %v1094, %v1095
    %v1097 = vsel %vm472, %v410, 0.0
    %v1098 = vadd.f32 %v396, %v1097
    %v1099 = vrot.slane %v1098, 4
    %v1100 = vadd.f32 %v1098, %v1099
    %v1101 = vrot.slane %v1100, 2
    %v1102 = vadd.f32 %v1100, %v1101
    %v1103 = vrot.slane %v1102, 1
    %v1104 = vadd.f32 %v1102, %v1103
    %v1105 = vsel %vm472, %v411, 0.0
    %v1106 = vadd.f32 %v397, %v1105
    %v1107 = vrot.slane %v1106, 4
    %v1108 = vadd.f32 %v1106, %v1107
    %v1109 = vrot.slane %v1108, 2
    %v1110 = vadd.f32 %v1108, %v1109
    %v1111 = vrot.slane %v1110, 1
    %v1112 = vadd.f32 %v1110, %v1111
    %v1113 = vsel %vm472, %v412, 0.0
    %v1114 = vadd.f32 %v398, %v1113
    %v1115 = vrot.slane %v1114, 4
    %v1116 = vadd.f32 %v1114, %v1115
    %v1117 = vrot.slane %v1116, 2
    %v1118 = vadd.f32 %v1116, %v1117
    %v1119 = vrot.slane %v1118, 1
    %v1120 = vadd.f32 %v1118, %v1119
    %v1121 = vsel %vm472, %v413, 0.0
    %v1122 = vadd.f32 %v399, %v1121
    %v1123 = vrot.slane %v1122, 4
    %v1124 = vadd.f32 %v1122, %v1123
    %v1125 = vrot.slane %v1124, 2
    %v1126 = vadd.f32 %v1124, %v1125
    %v1127 = vrot.slane %v1126, 1
    %v1128 = vadd.f32 %v1126, %v1127
    %v1129 = vsel %vm472, %v414, 0.0
    %v1130 = vadd.f32 %v400, %v1129
    %v1131 = vrot.slane %v1130, 4
    %v1132 = vadd.f32 %v1130, %v1131
    %v1133 = vrot.slane %v1132, 2
    %v1134 = vadd.f32 %v1132, %v1133
    %v1135 = vrot.slane %v1134, 1
    %v1136 = vadd.f32 %v1134, %v1135
    %v1137 = vsel %vm472, %v415, 0.0
    %v1138 = vadd.f32 %v401, %v1137
    %v1139 = vrot.slane %v1138, 4
    %v1140 = vadd.f32 %v1138, %v1139
    %v1141 = vrot.slane %v1140, 2
    %v1142 = vadd.f32 %v1140, %v1141
    %v1143 = vrot.slane %v1142, 1
    %v1144 = vadd.f32 %v1142, %v1143
    %v1145 = vsel %vm472, %v430, 0.0
    %v1146 = vadd.f32 %v416, %v1145
    %v1147 = vrot.slane %v1146, 4
    %v1148 = vadd.f32 %v1146, %v1147
    %v1149 = vrot.slane %v1148, 2
    %v1150 = vadd.f32 %v1148, %v1149
    %v1151 = vrot.slane %v1150, 1
    %v1152 = vadd.f32 %v1150, %v1151
    %v1153 = vsel %vm472, %v431, 0.0
    %v1154 = vadd.f32 %v417, %v1153
    %v1155 = vrot.slane %v1154, 4
    %v1156 = vadd.f32 %v1154, %v1155
    %v1157 = vrot.slane %v1156, 2
    %v1158 = vadd.f32 %v1156, %v1157
    %v1159 = vrot.slane %v1158, 1
    %v1160 = vadd.f32 %v1158, %v1159
    %v1161 = vsel %vm472, %v432, 0.0
    %v1162 = vadd.f32 %v418, %v1161
    %v1163 = vrot.slane %v1162, 4
    %v1164 = vadd.f32 %v1162, %v1163
    %v1165 = vrot.slane %v1164, 2
    %v1166 = vadd.f32 %v1164, %v1165
    %v1167 = vrot.slane %v1166, 1
    %v1168 = vadd.f32 %v1166, %v1167
    %v1169 = vsel %vm472, %v433, 0.0
    %v1170 = vadd.f32 %v419, %v1169
    %v1171 = vrot.slane %v1170, 4
    %v1172 = vadd.f32 %v1170, %v1171
    %v1173 = vrot.slane %v1172, 2
    %v1174 = vadd.f32 %v1172, %v1173
    %v1175 = vrot.slane %v1174, 1
    %v1176 = vadd.f32 %v1174, %v1175
    %v1177 = vsel %vm472, %v434, 0.0
    %v1178 = vadd.f32 %v420, %v1177
    %v1179 = vrot.slane %v1178, 4
    %v1180 = vadd.f32 %v1178, %v1179
    %v1181 = vrot.slane %v1180, 2
    %v1182 = vadd.f32 %v1180, %v1181
    %v1183 = vrot.slane %v1182, 1
    %v1184 = vadd.f32 %v1182, %v1183
    %v1185 = vsel %vm472, %v435, 0.0
    %v1186 = vadd.f32 %v421, %v1185
    %v1187 = vrot.slane %v1186, 4
    %v1188 = vadd.f32 %v1186, %v1187
    %v1189 = vrot.slane %v1188, 2
    %v1190 = vadd.f32 %v1188, %v1189
    %v1191 = vrot.slane %v1190, 1
    %v1192 = vadd.f32 %v1190, %v1191
    %v1193 = vsel %vm472, %v436, 0.0
    %v1194 = vadd.f32 %v422, %v1193
    %v1195 = vrot.slane %v1194, 4
    %v1196 = vadd.f32 %v1194, %v1195
    %v1197 = vrot.slane %v1196, 2
    %v1198 = vadd.f32 %v1196, %v1197
    %v1199 = vrot.slane %v1198, 1
    %v1200 = vadd.f32 %v1198, %v1199
    %v1201 = vsel %vm472, %v437, 0.0
    %v1202 = vadd.f32 %v423, %v1201
    %v1203 = vrot.slane %v1202, 4
    %v1204 = vadd.f32 %v1202, %v1203
    %v1205 = vrot.slane %v1204, 2
    %v1206 = vadd.f32 %v1204, %v1205
    %v1207 = vrot.slane %v1206, 1
    %v1208 = vadd.f32 %v1206, %v1207
    %v1209 = vsel %vm472, %v438, 0.0
    %v1210 = vadd.f32 %v424, %v1209
    %v1211 = vrot.slane %v1210, 4
    %v1212 = vadd.f32 %v1210, %v1211
    %v1213 = vrot.slane %v1212, 2
    %v1214 = vadd.f32 %v1212, %v1213
    %v1215 = vrot.slane %v1214, 1
    %v1216 = vadd.f32 %v1214, %v1215
    %v1217 = vsel %vm472, %v439, 0.0
    %v1218 = vadd.f32 %v425, %v1217
    %v1219 = vrot.slane %v1218, 4
    %v1220 = vadd.f32 %v1218, %v1219
    %v1221 = vrot.slane %v1220, 2
    %v1222 = vadd.f32 %v1220, %v1221
    %v1223 = vrot.slane %v1222, 1
    %v1224 = vadd.f32 %v1222, %v1223
    %v1225 = vsel %vm472, %v440, 0.0
    %v1226 = vadd.f32 %v426, %v1225
    %v1227 = vrot.slane %v1226, 4
    %v1228 = vadd.f32 %v1226, %v1227
    %v1229 = vrot.slane %v1228, 2
    %v1230 = vadd.f32 %v1228, %v1229
    %v1231 = vrot.slane %v1230, 1
    %v1232 = vadd.f32 %v1230, %v1231
    %v1233 = vsel %vm472, %v441, 0.0
    %v1234 = vadd.f32 %v427, %v1233
    %v1235 = vrot.slane %v1234, 4
    %v1236 = vadd.f32 %v1234, %v1235
    %v1237 = vrot.slane %v1236, 2
    %v1238 = vadd.f32 %v1236, %v1237
    %v1239 = vrot.slane %v1238, 1
    %v1240 = vadd.f32 %v1238, %v1239
    %v1241 = vsel %vm472, %v442, 0.0
    %v1242 = vadd.f32 %v428, %v1241
    %v1243 = vrot.slane %v1242, 4
    %v1244 = vadd.f32 %v1242, %v1243
    %v1245 = vrot.slane %v1244, 2
    %v1246 = vadd.f32 %v1244, %v1245
    %v1247 = vrot.slane %v1246, 1
    %v1248 = vadd.f32 %v1246, %v1247
    %v1249 = vsel %vm472, %v443, 0.0
    %v1250 = vadd.f32 %v429, %v1249
    %v1251 = vrot.slane %v1250, 4
    %v1252 = vadd.f32 %v1250, %v1251
    %v1253 = vrot.slane %v1252, 2
    %v1254 = vadd.f32 %v1252, %v1253
    %v1255 = vrot.slane %v1254, 1
    %v1256 = vadd.f32 %v1254, %v1255
    %v1257 = vsel %vm472, %v458, 0.0
    %v1258 = vadd.f32 %v444, %v1257
    %v1259 = vrot.slane %v1258, 4
    %v1260 = vadd.f32 %v1258, %v1259
    %v1261 = vrot.slane %v1260, 2
    %v1262 = vadd.f32 %v1260, %v1261
    %v1263 = vrot.slane %v1262, 1
    %v1264 = vadd.f32 %v1262, %v1263
    %v1265 = vsel %vm472, %v459, 0.0
    %v1266 = vadd.f32 %v445, %v1265
    %v1267 = vrot.slane %v1266, 4
    %v1268 = vadd.f32 %v1266, %v1267
    %v1269 = vrot.slane %v1268, 2
    %v1270 = vadd.f32 %v1268, %v1269
    %v1271 = vrot.slane %v1270, 1
    %v1272 = vadd.f32 %v1270, %v1271
    %v1273 = vsel %vm472, %v460, 0.0
    %v1274 = vadd.f32 %v446, %v1273
    %v1275 = vrot.slane %v1274, 4
    %v1276 = vadd.f32 %v1274, %v1275
    %v1277 = vrot.slane %v1276, 2
    %v1278 = vadd.f32 %v1276, %v1277
    %v1279 = vrot.slane %v1278, 1
    %v1280 = vadd.f32 %v1278, %v1279
    %v1281 = vsel %vm472, %v461, 0.0
    %v1282 = vadd.f32 %v447, %v1281
    %v1283 = vrot.slane %v1282, 4
    %v1284 = vadd.f32 %v1282, %v1283
    %v1285 = vrot.slane %v1284, 2
    %v1286 = vadd.f32 %v1284, %v1285
    %v1287 = vrot.slane %v1286, 1
    %v1288 = vadd.f32 %v1286, %v1287
    %v1289 = vsel %vm472, %v462, 0.0
    %v1290 = vadd.f32 %v448, %v1289
    %v1291 = vrot.slane %v1290, 4
    %v1292 = vadd.f32 %v1290, %v1291
    %v1293 = vrot.slane %v1292, 2
    %v1294 = vadd.f32 %v1292, %v1293
    %v1295 = vrot.slane %v1294, 1
    %v1296 = vadd.f32 %v1294, %v1295
    %v1297 = vsel %vm472, %v463, 0.0
    %v1298 = vadd.f32 %v449, %v1297
    %v1299 = vrot.slane %v1298, 4
    %v1300 = vadd.f32 %v1298, %v1299
    %v1301 = vrot.slane %v1300, 2
    %v1302 = vadd.f32 %v1300, %v1301
    %v1303 = vrot.slane %v1302, 1
    %v1304 = vadd.f32 %v1302, %v1303
    %v1305 = vsel %vm472, %v464, 0.0
    %v1306 = vadd.f32 %v450, %v1305
    %v1307 = vrot.slane %v1306, 4
    %v1308 = vadd.f32 %v1306, %v1307
    %v1309 = vrot.slane %v1308, 2
    %v1310 = vadd.f32 %v1308, %v1309
    %v1311 = vrot.slane %v1310, 1
    %v1312 = vadd.f32 %v1310, %v1311
    %v1313 = vsel %vm472, %v465, 0.0
    %v1314 = vadd.f32 %v451, %v1313
    %v1315 = vrot.slane %v1314, 4
    %v1316 = vadd.f32 %v1314, %v1315
    %v1317 = vrot.slane %v1316, 2
    %v1318 = vadd.f32 %v1316, %v1317
    %v1319 = vrot.slane %v1318, 1
    %v1320 = vadd.f32 %v1318, %v1319
    %v1321 = vsel %vm472, %v466, 0.0
    %v1322 = vadd.f32 %v452, %v1321
    %v1323 = vrot.slane %v1322, 4
    %v1324 = vadd.f32 %v1322, %v1323
    %v1325 = vrot.slane %v1324, 2
    %v1326 = vadd.f32 %v1324, %v1325
    %v1327 = vrot.slane %v1326, 1
    %v1328 = vadd.f32 %v1326, %v1327
    %v1329 = vsel %vm472, %v467, 0.0
    %v1330 = vadd.f32 %v453, %v1329
    %v1331 = vrot.slane %v1330, 4
    %v1332 = vadd.f32 %v1330, %v1331
    %v1333 = vrot.slane %v1332, 2
    %v1334 = vadd.f32 %v1332, %v1333
    %v1335 = vrot.slane %v1334, 1
    %v1336 = vadd.f32 %v1334, %v1335
    %v1337 = vsel %vm472, %v468, 0.0
    %v1338 = vadd.f32 %v454, %v1337
    %v1339 = vrot.slane %v1338, 4
    %v1340 = vadd.f32 %v1338, %v1339
    %v1341 = vrot.slane %v1340, 2
    %v1342 = vadd.f32 %v1340, %v1341
    %v1343 = vrot.slane %v1342, 1
    %v1344 = vadd.f32 %v1342, %v1343
    %v1345 = vsel %vm472, %v469, 0.0
    %v1346 = vadd.f32 %v455, %v1345
    %v1347 = vrot.slane %v1346, 4
    %v1348 = vadd.f32 %v1346, %v1347
    %v1349 = vrot.slane %v1348, 2
    %v1350 = vadd.f32 %v1348, %v1349
    %v1351 = vrot.slane %v1350, 1
    %v1352 = vadd.f32 %v1350, %v1351
    %v1353 = vsel %vm472, %v470, 0.0
    %v1354 = vadd.f32 %v456, %v1353
    %v1355 = vrot.slane %v1354, 4
    %v1356 = vadd.f32 %v1354, %v1355
    %v1357 = vrot.slane %v1356, 2
    %v1358 = vadd.f32 %v1356, %v1357
    %v1359 = vrot.slane %v1358, 1
    %v1360 = vadd.f32 %v1358, %v1359
    %v1361 = vsel %vm472, %v471, 0.0
    %v1362 = vadd.f32 %v457, %v1361
    %v1363 = vrot.slane %v1362, 4
    %v1364 = vadd.f32 %v1362, %v1363
    %v1365 = vrot.slane %v1364, 2
    %v1366 = vadd.f32 %v1364, %v1365
    %v1367 = vrot.slane %v1366, 1
    %v1368 = vadd.f32 %v1366, %v1367
    %v1369 = vpack.c.bf16 %v480, %v480
    %v1370 = vpack.c.bf16 %v488, %v488
    %v1371 = vpack.c.bf16 %v496, %v496
    %v1372 = vpack.c.bf16 %v504, %v504
    %v1373 = vpack.c.bf16 %v512, %v512
    %v1374 = vpack.c.bf16 %v520, %v520
    %v1375 = vpack.c.bf16 %v528, %v528
    %v1376 = vpack.c.bf16 %v536, %v536
    %v1377 = vpack.c.bf16 %v544, %v544
    %v1378 = vpack.c.bf16 %v552, %v552
    %v1379 = vpack.c.bf16 %v560, %v560
    %v1380 = vpack.c.bf16 %v568, %v568
    %v1381 = vpack.c.bf16 %v576, %v576
    %v1382 = vpack.c.bf16 %v584, %v584
    %v1383 = vpack.c.bf16 %v592, %v592
    %v1384 = vpack.c.bf16 %v600, %v600
    %v1385 = vpack.c.bf16 %v608, %v608
    %v1386 = vpack.c.bf16 %v616, %v616
    %v1387 = vpack.c.bf16 %v624, %v624
    %v1388 = vpack.c.bf16 %v632, %v632
    %v1389 = vpack.c.bf16 %v640, %v640
    %v1390 = vpack.c.bf16 %v648, %v648
    %v1391 = vpack.c.bf16 %v656, %v656
    %v1392 = vpack.c.bf16 %v664, %v664
    %v1393 = vpack.c.bf16 %v672, %v672
    %v1394 = vpack.c.bf16 %v680, %v680
    %v1395 = vpack.c.bf16 %v688, %v688
    %v1396 = vpack.c.bf16 %v696, %v696
    %v1397 = vpack.c.bf16 %v704, %v704
    %v1398 = vpack.c.bf16 %v712, %v712
    %v1399 = vpack.c.bf16 %v720, %v720
    %v1400 = vpack.c.bf16 %v728, %v728
    %v1401 = vpack.c.bf16 %v736, %v736
    %v1402 = vpack.c.bf16 %v744, %v744
    %v1403 = vpack.c.bf16 %v752, %v752
    %v1404 = vpack.c.bf16 %v760, %v760
    %v1405 = vpack.c.bf16 %v768, %v768
    %v1406 = vpack.c.bf16 %v776, %v776
    %v1407 = vpack.c.bf16 %v784, %v784
    %v1408 = vpack.c.bf16 %v792, %v792
    %v1409 = vpack.c.bf16 %v800, %v800
    %v1410 = vpack.c.bf16 %v808, %v808
    %v1411 = vpack.c.bf16 %v816, %v816
    %v1412 = vpack.c.bf16 %v824, %v824
    %v1413 = vpack.c.bf16 %v832, %v832
    %v1414 = vpack.c.bf16 %v840, %v840
    %v1415 = vpack.c.bf16 %v848, %v848
    %v1416 = vpack.c.bf16 %v856, %v856
    %v1417 = vpack.c.bf16 %v864, %v864
    %v1418 = vpack.c.bf16 %v872, %v872
    %v1419 = vpack.c.bf16 %v880, %v880
    %v1420 = vpack.c.bf16 %v888, %v888
    %v1421 = vpack.c.bf16 %v896, %v896
    %v1422 = vpack.c.bf16 %v904, %v904
    %v1423 = vpack.c.bf16 %v912, %v912
    %v1424 = vpack.c.bf16 %v920, %v920
    %v1425 = vpack.c.bf16 %v928, %v928
    %v1426 = vpack.c.bf16 %v936, %v936
    %v1427 = vpack.c.bf16 %v944, %v944
    %v1428 = vpack.c.bf16 %v952, %v952
    %v1429 = vpack.c.bf16 %v960, %v960
    %v1430 = vpack.c.bf16 %v968, %v968
    %v1431 = vpack.c.bf16 %v976, %v976
    %v1432 = vpack.c.bf16 %v984, %v984
    %v1433 = vpack.c.bf16 %v992, %v992
    %v1434 = vpack.c.bf16 %v1000, %v1000
    %v1435 = vpack.c.bf16 %v1008, %v1008
    %v1436 = vpack.c.bf16 %v1016, %v1016
    %v1437 = vpack.c.bf16 %v1024, %v1024
    %v1438 = vpack.c.bf16 %v1032, %v1032
    %v1439 = vpack.c.bf16 %v1040, %v1040
    %v1440 = vpack.c.bf16 %v1048, %v1048
    %v1441 = vpack.c.bf16 %v1056, %v1056
    %v1442 = vpack.c.bf16 %v1064, %v1064
    %v1443 = vpack.c.bf16 %v1072, %v1072
    %v1444 = vpack.c.bf16 %v1080, %v1080
    %v1445 = vpack.c.bf16 %v1088, %v1088
    %v1446 = vpack.c.bf16 %v1096, %v1096
    %v1447 = vpack.c.bf16 %v1104, %v1104
    %v1448 = vpack.c.bf16 %v1112, %v1112
    %v1449 = vpack.c.bf16 %v1120, %v1120
    %v1450 = vpack.c.bf16 %v1128, %v1128
    %v1451 = vpack.c.bf16 %v1136, %v1136
    %v1452 = vpack.c.bf16 %v1144, %v1144
    %v1453 = vpack.c.bf16 %v1152, %v1152
    %v1454 = vpack.c.bf16 %v1160, %v1160
    %v1455 = vpack.c.bf16 %v1168, %v1168
    %v1456 = vpack.c.bf16 %v1176, %v1176
    %v1457 = vpack.c.bf16 %v1184, %v1184
    %v1458 = vpack.c.bf16 %v1192, %v1192
    %v1459 = vpack.c.bf16 %v1200, %v1200
    %v1460 = vpack.c.bf16 %v1208, %v1208
    %v1461 = vpack.c.bf16 %v1216, %v1216
    %v1462 = vpack.c.bf16 %v1224, %v1224
    %v1463 = vpack.c.bf16 %v1232, %v1232
    %v1464 = vpack.c.bf16 %v1240, %v1240
    %v1465 = vpack.c.bf16 %v1248, %v1248
    %v1466 = vpack.c.bf16 %v1256, %v1256
    %v1467 = vpack.c.bf16 %v1264, %v1264
    %v1468 = vpack.c.bf16 %v1272, %v1272
    %v1469 = vpack.c.bf16 %v1280, %v1280
    %v1470 = vpack.c.bf16 %v1288, %v1288
    %v1471 = vpack.c.bf16 %v1296, %v1296
    %v1472 = vpack.c.bf16 %v1304, %v1304
    %v1473 = vpack.c.bf16 %v1312, %v1312
    %v1474 = vpack.c.bf16 %v1320, %v1320
    %v1475 = vpack.c.bf16 %v1328, %v1328
    %v1476 = vpack.c.bf16 %v1336, %v1336
    %v1477 = vpack.c.bf16 %v1344, %v1344
    %v1478 = vpack.c.bf16 %v1352, %v1352
    %v1479 = vpack.c.bf16 %v1360, %v1360
    %v1480 = vpack.c.bf16 %v1368, %v1368
    %v1481 = vld [vmem:[#allocation3] sm:$0xff]
    %v1482 = vld [vmem:[#allocation3 + $0x8] sm:$0xff]
    %v1483 = vld [vmem:[#allocation3 + $0x10] sm:$0xff]
    %v1484 = vld [vmem:[#allocation3 + $0x18] sm:$0xff]
    %v1485 = vld [vmem:[#allocation3 + $0x20] sm:$0xff]
    %v1486 = vld [vmem:[#allocation3 + $0x28] sm:$0xff]
    %v1487 = vld [vmem:[#allocation3 + $0x30] sm:$0xff]
    %v1488 = vld [vmem:[#allocation3 + $0x38] sm:$0xff]
    %v1489 = vld [vmem:[#allocation3 + $0x40] sm:$0xff]
    %v1490 = vld [vmem:[#allocation3 + $0x48] sm:$0xff]
    %v1491 = vld [vmem:[#allocation3 + $0x50] sm:$0xff]
    %v1492 = vld [vmem:[#allocation3 + $0x58] sm:$0xff]
    %v1493 = vld [vmem:[#allocation3 + $0x60] sm:$0xff]
    %v1494 = vld [vmem:[#allocation3 + $0x68] sm:$0xff]
    %v1495 = vld [vmem:[#allocation3 + $0x70] sm:$0xff]
    %v1496 = vld [vmem:[#allocation3 + $0x78] sm:$0xff]
    %v1497 = vld [vmem:[#allocation3 + $0x80] sm:$0xff]
    %v1498 = vld [vmem:[#allocation3 + $0x88] sm:$0xff]
    %v1499 = vld [vmem:[#allocation3 + $0x90] sm:$0xff]
    %v1500 = vld [vmem:[#allocation3 + $0x98] sm:$0xff]
    %v1501 = vld [vmem:[#allocation3 + $0xa0] sm:$0xff]
    %v1502 = vld [vmem:[#allocation3 + $0xa8] sm:$0xff]
    %v1503 = vld [vmem:[#allocation3 + $0xb0] sm:$0xff]
    %v1504 = vld [vmem:[#allocation3 + $0xb8] sm:$0xff]
    %v1505 = vld [vmem:[#allocation3 + $0xc0] sm:$0xff]
    %v1506 = vld [vmem:[#allocation3 + $0xc8] sm:$0xff]
    %v1507 = vld [vmem:[#allocation3 + $0xd0] sm:$0xff]
    %v1508 = vld [vmem:[#allocation3 + $0xd8] sm:$0xff]
    %v1509 = vld [vmem:[#allocation3 + $0xe0] sm:$0xff]
    %v1510 = vld [vmem:[#allocation3 + $0xe8] sm:$0xff]
    %v1511 = vld [vmem:[#allocation3 + $0xf0] sm:$0xff]
    %v1512 = vld [vmem:[#allocation3 + $0xf8] sm:$0xff]
    %v1513 = vld [vmem:[#allocation3 + $0x100] sm:$0xff]
    %v1514 = vld [vmem:[#allocation3 + $0x108] sm:$0xff]
    %v1515 = vld [vmem:[#allocation3 + $0x110] sm:$0xff]
    %v1516 = vld [vmem:[#allocation3 + $0x118] sm:$0xff]
    %v1517 = vld [vmem:[#allocation3 + $0x120] sm:$0xff]
    %v1518 = vld [vmem:[#allocation3 + $0x128] sm:$0xff]
    %v1519 = vld [vmem:[#allocation3 + $0x130] sm:$0xff]
    %v1520 = vld [vmem:[#allocation3 + $0x138] sm:$0xff]
    %v1521 = vld [vmem:[#allocation3 + $0x140] sm:$0xff]
    %v1522 = vld [vmem:[#allocation3 + $0x148] sm:$0xff]
    %v1523 = vld [vmem:[#allocation3 + $0x150] sm:$0xff]
    %v1524 = vld [vmem:[#allocation3 + $0x158] sm:$0xff]
    %v1525 = vld [vmem:[#allocation3 + $0x160] sm:$0xff]
    %v1526 = vld [vmem:[#allocation3 + $0x168] sm:$0xff]
    %v1527 = vld [vmem:[#allocation3 + $0x170] sm:$0xff]
    %v1528 = vld [vmem:[#allocation3 + $0x178] sm:$0xff]
    %v1529 = vld [vmem:[#allocation3 + $0x180] sm:$0xff]
    %v1530 = vld [vmem:[#allocation3 + $0x188] sm:$0xff]
    %v1531 = vld [vmem:[#allocation3 + $0x190] sm:$0xff]
    %v1532 = vld [vmem:[#allocation3 + $0x198] sm:$0xff]
    %v1533 = vld [vmem:[#allocation3 + $0x1a0] sm:$0xff]
    %v1534 = vld [vmem:[#allocation3 + $0x1a8] sm:$0xff]
    %v1535 = vld [vmem:[#allocation3 + $0x1b0] sm:$0xff]
    %v1536 = vld [vmem:[#allocation3 + $0x1b8] sm:$0xff]
    %v1537 = vld [vmem:[#allocation3 + $0x1c0] sm:$0xff]
    %v1538 = vld [vmem:[#allocation3 + $0x1c8] sm:$0xff]
    %v1539 = vld [vmem:[#allocation3 + $0x1d0] sm:$0xff]
    %v1540 = vld [vmem:[#allocation3 + $0x1d8] sm:$0xff]
    %v1541 = vld [vmem:[#allocation3 + $0x1e0] sm:$0xff]
    %v1542 = vld [vmem:[#allocation3 + $0x1e8] sm:$0xff]
    %v1543 = vld [vmem:[#allocation3 + $0x1f0] sm:$0xff]
    %v1544 = vld [vmem:[#allocation3 + $0x1f8] sm:$0xff]
    %v1545 = vld [vmem:[#allocation3 + $0x200] sm:$0xff]
    %v1546 = vld [vmem:[#allocation3 + $0x208] sm:$0xff]
    %v1547 = vld [vmem:[#allocation3 + $0x210] sm:$0xff]
    %v1548 = vld [vmem:[#allocation3 + $0x218] sm:$0xff]
    %v1549 = vld [vmem:[#allocation3 + $0x220] sm:$0xff]
    %v1550 = vld [vmem:[#allocation3 + $0x228] sm:$0xff]
    %v1551 = vld [vmem:[#allocation3 + $0x230] sm:$0xff]
    %v1552 = vld [vmem:[#allocation3 + $0x238] sm:$0xff]
    %v1553 = vld [vmem:[#allocation3 + $0x240] sm:$0xff]
    %v1554 = vld [vmem:[#allocation3 + $0x248] sm:$0xff]
    %v1555 = vld [vmem:[#allocation3 + $0x250] sm:$0xff]
    %v1556 = vld [vmem:[#allocation3 + $0x258] sm:$0xff]
    %v1557 = vld [vmem:[#allocation3 + $0x260] sm:$0xff]
    %v1558 = vld [vmem:[#allocation3 + $0x268] sm:$0xff]
    %v1559 = vld [vmem:[#allocation3 + $0x270] sm:$0xff]
    %v1560 = vld [vmem:[#allocation3 + $0x278] sm:$0xff]
    %v1561 = vld [vmem:[#allocation3 + $0x280] sm:$0xff]
    %v1562 = vld [vmem:[#allocation3 + $0x288] sm:$0xff]
    %v1563 = vld [vmem:[#allocation3 + $0x290] sm:$0xff]
    %v1564 = vld [vmem:[#allocation3 + $0x298] sm:$0xff]
    %v1565 = vld [vmem:[#allocation3 + $0x2a0] sm:$0xff]
    %v1566 = vld [vmem:[#allocation3 + $0x2a8] sm:$0xff]
    %v1567 = vld [vmem:[#allocation3 + $0x2b0] sm:$0xff]
    %v1568 = vld [vmem:[#allocation3 + $0x2b8] sm:$0xff]
    %v1569 = vld [vmem:[#allocation3 + $0x2c0] sm:$0xff]
    %v1570 = vld [vmem:[#allocation3 + $0x2c8] sm:$0xff]
    %v1571 = vld [vmem:[#allocation3 + $0x2d0] sm:$0xff]
    %v1572 = vld [vmem:[#allocation3 + $0x2d8] sm:$0xff]
    %v1573 = vld [vmem:[#allocation3 + $0x2e0] sm:$0xff]
    %v1574 = vld [vmem:[#allocation3 + $0x2e8] sm:$0xff]
    %v1575 = vld [vmem:[#allocation3 + $0x2f0] sm:$0xff]
    %v1576 = vld [vmem:[#allocation3 + $0x2f8] sm:$0xff]
    %v1577 = vld [vmem:[#allocation3 + $0x300] sm:$0xff]
    %v1578 = vld [vmem:[#allocation3 + $0x308] sm:$0xff]
    %v1579 = vld [vmem:[#allocation3 + $0x310] sm:$0xff]
    %v1580 = vld [vmem:[#allocation3 + $0x318] sm:$0xff]
    %v1581 = vld [vmem:[#allocation3 + $0x320] sm:$0xff]
    %v1582 = vld [vmem:[#allocation3 + $0x328] sm:$0xff]
    %v1583 = vld [vmem:[#allocation3 + $0x330] sm:$0xff]
    %v1584 = vld [vmem:[#allocation3 + $0x338] sm:$0xff]
    %v1585 = vld [vmem:[#allocation3 + $0x340] sm:$0xff]
    %v1586 = vld [vmem:[#allocation3 + $0x348] sm:$0xff]
    %v1587 = vld [vmem:[#allocation3 + $0x350] sm:$0xff]
    %v1588 = vld [vmem:[#allocation3 + $0x358] sm:$0xff]
    %v1589 = vld [vmem:[#allocation3 + $0x360] sm:$0xff]
    %v1590 = vld [vmem:[#allocation3 + $0x368] sm:$0xff]
    %v1591 = vld [vmem:[#allocation3 + $0x370] sm:$0xff]
    %v1592 = vld [vmem:[#allocation3 + $0x378] sm:$0xff]
    %v1593 = vld [vmem:[#allocation3 + $0x380] sm:$0xff]
    %v1594 = vld [vmem:[#allocation3 + $0x388] sm:$0xff]
    %v1595 = vld [vmem:[#allocation3 + $0x390] sm:$0xff]
    %v1596 = vld [vmem:[#allocation3 + $0x398] sm:$0xff]
    %v1597 = vld [vmem:[#allocation3 + $0x3a0] sm:$0xff]
    %v1598 = vld [vmem:[#allocation3 + $0x3a8] sm:$0xff]
    %v1599 = vld [vmem:[#allocation3 + $0x3b0] sm:$0xff]
    %v1600 = vld [vmem:[#allocation3 + $0x3b8] sm:$0xff]
    %v1601 = vld [vmem:[#allocation3 + $0x3c0] sm:$0xff]
    %v1602 = vld [vmem:[#allocation3 + $0x3c8] sm:$0xff]
    %v1603 = vld [vmem:[#allocation3 + $0x3d0] sm:$0xff]
    %v1604 = vld [vmem:[#allocation3 + $0x3d8] sm:$0xff]
    %v1605 = vld [vmem:[#allocation3 + $0x3e0] sm:$0xff]
    %v1606 = vld [vmem:[#allocation3 + $0x3e8] sm:$0xff]
    %v1607 = vld [vmem:[#allocation3 + $0x3f0] sm:$0xff]
    %v1608 = vld [vmem:[#allocation3 + $0x3f8] sm:$0xff]
    %v1609 = vld [vmem:[#allocation3 + $0x400] sm:$0xff]
    %v1610 = vld [vmem:[#allocation3 + $0x408] sm:$0xff]
    %v1611 = vld [vmem:[#allocation3 + $0x410] sm:$0xff]
    %v1612 = vld [vmem:[#allocation3 + $0x418] sm:$0xff]
    %v1613 = vld [vmem:[#allocation3 + $0x420] sm:$0xff]
    %v1614 = vld [vmem:[#allocation3 + $0x428] sm:$0xff]
    %v1615 = vld [vmem:[#allocation3 + $0x430] sm:$0xff]
    %v1616 = vld [vmem:[#allocation3 + $0x438] sm:$0xff]
    %v1617 = vld [vmem:[#allocation3 + $0x440] sm:$0xff]
    %v1618 = vld [vmem:[#allocation3 + $0x448] sm:$0xff]
    %v1619 = vld [vmem:[#allocation3 + $0x450] sm:$0xff]
    %v1620 = vld [vmem:[#allocation3 + $0x458] sm:$0xff]
    %v1621 = vld [vmem:[#allocation3 + $0x460] sm:$0xff]
    %v1622 = vld [vmem:[#allocation3 + $0x468] sm:$0xff]
    %v1623 = vld [vmem:[#allocation3 + $0x470] sm:$0xff]
    %v1624 = vld [vmem:[#allocation3 + $0x478] sm:$0xff]
    %v1625 = vld [vmem:[#allocation3 + $0x480] sm:$0xff]
    %v1626 = vld [vmem:[#allocation3 + $0x488] sm:$0xff]
    %v1627 = vld [vmem:[#allocation3 + $0x490] sm:$0xff]
    %v1628 = vld [vmem:[#allocation3 + $0x498] sm:$0xff]
    %v1629 = vld [vmem:[#allocation3 + $0x4a0] sm:$0xff]
    %v1630 = vld [vmem:[#allocation3 + $0x4a8] sm:$0xff]
    %v1631 = vld [vmem:[#allocation3 + $0x4b0] sm:$0xff]
    %v1632 = vld [vmem:[#allocation3 + $0x4b8] sm:$0xff]
    %v1633 = vld [vmem:[#allocation3 + $0x4c0] sm:$0xff]
    %v1634 = vld [vmem:[#allocation3 + $0x4c8] sm:$0xff]
    %v1635 = vld [vmem:[#allocation3 + $0x4d0] sm:$0xff]
    %v1636 = vld [vmem:[#allocation3 + $0x4d8] sm:$0xff]
    %v1637 = vld [vmem:[#allocation3 + $0x4e0] sm:$0xff]
    %v1638 = vld [vmem:[#allocation3 + $0x4e8] sm:$0xff]
    %v1639 = vld [vmem:[#allocation3 + $0x4f0] sm:$0xff]
    %v1640 = vld [vmem:[#allocation3 + $0x4f8] sm:$0xff]
    %v1641 = vld [vmem:[#allocation3 + $0x500] sm:$0xff]
    %v1642 = vld [vmem:[#allocation3 + $0x508] sm:$0xff]
    %v1643 = vld [vmem:[#allocation3 + $0x510] sm:$0xff]
    %v1644 = vld [vmem:[#allocation3 + $0x518] sm:$0xff]
    %v1645 = vld [vmem:[#allocation3 + $0x520] sm:$0xff]
    %v1646 = vld [vmem:[#allocation3 + $0x528] sm:$0xff]
    %v1647 = vld [vmem:[#allocation3 + $0x530] sm:$0xff]
    %v1648 = vld [vmem:[#allocation3 + $0x538] sm:$0xff]
    %v1649 = vld [vmem:[#allocation3 + $0x540] sm:$0xff]
    %v1650 = vld [vmem:[#allocation3 + $0x548] sm:$0xff]
    %v1651 = vld [vmem:[#allocation3 + $0x550] sm:$0xff]
    %v1652 = vld [vmem:[#allocation3 + $0x558] sm:$0xff]
    %v1653 = vld [vmem:[#allocation3 + $0x560] sm:$0xff]
    %v1654 = vld [vmem:[#allocation3 + $0x568] sm:$0xff]
    %v1655 = vld [vmem:[#allocation3 + $0x570] sm:$0xff]
    %v1656 = vld [vmem:[#allocation3 + $0x578] sm:$0xff]
    %v1657 = vld [vmem:[#allocation3 + $0x580] sm:$0xff]
    %v1658 = vld [vmem:[#allocation3 + $0x588] sm:$0xff]
    %v1659 = vld [vmem:[#allocation3 + $0x590] sm:$0xff]
    %v1660 = vld [vmem:[#allocation3 + $0x598] sm:$0xff]
    %v1661 = vld [vmem:[#allocation3 + $0x5a0] sm:$0xff]
    %v1662 = vld [vmem:[#allocation3 + $0x5a8] sm:$0xff]
    %v1663 = vld [vmem:[#allocation3 + $0x5b0] sm:$0xff]
    %v1664 = vld [vmem:[#allocation3 + $0x5b8] sm:$0xff]
    %v1665 = vld [vmem:[#allocation3 + $0x5c0] sm:$0xff]
    %v1666 = vld [vmem:[#allocation3 + $0x5c8] sm:$0xff]
    %v1667 = vld [vmem:[#allocation3 + $0x5d0] sm:$0xff]
    %v1668 = vld [vmem:[#allocation3 + $0x5d8] sm:$0xff]
    %v1669 = vld [vmem:[#allocation3 + $0x5e0] sm:$0xff]
    %v1670 = vld [vmem:[#allocation3 + $0x5e8] sm:$0xff]
    %v1671 = vld [vmem:[#allocation3 + $0x5f0] sm:$0xff]
    %v1672 = vld [vmem:[#allocation3 + $0x5f8] sm:$0xff]
    %v1673 = vld [vmem:[#allocation3 + $0x600] sm:$0xff]
    %v1674 = vld [vmem:[#allocation3 + $0x608] sm:$0xff]
    %v1675 = vld [vmem:[#allocation3 + $0x610] sm:$0xff]
    %v1676 = vld [vmem:[#allocation3 + $0x618] sm:$0xff]
    %v1677 = vld [vmem:[#allocation3 + $0x620] sm:$0xff]
    %v1678 = vld [vmem:[#allocation3 + $0x628] sm:$0xff]
    %v1679 = vld [vmem:[#allocation3 + $0x630] sm:$0xff]
    %v1680 = vld [vmem:[#allocation3 + $0x638] sm:$0xff]
    %v1681 = vld [vmem:[#allocation3 + $0x640] sm:$0xff]
    %v1682 = vld [vmem:[#allocation3 + $0x648] sm:$0xff]
    %v1683 = vld [vmem:[#allocation3 + $0x650] sm:$0xff]
    %v1684 = vld [vmem:[#allocation3 + $0x658] sm:$0xff]
    %v1685 = vld [vmem:[#allocation3 + $0x660] sm:$0xff]
    %v1686 = vld [vmem:[#allocation3 + $0x668] sm:$0xff]
    %v1687 = vld [vmem:[#allocation3 + $0x670] sm:$0xff]
    %v1688 = vld [vmem:[#allocation3 + $0x678] sm:$0xff]
    %v1689 = vld [vmem:[#allocation3 + $0x680] sm:$0xff]
    %v1690 = vld [vmem:[#allocation3 + $0x688] sm:$0xff]
    %v1691 = vld [vmem:[#allocation3 + $0x690] sm:$0xff]
    %v1692 = vld [vmem:[#allocation3 + $0x698] sm:$0xff]
    %v1693 = vld [vmem:[#allocation3 + $0x6a0] sm:$0xff]
    %v1694 = vld [vmem:[#allocation3 + $0x6a8] sm:$0xff]
    %v1695 = vld [vmem:[#allocation3 + $0x6b0] sm:$0xff]
    %v1696 = vld [vmem:[#allocation3 + $0x6b8] sm:$0xff]
    %v1697 = vld [vmem:[#allocation3 + $0x6c0] sm:$0xff]
    %v1698 = vld [vmem:[#allocation3 + $0x6c8] sm:$0xff]
    %v1699 = vld [vmem:[#allocation3 + $0x6d0] sm:$0xff]
    %v1700 = vld [vmem:[#allocation3 + $0x6d8] sm:$0xff]
    %v1701 = vld [vmem:[#allocation3 + $0x6e0] sm:$0xff]
    %v1702 = vld [vmem:[#allocation3 + $0x6e8] sm:$0xff]
    %v1703 = vld [vmem:[#allocation3 + $0x6f0] sm:$0xff]
    %v1704 = vld [vmem:[#allocation3 + $0x6f8] sm:$0xff]
    %v1705 = vld [vmem:[#allocation3 + $0x700] sm:$0xff]
    %v1706 = vld [vmem:[#allocation3 + $0x708] sm:$0xff]
    %v1707 = vld [vmem:[#allocation3 + $0x710] sm:$0xff]
    %v1708 = vld [vmem:[#allocation3 + $0x718] sm:$0xff]
    %v1709 = vld [vmem:[#allocation3 + $0x720] sm:$0xff]
    %v1710 = vld [vmem:[#allocation3 + $0x728] sm:$0xff]
    %v1711 = vld [vmem:[#allocation3 + $0x730] sm:$0xff]
    %v1712 = vld [vmem:[#allocation3 + $0x738] sm:$0xff]
    %v1713 = vld [vmem:[#allocation3 + $0x740] sm:$0xff]
    %v1714 = vld [vmem:[#allocation3 + $0x748] sm:$0xff]
    %v1715 = vld [vmem:[#allocation3 + $0x750] sm:$0xff]
    %v1716 = vld [vmem:[#allocation3 + $0x758] sm:$0xff]
    %v1717 = vld [vmem:[#allocation3 + $0x760] sm:$0xff]
    %v1718 = vld [vmem:[#allocation3 + $0x768] sm:$0xff]
    %v1719 = vld [vmem:[#allocation3 + $0x770] sm:$0xff]
    %v1720 = vld [vmem:[#allocation3 + $0x778] sm:$0xff]
    %v1721 = vld [vmem:[#allocation3 + $0x780] sm:$0xff]
    %v1722 = vld [vmem:[#allocation3 + $0x788] sm:$0xff]
    %v1723 = vld [vmem:[#allocation3 + $0x790] sm:$0xff]
    %v1724 = vld [vmem:[#allocation3 + $0x798] sm:$0xff]
    %v1725 = vld [vmem:[#allocation3 + $0x7a0] sm:$0xff]
    %v1726 = vld [vmem:[#allocation3 + $0x7a8] sm:$0xff]
    %v1727 = vld [vmem:[#allocation3 + $0x7b0] sm:$0xff]
    %v1728 = vld [vmem:[#allocation3 + $0x7b8] sm:$0xff]
    %v1729 = vld [vmem:[#allocation3 + $0x7c0] sm:$0xff]
    %v1730 = vld [vmem:[#allocation3 + $0x7c8] sm:$0xff]
    %v1731 = vld [vmem:[#allocation3 + $0x7d0] sm:$0xff]
    %v1732 = vld [vmem:[#allocation3 + $0x7d8] sm:$0xff]
    %v1733 = vld [vmem:[#allocation3 + $0x7e0] sm:$0xff]
    %v1734 = vld [vmem:[#allocation3 + $0x7e8] sm:$0xff]
    %v1735 = vld [vmem:[#allocation3 + $0x7f0] sm:$0xff]
    %v1736 = vld [vmem:[#allocation3 + $0x7f8] sm:$0xff]
    %v1737 = vld [vmem:[#allocation3 + $0x800] sm:$0xff]
    %v1738 = vld [vmem:[#allocation3 + $0x808] sm:$0xff]
    %v1739 = vld [vmem:[#allocation3 + $0x810] sm:$0xff]
    %v1740 = vld [vmem:[#allocation3 + $0x818] sm:$0xff]
    %v1741 = vld [vmem:[#allocation3 + $0x820] sm:$0xff]
    %v1742 = vld [vmem:[#allocation3 + $0x828] sm:$0xff]
    %v1743 = vld [vmem:[#allocation3 + $0x830] sm:$0xff]
    %v1744 = vld [vmem:[#allocation3 + $0x838] sm:$0xff]
    %v1745 = vld [vmem:[#allocation3 + $0x840] sm:$0xff]
    %v1746 = vld [vmem:[#allocation3 + $0x848] sm:$0xff]
    %v1747 = vld [vmem:[#allocation3 + $0x850] sm:$0xff]
    %v1748 = vld [vmem:[#allocation3 + $0x858] sm:$0xff]
    %v1749 = vld [vmem:[#allocation3 + $0x860] sm:$0xff]
    %v1750 = vld [vmem:[#allocation3 + $0x868] sm:$0xff]
    %v1751 = vld [vmem:[#allocation3 + $0x870] sm:$0xff]
    %v1752 = vld [vmem:[#allocation3 + $0x878] sm:$0xff]
    %v1753 = vld [vmem:[#allocation3 + $0x880] sm:$0xff]
    %v1754 = vld [vmem:[#allocation3 + $0x888] sm:$0xff]
    %v1755 = vld [vmem:[#allocation3 + $0x890] sm:$0xff]
    %v1756 = vld [vmem:[#allocation3 + $0x898] sm:$0xff]
    %v1757 = vld [vmem:[#allocation3 + $0x8a0] sm:$0xff]
    %v1758 = vld [vmem:[#allocation3 + $0x8a8] sm:$0xff]
    %v1759 = vld [vmem:[#allocation3 + $0x8b0] sm:$0xff]
    %v1760 = vld [vmem:[#allocation3 + $0x8b8] sm:$0xff]
    %v1761 = vld [vmem:[#allocation3 + $0x8c0] sm:$0xff]
    %v1762 = vld [vmem:[#allocation3 + $0x8c8] sm:$0xff]
    %v1763 = vld [vmem:[#allocation3 + $0x8d0] sm:$0xff]
    %v1764 = vld [vmem:[#allocation3 + $0x8d8] sm:$0xff]
    %v1765 = vld [vmem:[#allocation3 + $0x8e0] sm:$0xff]
    %v1766 = vld [vmem:[#allocation3 + $0x8e8] sm:$0xff]
    %v1767 = vld [vmem:[#allocation3 + $0x8f0] sm:$0xff]
    %v1768 = vld [vmem:[#allocation3 + $0x8f8] sm:$0xff]
    %v1769 = vld [vmem:[#allocation3 + $0x900] sm:$0xff]
    %v1770 = vld [vmem:[#allocation3 + $0x908] sm:$0xff]
    %v1771 = vld [vmem:[#allocation3 + $0x910] sm:$0xff]
    %v1772 = vld [vmem:[#allocation3 + $0x918] sm:$0xff]
    %v1773 = vld [vmem:[#allocation3 + $0x920] sm:$0xff]
    %v1774 = vld [vmem:[#allocation3 + $0x928] sm:$0xff]
    %v1775 = vld [vmem:[#allocation3 + $0x930] sm:$0xff]
    %v1776 = vld [vmem:[#allocation3 + $0x938] sm:$0xff]
    %v1777 = vld [vmem:[#allocation3 + $0x940] sm:$0xff]
    %v1778 = vld [vmem:[#allocation3 + $0x948] sm:$0xff]
    %v1779 = vld [vmem:[#allocation3 + $0x950] sm:$0xff]
    %v1780 = vld [vmem:[#allocation3 + $0x958] sm:$0xff]
    %v1781 = vld [vmem:[#allocation3 + $0x960] sm:$0xff]
    %v1782 = vld [vmem:[#allocation3 + $0x968] sm:$0xff]
    %v1783 = vld [vmem:[#allocation3 + $0x970] sm:$0xff]
    %v1784 = vld [vmem:[#allocation3 + $0x978] sm:$0xff]
    %v1785 = vld [vmem:[#allocation3 + $0x980] sm:$0xff]
    %v1786 = vld [vmem:[#allocation3 + $0x988] sm:$0xff]
    %v1787 = vld [vmem:[#allocation3 + $0x990] sm:$0xff]
    %v1788 = vld [vmem:[#allocation3 + $0x998] sm:$0xff]
    %v1789 = vld [vmem:[#allocation3 + $0x9a0] sm:$0xff]
    %v1790 = vld [vmem:[#allocation3 + $0x9a8] sm:$0xff]
    %v1791 = vld [vmem:[#allocation3 + $0x9b0] sm:$0xff]
    %v1792 = vld [vmem:[#allocation3 + $0x9b8] sm:$0xff]
    %v1793 = vld [vmem:[#allocation3 + $0x9c0] sm:$0xff]
    %v1794 = vld [vmem:[#allocation3 + $0x9c8] sm:$0xff]
    %v1795 = vld [vmem:[#allocation3 + $0x9d0] sm:$0xff]
    %v1796 = vld [vmem:[#allocation3 + $0x9d8] sm:$0xff]
    %v1797 = vld [vmem:[#allocation3 + $0x9e0] sm:$0xff]
    %v1798 = vld [vmem:[#allocation3 + $0x9e8] sm:$0xff]
    %v1799 = vld [vmem:[#allocation3 + $0x9f0] sm:$0xff]
    %v1800 = vld [vmem:[#allocation3 + $0x9f8] sm:$0xff]
    %v1801 = vld [vmem:[#allocation3 + $0xa00] sm:$0xff]
    %v1802 = vld [vmem:[#allocation3 + $0xa08] sm:$0xff]
    %v1803 = vld [vmem:[#allocation3 + $0xa10] sm:$0xff]
    %v1804 = vld [vmem:[#allocation3 + $0xa18] sm:$0xff]
    %v1805 = vld [vmem:[#allocation3 + $0xa20] sm:$0xff]
    %v1806 = vld [vmem:[#allocation3 + $0xa28] sm:$0xff]
    %v1807 = vld [vmem:[#allocation3 + $0xa30] sm:$0xff]
    %v1808 = vld [vmem:[#allocation3 + $0xa38] sm:$0xff]
    %v1809 = vld [vmem:[#allocation3 + $0xa40] sm:$0xff]
    %v1810 = vld [vmem:[#allocation3 + $0xa48] sm:$0xff]
    %v1811 = vld [vmem:[#allocation3 + $0xa50] sm:$0xff]
    %v1812 = vld [vmem:[#allocation3 + $0xa58] sm:$0xff]
    %v1813 = vld [vmem:[#allocation3 + $0xa60] sm:$0xff]
    %v1814 = vld [vmem:[#allocation3 + $0xa68] sm:$0xff]
    %v1815 = vld [vmem:[#allocation3 + $0xa70] sm:$0xff]
    %v1816 = vld [vmem:[#allocation3 + $0xa78] sm:$0xff]
    %v1817 = vld [vmem:[#allocation3 + $0xa80] sm:$0xff]
    %v1818 = vld [vmem:[#allocation3 + $0xa88] sm:$0xff]
    %v1819 = vld [vmem:[#allocation3 + $0xa90] sm:$0xff]
    %v1820 = vld [vmem:[#allocation3 + $0xa98] sm:$0xff]
    %v1821 = vld [vmem:[#allocation3 + $0xaa0] sm:$0xff]
    %v1822 = vld [vmem:[#allocation3 + $0xaa8] sm:$0xff]
    %v1823 = vld [vmem:[#allocation3 + $0xab0] sm:$0xff]
    %v1824 = vld [vmem:[#allocation3 + $0xab8] sm:$0xff]
    %v1825 = vld [vmem:[#allocation3 + $0xac0] sm:$0xff]
    %v1826 = vld [vmem:[#allocation3 + $0xac8] sm:$0xff]
    %v1827 = vld [vmem:[#allocation3 + $0xad0] sm:$0xff]
    %v1828 = vld [vmem:[#allocation3 + $0xad8] sm:$0xff]
    %v1829 = vld [vmem:[#allocation3 + $0xae0] sm:$0xff]
    %v1830 = vld [vmem:[#allocation3 + $0xae8] sm:$0xff]
    %v1831 = vld [vmem:[#allocation3 + $0xaf0] sm:$0xff]
    %v1832 = vld [vmem:[#allocation3 + $0xaf8] sm:$0xff]
    %v1833 = vld [vmem:[#allocation3 + $0xb00] sm:$0xff]
    %v1834 = vld [vmem:[#allocation3 + $0xb08] sm:$0xff]
    %v1835 = vld [vmem:[#allocation3 + $0xb10] sm:$0xff]
    %v1836 = vld [vmem:[#allocation3 + $0xb18] sm:$0xff]
    %v1837 = vld [vmem:[#allocation3 + $0xb20] sm:$0xff]
    %v1838 = vld [vmem:[#allocation3 + $0xb28] sm:$0xff]
    %v1839 = vld [vmem:[#allocation3 + $0xb30] sm:$0xff]
    %v1840 = vld [vmem:[#allocation3 + $0xb38] sm:$0xff]
    %v1841 = vld [vmem:[#allocation3 + $0xb40] sm:$0xff]
    %v1842 = vld [vmem:[#allocation3 + $0xb48] sm:$0xff]
    %v1843 = vld [vmem:[#allocation3 + $0xb50] sm:$0xff]
    %v1844 = vld [vmem:[#allocation3 + $0xb58] sm:$0xff]
    %v1845 = vld [vmem:[#allocation3 + $0xb60] sm:$0xff]
    %v1846 = vld [vmem:[#allocation3 + $0xb68] sm:$0xff]
    %v1847 = vld [vmem:[#allocation3 + $0xb70] sm:$0xff]
    %v1848 = vld [vmem:[#allocation3 + $0xb78] sm:$0xff]
    %v1849 = vld [vmem:[#allocation3 + $0xb80] sm:$0xff]
    %v1850 = vld [vmem:[#allocation3 + $0xb88] sm:$0xff]
    %v1851 = vld [vmem:[#allocation3 + $0xb90] sm:$0xff]
    %v1852 = vld [vmem:[#allocation3 + $0xb98] sm:$0xff]
    %v1853 = vld [vmem:[#allocation3 + $0xba0] sm:$0xff]
    %v1854 = vld [vmem:[#allocation3 + $0xba8] sm:$0xff]
    %v1855 = vld [vmem:[#allocation3 + $0xbb0] sm:$0xff]
    %v1856 = vld [vmem:[#allocation3 + $0xbb8] sm:$0xff]
    %v1857 = vld [vmem:[#allocation3 + $0xbc0] sm:$0xff]
    %v1858 = vld [vmem:[#allocation3 + $0xbc8] sm:$0xff]
    %v1859 = vld [vmem:[#allocation3 + $0xbd0] sm:$0xff]
    %v1860 = vld [vmem:[#allocation3 + $0xbd8] sm:$0xff]
    %v1861 = vld [vmem:[#allocation3 + $0xbe0] sm:$0xff]
    %v1862 = vld [vmem:[#allocation3 + $0xbe8] sm:$0xff]
    %v1863 = vld [vmem:[#allocation3 + $0xbf0] sm:$0xff]
    %v1864 = vld [vmem:[#allocation3 + $0xbf8] sm:$0xff]
    %v1865 = vld [vmem:[#allocation3 + $0xc00] sm:$0xff]
    %v1866 = vld [vmem:[#allocation3 + $0xc08] sm:$0xff]
    %v1867 = vld [vmem:[#allocation3 + $0xc10] sm:$0xff]
    %v1868 = vld [vmem:[#allocation3 + $0xc18] sm:$0xff]
    %v1869 = vld [vmem:[#allocation3 + $0xc20] sm:$0xff]
    %v1870 = vld [vmem:[#allocation3 + $0xc28] sm:$0xff]
    %v1871 = vld [vmem:[#allocation3 + $0xc30] sm:$0xff]
    %v1872 = vld [vmem:[#allocation3 + $0xc38] sm:$0xff]
    %v1873 = vld [vmem:[#allocation3 + $0xc40] sm:$0xff]
    %v1874 = vld [vmem:[#allocation3 + $0xc48] sm:$0xff]
    %v1875 = vld [vmem:[#allocation3 + $0xc50] sm:$0xff]
    %v1876 = vld [vmem:[#allocation3 + $0xc58] sm:$0xff]
    %v1877 = vld [vmem:[#allocation3 + $0xc60] sm:$0xff]
    %v1878 = vld [vmem:[#allocation3 + $0xc68] sm:$0xff]
    %v1879 = vld [vmem:[#allocation3 + $0xc70] sm:$0xff]
    %v1880 = vld [vmem:[#allocation3 + $0xc78] sm:$0xff]
    %v1881 = vld [vmem:[#allocation3 + $0xc80] sm:$0xff]
    %v1882 = vld [vmem:[#allocation3 + $0xc88] sm:$0xff]
    %v1883 = vld [vmem:[#allocation3 + $0xc90] sm:$0xff]
    %v1884 = vld [vmem:[#allocation3 + $0xc98] sm:$0xff]
    %v1885 = vld [vmem:[#allocation3 + $0xca0] sm:$0xff]
    %v1886 = vld [vmem:[#allocation3 + $0xca8] sm:$0xff]
    %v1887 = vld [vmem:[#allocation3 + $0xcb0] sm:$0xff]
    %v1888 = vld [vmem:[#allocation3 + $0xcb8] sm:$0xff]
    %v1889 = vld [vmem:[#allocation3 + $0xcc0] sm:$0xff]
    %v1890 = vld [vmem:[#allocation3 + $0xcc8] sm:$0xff]
    %v1891 = vld [vmem:[#allocation3 + $0xcd0] sm:$0xff]
    %v1892 = vld [vmem:[#allocation3 + $0xcd8] sm:$0xff]
    %v1893 = vld [vmem:[#allocation3 + $0xce0] sm:$0xff]
    %v1894 = vld [vmem:[#allocation3 + $0xce8] sm:$0xff]
    %v1895 = vld [vmem:[#allocation3 + $0xcf0] sm:$0xff]
    %v1896 = vld [vmem:[#allocation3 + $0xcf8] sm:$0xff]
    %v1897 = vld [vmem:[#allocation3 + $0xd00] sm:$0xff]
    %v1898 = vld [vmem:[#allocation3 + $0xd08] sm:$0xff]
    %v1899 = vld [vmem:[#allocation3 + $0xd10] sm:$0xff]
    %v1900 = vld [vmem:[#allocation3 + $0xd18] sm:$0xff]
    %v1901 = vld [vmem:[#allocation3 + $0xd20] sm:$0xff]
    %v1902 = vld [vmem:[#allocation3 + $0xd28] sm:$0xff]
    %v1903 = vld [vmem:[#allocation3 + $0xd30] sm:$0xff]
    %v1904 = vld [vmem:[#allocation3 + $0xd38] sm:$0xff]
    %v1905 = vld [vmem:[#allocation3 + $0xd40] sm:$0xff]
    %v1906 = vld [vmem:[#allocation3 + $0xd48] sm:$0xff]
    %v1907 = vld [vmem:[#allocation3 + $0xd50] sm:$0xff]
    %v1908 = vld [vmem:[#allocation3 + $0xd58] sm:$0xff]
    %v1909 = vld [vmem:[#allocation3 + $0xd60] sm:$0xff]
    %v1910 = vld [vmem:[#allocation3 + $0xd68] sm:$0xff]
    %v1911 = vld [vmem:[#allocation3 + $0xd70] sm:$0xff]
    %v1912 = vld [vmem:[#allocation3 + $0xd78] sm:$0xff]
    %v1913 = vld [vmem:[#allocation3 + $0xd80] sm:$0xff]
    %v1914 = vld [vmem:[#allocation3 + $0xd88] sm:$0xff]
    %v1915 = vld [vmem:[#allocation3 + $0xd90] sm:$0xff]
    %v1916 = vld [vmem:[#allocation3 + $0xd98] sm:$0xff]
    %v1917 = vld [vmem:[#allocation3 + $0xda0] sm:$0xff]
    %v1918 = vld [vmem:[#allocation3 + $0xda8] sm:$0xff]
    %v1919 = vld [vmem:[#allocation3 + $0xdb0] sm:$0xff]
    %v1920 = vld [vmem:[#allocation3 + $0xdb8] sm:$0xff]
    %v1921 = vld [vmem:[#allocation3 + $0xdc0] sm:$0xff]
    %v1922 = vld [vmem:[#allocation3 + $0xdc8] sm:$0xff]
    %v1923 = vld [vmem:[#allocation3 + $0xdd0] sm:$0xff]
    %v1924 = vld [vmem:[#allocation3 + $0xdd8] sm:$0xff]
    %v1925 = vld [vmem:[#allocation3 + $0xde0] sm:$0xff]
    %v1926 = vld [vmem:[#allocation3 + $0xde8] sm:$0xff]
    %v1927 = vld [vmem:[#allocation3 + $0xdf0] sm:$0xff]
    %v1928 = vld [vmem:[#allocation3 + $0xdf8] sm:$0xff]
    %v1929 = vld [vmem:[#allocation6] sm:$0xf]
    %v1931 = vperm.slane %v1929, 0
    %v1932 = vperm.slane %v1929, 1
    %v1933 = vperm.slane %v1929, 2
    %v1934 = vperm.slane %v1929, 3
    %v2051 = vunpack.c.l.b16 %v1369
    %v2052 = vunpack.c.l.b16 %v1370
    %v2053 = vunpack.c.l.b16 %v1371
    %v2054 = vunpack.c.l.b16 %v1372
    %v2055 = vunpack.c.l.b16 %v1373
    %v2056 = vunpack.c.l.b16 %v1374
    %v2057 = vunpack.c.l.b16 %v1375
    %v2058 = vunpack.c.l.b16 %v1376
    %v2059 = vunpack.c.l.b16 %v1377
    %v2060 = vunpack.c.l.b16 %v1378
    %v2061 = vunpack.c.l.b16 %v1379
    %v2062 = vunpack.c.l.b16 %v1380
    %v2063 = vunpack.c.l.b16 %v1381
    %v2064 = vunpack.c.l.b16 %v1382
    %v2065 = vunpack.c.l.b16 %v1383
    %v2066 = vunpack.c.l.b16 %v1384
    %v2067 = vunpack.c.l.b16 %v1385
    %v2068 = vunpack.c.l.b16 %v1386
    %v2069 = vunpack.c.l.b16 %v1387
    %v2070 = vunpack.c.l.b16 %v1388
    %v2071 = vunpack.c.l.b16 %v1389
    %v2072 = vunpack.c.l.b16 %v1390
    %v2073 = vunpack.c.l.b16 %v1391
    %v2074 = vunpack.c.l.b16 %v1392
    %v2075 = vunpack.c.l.b16 %v1393
    %v2076 = vunpack.c.l.b16 %v1394
    %v2077 = vunpack.c.l.b16 %v1395
    %v2078 = vunpack.c.l.b16 %v1396
    %v2079 = vunpack.c.l.b16 %v1397
    %v2080 = vunpack.c.l.b16 %v1398
    %v2081 = vunpack.c.l.b16 %v1399
    %v2082 = vunpack.c.l.b16 %v1400
    %v2083 = vunpack.c.l.b16 %v1401
    %v2084 = vunpack.c.l.b16 %v1402
    %v2085 = vunpack.c.l.b16 %v1403
    %v2086 = vunpack.c.l.b16 %v1404
    %v2087 = vunpack.c.l.b16 %v1405
    %v2088 = vunpack.c.l.b16 %v1406
    %v2089 = vunpack.c.l.b16 %v1407
    %v2090 = vunpack.c.l.b16 %v1408
    %v2091 = vunpack.c.l.b16 %v1409
    %v2092 = vunpack.c.l.b16 %v1410
    %v2093 = vunpack.c.l.b16 %v1411
    %v2094 = vunpack.c.l.b16 %v1412
    %v2095 = vunpack.c.l.b16 %v1413
    %v2096 = vunpack.c.l.b16 %v1414
    %v2097 = vunpack.c.l.b16 %v1415
    %v2098 = vunpack.c.l.b16 %v1416
    %v2099 = vunpack.c.l.b16 %v1417
    %v2100 = vunpack.c.l.b16 %v1418
    %v2101 = vunpack.c.l.b16 %v1419
    %v2102 = vunpack.c.l.b16 %v1420
    %v2103 = vunpack.c.l.b16 %v1421
    %v2104 = vunpack.c.l.b16 %v1422
    %v2105 = vunpack.c.l.b16 %v1423
    %v2106 = vunpack.c.l.b16 %v1424
    %v2107 = vunpack.c.l.b16 %v1425
    %v2108 = vunpack.c.l.b16 %v1426
    %v2109 = vunpack.c.l.b16 %v1427
    %v2110 = vunpack.c.l.b16 %v1428
    %v2111 = vunpack.c.l.b16 %v1429
    %v2112 = vunpack.c.l.b16 %v1430
    %v2113 = vunpack.c.l.b16 %v1431
    %v2114 = vunpack.c.l.b16 %v1432
    %v2115 = vunpack.c.l.b16 %v1433
    %v2116 = vunpack.c.l.b16 %v1434
    %v2117 = vunpack.c.l.b16 %v1435
    %v2118 = vunpack.c.l.b16 %v1436
    %v2119 = vunpack.c.l.b16 %v1437
    %v2120 = vunpack.c.l.b16 %v1438
    %v2121 = vunpack.c.l.b16 %v1439
    %v2122 = vunpack.c.l.b16 %v1440
    %v2123 = vunpack.c.l.b16 %v1441
    %v2124 = vunpack.c.l.b16 %v1442
    %v2125 = vunpack.c.l.b16 %v1443
    %v2126 = vunpack.c.l.b16 %v1444
    %v2127 = vunpack.c.l.b16 %v1445
    %v2128 = vunpack.c.l.b16 %v1446
    %v2129 = vunpack.c.l.b16 %v1447
    %v2130 = vunpack.c.l.b16 %v1448
    %v2131 = vunpack.c.l.b16 %v1449
    %v2132 = vunpack.c.l.b16 %v1450
    %v2133 = vunpack.c.l.b16 %v1451
    %v2134 = vunpack.c.l.b16 %v1452
    %v2135 = vunpack.c.l.b16 %v1453
    %v2136 = vunpack.c.l.b16 %v1454
    %v2137 = vunpack.c.l.b16 %v1455
    %v2138 = vunpack.c.l.b16 %v1456
    %v2139 = vunpack.c.l.b16 %v1457
    %v2140 = vunpack.c.l.b16 %v1458
    %v2141 = vunpack.c.l.b16 %v1459
    %v2142 = vunpack.c.l.b16 %v1460
    %v2143 = vunpack.c.l.b16 %v1461
    %v2144 = vunpack.c.l.b16 %v1462
    %v2145 = vunpack.c.l.b16 %v1463
    %v2146 = vunpack.c.l.b16 %v1464
    %v2147 = vunpack.c.l.b16 %v1465
    %v2148 = vunpack.c.l.b16 %v1466
    %v2149 = vunpack.c.l.b16 %v1467
    %v2150 = vunpack.c.l.b16 %v1468
    %v2151 = vunpack.c.l.b16 %v1469
    %v2152 = vunpack.c.l.b16 %v1470
    %v2153 = vunpack.c.l.b16 %v1471
    %v2154 = vunpack.c.l.b16 %v1472
    %v2155 = vunpack.c.l.b16 %v1473
    %v2156 = vunpack.c.l.b16 %v1474
    %v2157 = vunpack.c.l.b16 %v1475
    %v2158 = vunpack.c.l.b16 %v1476
    %v2159 = vunpack.c.l.b16 %v1477
    %v2160 = vunpack.c.l.b16 %v1478
    %v2161 = vunpack.c.l.b16 %v1479
    %v2162 = vunpack.c.l.b16 %v1480
    %vm2163 = vcmask 1041409
    %v2164 = vsel %vm2163, %v2065, %v2051
    %vm2165 = vcmask 1042434
    %v2166 = vsel %vm2165, %v2079, %v2164
    %vm2167 = vcmask 1043459
    %v2168 = vsel %vm2167, %v2093, %v2166
    %vm2169 = vcmask 1044484
    %v2170 = vsel %vm2169, %v2107, %v2168
    %vm2171 = vcmask 1045509
    %v2172 = vsel %vm2171, %v2121, %v2170
    %vm2173 = vcmask 1046534
    %v2174 = vsel %vm2173, %v2135, %v2172
    %vm2175 = vcmask 1047559
    %v2176 = vsel %vm2175, %v2149, %v2174
    %v2177 = vsel %vm2163, %v2066, %v2052
    %v2178 = vsel %vm2165, %v2080, %v2177
    %v2179 = vsel %vm2167, %v2094, %v2178
    %v2180 = vsel %vm2169, %v2108, %v2179
    %v2181 = vsel %vm2171, %v2122, %v2180
    %v2182 = vsel %vm2173, %v2136, %v2181
    %v2183 = vsel %vm2175, %v2150, %v2182
    %v2184 = vsel %vm2163, %v2067, %v2053
    %v2185 = vsel %vm2165, %v2081, %v2184
    %v2186 = vsel %vm2167, %v2095, %v2185
    %v2187 = vsel %vm2169, %v2109, %v2186
    %v2188 = vsel %vm2171, %v2123, %v2187
    %v2189 = vsel %vm2173, %v2137, %v2188
    %v2190 = vsel %vm2175, %v2151, %v2189
    %v2191 = vsel %vm2163, %v2068, %v2054
    %v2192 = vsel %vm2165, %v2082, %v2191
    %v2193 = vsel %vm2167, %v2096, %v2192
    %v2194 = vsel %vm2169, %v2110, %v2193
    %v2195 = vsel %vm2171, %v2124, %v2194
    %v2196 = vsel %vm2173, %v2138, %v2195
    %v2197 = vsel %vm2175, %v2152, %v2196
    %v2198 = vsel %vm2163, %v2069, %v2055
    %v2199 = vsel %vm2165, %v2083, %v2198
    %v2200 = vsel %vm2167, %v2097, %v2199
    %v2201 = vsel %vm2169, %v2111, %v2200
    %v2202 = vsel %vm2171, %v2125, %v2201
    %v2203 = vsel %vm2173, %v2139, %v2202
    %v2204 = vsel %vm2175, %v2153, %v2203
    %v2205 = vsel %vm2163, %v2070, %v2056
    %v2206 = vsel %vm2165, %v2084, %v2205
    %v2207 = vsel %vm2167, %v2098, %v2206
    %v2208 = vsel %vm2169, %v2112, %v2207
    %v2209 = vsel %vm2171, %v2126, %v2208
    %v2210 = vsel %vm2173, %v2140, %v2209
    %v2211 = vsel %vm2175, %v2154, %v2210
    %v2212 = vsel %vm2163, %v2071, %v2057
    %v2213 = vsel %vm2165, %v2085, %v2212
    %v2214 = vsel %vm2167, %v2099, %v2213
    %v2215 = vsel %vm2169, %v2113, %v2214
    %v2216 = vsel %vm2171, %v2127, %v2215
    %v2217 = vsel %vm2173, %v2141, %v2216
    %v2218 = vsel %vm2175, %v2155, %v2217
    %v2219 = vsel %vm2163, %v2072, %v2058
    %v2220 = vsel %vm2165, %v2086, %v2219
    %v2221 = vsel %vm2167, %v2100, %v2220
    %v2222 = vsel %vm2169, %v2114, %v2221
    %v2223 = vsel %vm2171, %v2128, %v2222
    %v2224 = vsel %vm2173, %v2142, %v2223
    %v2225 = vsel %vm2175, %v2156, %v2224
    %v2226 = vsel %vm2163, %v2073, %v2059
    %v2227 = vsel %vm2165, %v2087, %v2226
    %v2228 = vsel %vm2167, %v2101, %v2227
    %v2229 = vsel %vm2169, %v2115, %v2228
    %v2230 = vsel %vm2171, %v2129, %v2229
    %v2231 = vsel %vm2173, %v2143, %v2230
    %v2232 = vsel %vm2175, %v2157, %v2231
    %v2233 = vsel %vm2163, %v2074, %v2060
    %v2234 = vsel %vm2165, %v2088, %v2233
    %v2235 = vsel %vm2167, %v2102, %v2234
    %v2236 = vsel %vm2169, %v2116, %v2235
    %v2237 = vsel %vm2171, %v2130, %v2236
    %v2238 = vsel %vm2173, %v2144, %v2237
    %v2239 = vsel %vm2175, %v2158, %v2238
    %v2240 = vsel %vm2163, %v2075, %v2061
    %v2241 = vsel %vm2165, %v2089, %v2240
    %v2242 = vsel %vm2167, %v2103, %v2241
    %v2243 = vsel %vm2169, %v2117, %v2242
    %v2244 = vsel %vm2171, %v2131, %v2243
    %v2245 = vsel %vm2173, %v2145, %v2244
    %v2246 = vsel %vm2175, %v2159, %v2245
    %v2247 = vsel %vm2163, %v2076, %v2062
    %v2248 = vsel %vm2165, %v2090, %v2247
    %v2249 = vsel %vm2167, %v2104, %v2248
    %v2250 = vsel %vm2169, %v2118, %v2249
    %v2251 = vsel %vm2171, %v2132, %v2250
    %v2252 = vsel %vm2173, %v2146, %v2251
    %v2253 = vsel %vm2175, %v2160, %v2252
    %v2254 = vsel %vm2163, %v2077, %v2063
    %v2255 = vsel %vm2165, %v2091, %v2254
    %v2256 = vsel %vm2167, %v2105, %v2255
    %v2257 = vsel %vm2169, %v2119, %v2256
    %v2258 = vsel %vm2171, %v2133, %v2257
    %v2259 = vsel %vm2173, %v2147, %v2258
    %v2260 = vsel %vm2175, %v2161, %v2259
    %v2261 = vsel %vm2163, %v2078, %v2064
    %v2262 = vsel %vm2165, %v2092, %v2261
    %v2263 = vsel %vm2167, %v2106, %v2262
    %v2264 = vsel %vm2169, %v2120, %v2263
    %v2265 = vsel %vm2171, %v2134, %v2264
    %v2266 = vsel %vm2173, %v2148, %v2265
    %v2267 = vsel %vm2175, %v2162, %v2266
    %v2268 = vpack.c.b16 %v2176, %v2176
    %v2269 = vpack.c.b16 %v2183, %v2183
    %v2270 = vpack.c.b16 %v2190, %v2190
    %v2271 = vpack.c.b16 %v2197, %v2197
    %v2272 = vpack.c.b16 %v2204, %v2204
    %v2273 = vpack.c.b16 %v2211, %v2211
    %v2274 = vpack.c.b16 %v2218, %v2218
    %v2275 = vpack.c.b16 %v2225, %v2225
    %v2276 = vpack.c.b16 %v2232, %v2232
    %v2277 = vpack.c.b16 %v2239, %v2239
    %v2278 = vpack.c.b16 %v2246, %v2246
    %v2279 = vpack.c.b16 %v2253, %v2253
    %v2280 = vpack.c.b16 %v2260, %v2260
    %v2281 = vpack.c.b16 %v2267, %v2267
    %v2744 = vunpack.c.l.b16 %v1481
    %v2745 = vunpack.c.h.b16 %v1481
    %v2746 = vunpack.c.l.b16 %v1482
    %v2747 = vunpack.c.h.b16 %v1482
    %v2748 = vunpack.c.l.b16 %v1483
    %v2749 = vunpack.c.h.b16 %v1483
    %v2750 = vunpack.c.l.b16 %v1484
    %v2751 = vunpack.c.h.b16 %v1484
    %v2752 = vunpack.c.l.b16 %v1485
    %v2753 = vunpack.c.h.b16 %v1485
    %v2754 = vunpack.c.l.b16 %v1486
    %v2755 = vunpack.c.h.b16 %v1486
    %v2756 = vunpack.c.l.b16 %v1487
    %v2757 = vunpack.c.h.b16 %v1487
    %v2758 = vunpack.c.l.b16 %v1488
    %v2759 = vunpack.c.h.b16 %v1488
    %v2760 = vunpack.c.l.b16 %v1489
    %v2761 = vunpack.c.h.b16 %v1489
    %v2762 = vunpack.c.l.b16 %v1490
    %v2763 = vunpack.c.h.b16 %v1490
    %v2764 = vunpack.c.l.b16 %v1491
    %v2765 = vunpack.c.h.b16 %v1491
    %v2766 = vunpack.c.l.b16 %v1492
    %v2767 = vunpack.c.h.b16 %v1492
    %v2768 = vunpack.c.l.b16 %v1493
    %v2769 = vunpack.c.h.b16 %v1493
    %v2770 = vunpack.c.l.b16 %v1494
    %v2771 = vunpack.c.h.b16 %v1494
    %v2772 = vunpack.c.l.b16 %v1495
    %v2773 = vunpack.c.h.b16 %v1495
    %v2774 = vunpack.c.l.b16 %v1496
    %v2775 = vunpack.c.h.b16 %v1496
    %v2776 = vunpack.c.l.b16 %v1497
    %v2777 = vunpack.c.h.b16 %v1497
    %v2778 = vunpack.c.l.b16 %v1498
    %v2779 = vunpack.c.h.b16 %v1498
    %v2780 = vunpack.c.l.b16 %v1499
    %v2781 = vunpack.c.h.b16 %v1499
    %v2782 = vunpack.c.l.b16 %v1500
    %v2783 = vunpack.c.h.b16 %v1500
    %v2784 = vunpack.c.l.b16 %v1501
    %v2785 = vunpack.c.h.b16 %v1501
    %v2786 = vunpack.c.l.b16 %v1502
    %v2787 = vunpack.c.h.b16 %v1502
    %v2788 = vunpack.c.l.b16 %v1503
    %v2789 = vunpack.c.h.b16 %v1503
    %v2790 = vunpack.c.l.b16 %v1504
    %v2791 = vunpack.c.h.b16 %v1504
    %v2792 = vunpack.c.l.b16 %v1505
    %v2793 = vunpack.c.h.b16 %v1505
    %v2794 = vunpack.c.l.b16 %v1506
    %v2795 = vunpack.c.h.b16 %v1506
    %v2796 = vunpack.c.l.b16 %v1507
    %v2797 = vunpack.c.h.b16 %v1507
    %v2798 = vunpack.c.l.b16 %v1508
    %v2799 = vunpack.c.h.b16 %v1508
    %v2800 = vunpack.c.l.b16 %v1509
    %v2801 = vunpack.c.h.b16 %v1509
    %v2802 = vunpack.c.l.b16 %v1510
    %v2803 = vunpack.c.h.b16 %v1510
    %v2804 = vunpack.c.l.b16 %v1511
    %v2805 = vunpack.c.h.b16 %v1511
    %v2806 = vunpack.c.l.b16 %v1512
    %v2807 = vunpack.c.h.b16 %v1512
    %v2808 = vunpack.c.l.b16 %v1513
    %v2809 = vunpack.c.h.b16 %v1513
    %v2810 = vunpack.c.l.b16 %v1514
    %v2811 = vunpack.c.h.b16 %v1514
    %v2812 = vunpack.c.l.b16 %v1515
    %v2813 = vunpack.c.h.b16 %v1515
    %v2814 = vunpack.c.l.b16 %v1516
    %v2815 = vunpack.c.h.b16 %v1516
    %v2816 = vunpack.c.l.b16 %v1517
    %v2817 = vunpack.c.h.b16 %v1517
    %v2818 = vunpack.c.l.b16 %v1518
    %v2819 = vunpack.c.h.b16 %v1518
    %v2820 = vunpack.c.l.b16 %v1519
    %v2821 = vunpack.c.h.b16 %v1519
    %v2822 = vunpack.c.l.b16 %v1520
    %v2823 = vunpack.c.h.b16 %v1520
    %v2824 = vunpack.c.l.b16 %v1521
    %v2825 = vunpack.c.h.b16 %v1521
    %v2826 = vunpack.c.l.b16 %v1522
    %v2827 = vunpack.c.h.b16 %v1522
    %v2828 = vunpack.c.l.b16 %v1523
    %v2829 = vunpack.c.h.b16 %v1523
    %v2830 = vunpack.c.l.b16 %v1524
    %v2831 = vunpack.c.h.b16 %v1524
    %v2832 = vunpack.c.l.b16 %v1525
    %v2833 = vunpack.c.h.b16 %v1525
    %v2834 = vunpack.c.l.b16 %v1526
    %v2835 = vunpack.c.h.b16 %v1526
    %v2836 = vunpack.c.l.b16 %v1527
    %v2837 = vunpack.c.h.b16 %v1527
    %v2838 = vunpack.c.l.b16 %v1528
    %v2839 = vunpack.c.h.b16 %v1528
    %v2840 = vunpack.c.l.b16 %v1529
    %v2841 = vunpack.c.h.b16 %v1529
    %v2842 = vunpack.c.l.b16 %v1530
    %v2843 = vunpack.c.h.b16 %v1530
    %v2844 = vunpack.c.l.b16 %v1531
    %v2845 = vunpack.c.h.b16 %v1531
    %v2846 = vunpack.c.l.b16 %v1532
    %v2847 = vunpack.c.h.b16 %v1532
    %v2848 = vunpack.c.l.b16 %v1533
    %v2849 = vunpack.c.h.b16 %v1533
    %v2850 = vunpack.c.l.b16 %v1534
    %v2851 = vunpack.c.h.b16 %v1534
    %v2852 = vunpack.c.l.b16 %v1535
    %v2853 = vunpack.c.h.b16 %v1535
    %v2854 = vunpack.c.l.b16 %v1536
    %v2855 = vunpack.c.h.b16 %v1536
    %v2856 = vunpack.c.l.b16 %v1537
    %v2857 = vunpack.c.h.b16 %v1537
    %v2858 = vunpack.c.l.b16 %v1538
    %v2859 = vunpack.c.h.b16 %v1538
    %v2860 = vunpack.c.l.b16 %v1539
    %v2861 = vunpack.c.h.b16 %v1539
    %v2862 = vunpack.c.l.b16 %v1540
    %v2863 = vunpack.c.h.b16 %v1540
    %v2864 = vunpack.c.l.b16 %v1541
    %v2865 = vunpack.c.h.b16 %v1541
    %v2866 = vunpack.c.l.b16 %v1542
    %v2867 = vunpack.c.h.b16 %v1542
    %v2868 = vunpack.c.l.b16 %v1543
    %v2869 = vunpack.c.h.b16 %v1543
    %v2870 = vunpack.c.l.b16 %v1544
    %v2871 = vunpack.c.h.b16 %v1544
    %v2872 = vunpack.c.l.b16 %v1545
    %v2873 = vunpack.c.h.b16 %v1545
    %v2874 = vunpack.c.l.b16 %v1546
    %v2875 = vunpack.c.h.b16 %v1546
    %v2876 = vunpack.c.l.b16 %v1547
    %v2877 = vunpack.c.h.b16 %v1547
    %v2878 = vunpack.c.l.b16 %v1548
    %v2879 = vunpack.c.h.b16 %v1548
    %v2880 = vunpack.c.l.b16 %v1549
    %v2881 = vunpack.c.h.b16 %v1549
    %v2882 = vunpack.c.l.b16 %v1550
    %v2883 = vunpack.c.h.b16 %v1550
    %v2884 = vunpack.c.l.b16 %v1551
    %v2885 = vunpack.c.h.b16 %v1551
    %v2886 = vunpack.c.l.b16 %v1552
    %v2887 = vunpack.c.h.b16 %v1552
    %v2888 = vunpack.c.l.b16 %v1553
    %v2889 = vunpack.c.h.b16 %v1553
    %v2890 = vunpack.c.l.b16 %v1554
    %v2891 = vunpack.c.h.b16 %v1554
    %v2892 = vunpack.c.l.b16 %v1555
    %v2893 = vunpack.c.h.b16 %v1555
    %v2894 = vunpack.c.l.b16 %v1556
    %v2895 = vunpack.c.h.b16 %v1556
    %v2896 = vunpack.c.l.b16 %v1557
    %v2897 = vunpack.c.h.b16 %v1557
    %v2898 = vunpack.c.l.b16 %v1558
    %v2899 = vunpack.c.h.b16 %v1558
    %v2900 = vunpack.c.l.b16 %v1559
    %v2901 = vunpack.c.h.b16 %v1559
    %v2902 = vunpack.c.l.b16 %v1560
    %v2903 = vunpack.c.h.b16 %v1560
    %v2904 = vunpack.c.l.b16 %v1561
    %v2905 = vunpack.c.h.b16 %v1561
    %v2906 = vunpack.c.l.b16 %v1562
    %v2907 = vunpack.c.h.b16 %v1562
    %v2908 = vunpack.c.l.b16 %v1563
    %v2909 = vunpack.c.h.b16 %v1563
    %v2910 = vunpack.c.l.b16 %v1564
    %v2911 = vunpack.c.h.b16 %v1564
    %v2912 = vunpack.c.l.b16 %v1565
    %v2913 = vunpack.c.h.b16 %v1565
    %v2914 = vunpack.c.l.b16 %v1566
    %v2915 = vunpack.c.h.b16 %v1566
    %v2916 = vunpack.c.l.b16 %v1567
    %v2917 = vunpack.c.h.b16 %v1567
    %v2918 = vunpack.c.l.b16 %v1568
    %v2919 = vunpack.c.h.b16 %v1568
    %v2920 = vunpack.c.l.b16 %v1569
    %v2921 = vunpack.c.h.b16 %v1569
    %v2922 = vunpack.c.l.b16 %v1570
    %v2923 = vunpack.c.h.b16 %v1570
    %v2924 = vunpack.c.l.b16 %v1571
    %v2925 = vunpack.c.h.b16 %v1571
    %v2926 = vunpack.c.l.b16 %v1572
    %v2927 = vunpack.c.h.b16 %v1572
    %v2928 = vunpack.c.l.b16 %v1573
    %v2929 = vunpack.c.h.b16 %v1573
    %v2930 = vunpack.c.l.b16 %v1574
    %v2931 = vunpack.c.h.b16 %v1574
    %v2932 = vunpack.c.l.b16 %v1575
    %v2933 = vunpack.c.h.b16 %v1575
    %v2934 = vunpack.c.l.b16 %v1576
    %v2935 = vunpack.c.h.b16 %v1576
    %v2936 = vunpack.c.l.b16 %v1577
    %v2937 = vunpack.c.h.b16 %v1577
    %v2938 = vunpack.c.l.b16 %v1578
    %v2939 = vunpack.c.h.b16 %v1578
    %v2940 = vunpack.c.l.b16 %v1579
    %v2941 = vunpack.c.h.b16 %v1579
    %v2942 = vunpack.c.l.b16 %v1580
    %v2943 = vunpack.c.h.b16 %v1580
    %v2944 = vunpack.c.l.b16 %v1581
    %v2945 = vunpack.c.h.b16 %v1581
    %v2946 = vunpack.c.l.b16 %v1582
    %v2947 = vunpack.c.h.b16 %v1582
    %v2948 = vunpack.c.l.b16 %v1583
    %v2949 = vunpack.c.h.b16 %v1583
    %v2950 = vunpack.c.l.b16 %v1584
    %v2951 = vunpack.c.h.b16 %v1584
    %v2952 = vunpack.c.l.b16 %v1585
    %v2953 = vunpack.c.h.b16 %v1585
    %v2954 = vunpack.c.l.b16 %v1586
    %v2955 = vunpack.c.h.b16 %v1586
    %v2956 = vunpack.c.l.b16 %v1587
    %v2957 = vunpack.c.h.b16 %v1587
    %v2958 = vunpack.c.l.b16 %v1588
    %v2959 = vunpack.c.h.b16 %v1588
    %v2960 = vunpack.c.l.b16 %v1589
    %v2961 = vunpack.c.h.b16 %v1589
    %v2962 = vunpack.c.l.b16 %v1590
    %v2963 = vunpack.c.h.b16 %v1590
    %v2964 = vunpack.c.l.b16 %v1591
    %v2965 = vunpack.c.h.b16 %v1591
    %v2966 = vunpack.c.l.b16 %v1592
    %v2967 = vunpack.c.h.b16 %v1592
    %v2968 = vunpack.c.l.b16 %v1593
    %v2969 = vunpack.c.h.b16 %v1593
    %v2970 = vunpack.c.l.b16 %v1594
    %v2971 = vunpack.c.h.b16 %v1594
    %v2972 = vunpack.c.l.b16 %v1595
    %v2973 = vunpack.c.h.b16 %v1595
    %v2974 = vunpack.c.l.b16 %v1596
    %v2975 = vunpack.c.h.b16 %v1596
    %v2976 = vunpack.c.l.b16 %v1597
    %v2977 = vunpack.c.h.b16 %v1597
    %v2978 = vunpack.c.l.b16 %v1598
    %v2979 = vunpack.c.h.b16 %v1598
    %v2980 = vunpack.c.l.b16 %v1599
    %v2981 = vunpack.c.h.b16 %v1599
    %v2982 = vunpack.c.l.b16 %v1600
    %v2983 = vunpack.c.h.b16 %v1600
    %v2984 = vunpack.c.l.b16 %v1601
    %v2985 = vunpack.c.h.b16 %v1601
    %v2986 = vunpack.c.l.b16 %v1602
    %v2987 = vunpack.c.h.b16 %v1602
    %v2988 = vunpack.c.l.b16 %v1603
    %v2989 = vunpack.c.h.b16 %v1603
    %v2990 = vunpack.c.l.b16 %v1604
    %v2991 = vunpack.c.h.b16 %v1604
    %v2992 = vunpack.c.l.b16 %v1605
    %v2993 = vunpack.c.h.b16 %v1605
    %v2994 = vunpack.c.l.b16 %v1606
    %v2995 = vunpack.c.h.b16 %v1606
    %v2996 = vunpack.c.l.b16 %v1607
    %v2997 = vunpack.c.h.b16 %v1607
    %v2998 = vunpack.c.l.b16 %v1608
    %v2999 = vunpack.c.h.b16 %v1608
    %v3000 = vunpack.c.l.b16 %v1609
    %v3001 = vunpack.c.h.b16 %v1609
    %v3002 = vunpack.c.l.b16 %v1610
    %v3003 = vunpack.c.h.b16 %v1610
    %v3004 = vunpack.c.l.b16 %v1611
    %v3005 = vunpack.c.h.b16 %v1611
    %v3006 = vunpack.c.l.b16 %v1612
    %v3007 = vunpack.c.h.b16 %v1612
    %v3008 = vunpack.c.l.b16 %v1613
    %v3009 = vunpack.c.h.b16 %v1613
    %v3010 = vunpack.c.l.b16 %v1614
    %v3011 = vunpack.c.h.b16 %v1614
    %v3012 = vunpack.c.l.b16 %v1615
    %v3013 = vunpack.c.h.b16 %v1615
    %v3014 = vunpack.c.l.b16 %v1616
    %v3015 = vunpack.c.h.b16 %v1616
    %v3016 = vunpack.c.l.b16 %v1617
    %v3017 = vunpack.c.h.b16 %v1617
    %v3018 = vunpack.c.l.b16 %v1618
    %v3019 = vunpack.c.h.b16 %v1618
    %v3020 = vunpack.c.l.b16 %v1619
    %v3021 = vunpack.c.h.b16 %v1619
    %v3022 = vunpack.c.l.b16 %v1620
    %v3023 = vunpack.c.h.b16 %v1620
    %v3024 = vunpack.c.l.b16 %v1621
    %v3025 = vunpack.c.h.b16 %v1621
    %v3026 = vunpack.c.l.b16 %v1622
    %v3027 = vunpack.c.h.b16 %v1622
    %v3028 = vunpack.c.l.b16 %v1623
    %v3029 = vunpack.c.h.b16 %v1623
    %v3030 = vunpack.c.l.b16 %v1624
    %v3031 = vunpack.c.h.b16 %v1624
    %v3032 = vunpack.c.l.b16 %v1625
    %v3033 = vunpack.c.h.b16 %v1625
    %v3034 = vunpack.c.l.b16 %v1626
    %v3035 = vunpack.c.h.b16 %v1626
    %v3036 = vunpack.c.l.b16 %v1627
    %v3037 = vunpack.c.h.b16 %v1627
    %v3038 = vunpack.c.l.b16 %v1628
    %v3039 = vunpack.c.h.b16 %v1628
    %v3040 = vunpack.c.l.b16 %v1629
    %v3041 = vunpack.c.h.b16 %v1629
    %v3042 = vunpack.c.l.b16 %v1630
    %v3043 = vunpack.c.h.b16 %v1630
    %v3044 = vunpack.c.l.b16 %v1631
    %v3045 = vunpack.c.h.b16 %v1631
    %v3046 = vunpack.c.l.b16 %v1632
    %v3047 = vunpack.c.h.b16 %v1632
    %v3048 = vunpack.c.l.b16 %v1633
    %v3049 = vunpack.c.h.b16 %v1633
    %v3050 = vunpack.c.l.b16 %v1634
    %v3051 = vunpack.c.h.b16 %v1634
    %v3052 = vunpack.c.l.b16 %v1635
    %v3053 = vunpack.c.h.b16 %v1635
    %v3054 = vunpack.c.l.b16 %v1636
    %v3055 = vunpack.c.h.b16 %v1636
    %v3056 = vunpack.c.l.b16 %v1637
    %v3057 = vunpack.c.h.b16 %v1637
    %v3058 = vunpack.c.l.b16 %v1638
    %v3059 = vunpack.c.h.b16 %v1638
    %v3060 = vunpack.c.l.b16 %v1639
    %v3061 = vunpack.c.h.b16 %v1639
    %v3062 = vunpack.c.l.b16 %v1640
    %v3063 = vunpack.c.h.b16 %v1640
    %v3064 = vunpack.c.l.b16 %v1641
    %v3065 = vunpack.c.h.b16 %v1641
    %v3066 = vunpack.c.l.b16 %v1642
    %v3067 = vunpack.c.h.b16 %v1642
    %v3068 = vunpack.c.l.b16 %v1643
    %v3069 = vunpack.c.h.b16 %v1643
    %v3070 = vunpack.c.l.b16 %v1644
    %v3071 = vunpack.c.h.b16 %v1644
    %v3072 = vunpack.c.l.b16 %v1645
    %v3073 = vunpack.c.h.b16 %v1645
    %v3074 = vunpack.c.l.b16 %v1646
    %v3075 = vunpack.c.h.b16 %v1646
    %v3076 = vunpack.c.l.b16 %v1647
    %v3077 = vunpack.c.h.b16 %v1647
    %v3078 = vunpack.c.l.b16 %v1648
    %v3079 = vunpack.c.h.b16 %v1648
    %v3080 = vunpack.c.l.b16 %v1649
    %v3081 = vunpack.c.h.b16 %v1649
    %v3082 = vunpack.c.l.b16 %v1650
    %v3083 = vunpack.c.h.b16 %v1650
    %v3084 = vunpack.c.l.b16 %v1651
    %v3085 = vunpack.c.h.b16 %v1651
    %v3086 = vunpack.c.l.b16 %v1652
    %v3087 = vunpack.c.h.b16 %v1652
    %v3088 = vunpack.c.l.b16 %v1653
    %v3089 = vunpack.c.h.b16 %v1653
    %v3090 = vunpack.c.l.b16 %v1654
    %v3091 = vunpack.c.h.b16 %v1654
    %v3092 = vunpack.c.l.b16 %v1655
    %v3093 = vunpack.c.h.b16 %v1655
    %v3094 = vunpack.c.l.b16 %v1656
    %v3095 = vunpack.c.h.b16 %v1656
    %v3096 = vunpack.c.l.b16 %v1657
    %v3097 = vunpack.c.h.b16 %v1657
    %v3098 = vunpack.c.l.b16 %v1658
    %v3099 = vunpack.c.h.b16 %v1658
    %v3100 = vunpack.c.l.b16 %v1659
    %v3101 = vunpack.c.h.b16 %v1659
    %v3102 = vunpack.c.l.b16 %v1660
    %v3103 = vunpack.c.h.b16 %v1660
    %v3104 = vunpack.c.l.b16 %v1661
    %v3105 = vunpack.c.h.b16 %v1661
    %v3106 = vunpack.c.l.b16 %v1662
    %v3107 = vunpack.c.h.b16 %v1662
    %v3108 = vunpack.c.l.b16 %v1663
    %v3109 = vunpack.c.h.b16 %v1663
    %v3110 = vunpack.c.l.b16 %v1664
    %v3111 = vunpack.c.h.b16 %v1664
    %v3112 = vunpack.c.l.b16 %v1665
    %v3113 = vunpack.c.h.b16 %v1665
    %v3114 = vunpack.c.l.b16 %v1666
    %v3115 = vunpack.c.h.b16 %v1666
    %v3116 = vunpack.c.l.b16 %v1667
    %v3117 = vunpack.c.h.b16 %v1667
    %v3118 = vunpack.c.l.b16 %v1668
    %v3119 = vunpack.c.h.b16 %v1668
    %v3120 = vunpack.c.l.b16 %v1669
    %v3121 = vunpack.c.h.b16 %v1669
    %v3122 = vunpack.c.l.b16 %v1670
    %v3123 = vunpack.c.h.b16 %v1670
    %v3124 = vunpack.c.l.b16 %v1671
    %v3125 = vunpack.c.h.b16 %v1671
    %v3126 = vunpack.c.l.b16 %v1672
    %v3127 = vunpack.c.h.b16 %v1672
    %v3128 = vunpack.c.l.b16 %v1673
    %v3129 = vunpack.c.h.b16 %v1673
    %v3130 = vunpack.c.l.b16 %v1674
    %v3131 = vunpack.c.h.b16 %v1674
    %v3132 = vunpack.c.l.b16 %v1675
    %v3133 = vunpack.c.h.b16 %v1675
    %v3134 = vunpack.c.l.b16 %v1676
    %v3135 = vunpack.c.h.b16 %v1676
    %v3136 = vunpack.c.l.b16 %v1677
    %v3137 = vunpack.c.h.b16 %v1677
    %v3138 = vunpack.c.l.b16 %v1678
    %v3139 = vunpack.c.h.b16 %v1678
    %v3140 = vunpack.c.l.b16 %v1679
    %v3141 = vunpack.c.h.b16 %v1679
    %v3142 = vunpack.c.l.b16 %v1680
    %v3143 = vunpack.c.h.b16 %v1680
    %v3144 = vunpack.c.l.b16 %v1681
    %v3145 = vunpack.c.h.b16 %v1681
    %v3146 = vunpack.c.l.b16 %v1682
    %v3147 = vunpack.c.h.b16 %v1682
    %v3148 = vunpack.c.l.b16 %v1683
    %v3149 = vunpack.c.h.b16 %v1683
    %v3150 = vunpack.c.l.b16 %v1684
    %v3151 = vunpack.c.h.b16 %v1684
    %v3152 = vunpack.c.l.b16 %v1685
    %v3153 = vunpack.c.h.b16 %v1685
    %v3154 = vunpack.c.l.b16 %v1686
    %v3155 = vunpack.c.h.b16 %v1686
    %v3156 = vunpack.c.l.b16 %v1687
    %v3157 = vunpack.c.h.b16 %v1687
    %v3158 = vunpack.c.l.b16 %v1688
    %v3159 = vunpack.c.h.b16 %v1688
    %v3160 = vunpack.c.l.b16 %v1689
    %v3161 = vunpack.c.h.b16 %v1689
    %v3162 = vunpack.c.l.b16 %v1690
    %v3163 = vunpack.c.h.b16 %v1690
    %v3164 = vunpack.c.l.b16 %v1691
    %v3165 = vunpack.c.h.b16 %v1691
    %v3166 = vunpack.c.l.b16 %v1692
    %v3167 = vunpack.c.h.b16 %v1692
    %v3168 = vunpack.c.l.b16 %v1693
    %v3169 = vunpack.c.h.b16 %v1693
    %v3170 = vunpack.c.l.b16 %v1694
    %v3171 = vunpack.c.h.b16 %v1694
    %v3172 = vunpack.c.l.b16 %v1695
    %v3173 = vunpack.c.h.b16 %v1695
    %v3174 = vunpack.c.l.b16 %v1696
    %v3175 = vunpack.c.h.b16 %v1696
    %v3176 = vunpack.c.l.b16 %v1697
    %v3177 = vunpack.c.h.b16 %v1697
    %v3178 = vunpack.c.l.b16 %v1698
    %v3179 = vunpack.c.h.b16 %v1698
    %v3180 = vunpack.c.l.b16 %v1699
    %v3181 = vunpack.c.h.b16 %v1699
    %v3182 = vunpack.c.l.b16 %v1700
    %v3183 = vunpack.c.h.b16 %v1700
    %v3184 = vunpack.c.l.b16 %v1701
    %v3185 = vunpack.c.h.b16 %v1701
    %v3186 = vunpack.c.l.b16 %v1702
    %v3187 = vunpack.c.h.b16 %v1702
    %v3188 = vunpack.c.l.b16 %v1703
    %v3189 = vunpack.c.h.b16 %v1703
    %v3190 = vunpack.c.l.b16 %v1704
    %v3191 = vunpack.c.h.b16 %v1704
    %v3192 = vunpack.c.l.b16 %v1705
    %v3193 = vunpack.c.h.b16 %v1705
    %v3194 = vunpack.c.l.b16 %v1706
    %v3195 = vunpack.c.h.b16 %v1706
    %v3196 = vunpack.c.l.b16 %v1707
    %v3197 = vunpack.c.h.b16 %v1707
    %v3198 = vunpack.c.l.b16 %v1708
    %v3199 = vunpack.c.h.b16 %v1708
    %v3200 = vunpack.c.l.b16 %v1709
    %v3201 = vunpack.c.h.b16 %v1709
    %v3202 = vunpack.c.l.b16 %v1710
    %v3203 = vunpack.c.h.b16 %v1710
    %v3204 = vunpack.c.l.b16 %v1711
    %v3205 = vunpack.c.h.b16 %v1711
    %v3206 = vunpack.c.l.b16 %v1712
    %v3207 = vunpack.c.h.b16 %v1712
    %v3208 = vunpack.c.l.b16 %v1713
    %v3209 = vunpack.c.h.b16 %v1713
    %v3210 = vunpack.c.l.b16 %v1714
    %v3211 = vunpack.c.h.b16 %v1714
    %v3212 = vunpack.c.l.b16 %v1715
    %v3213 = vunpack.c.h.b16 %v1715
    %v3214 = vunpack.c.l.b16 %v1716
    %v3215 = vunpack.c.h.b16 %v1716
    %v3216 = vunpack.c.l.b16 %v1717
    %v3217 = vunpack.c.h.b16 %v1717
    %v3218 = vunpack.c.l.b16 %v1718
    %v3219 = vunpack.c.h.b16 %v1718
    %v3220 = vunpack.c.l.b16 %v1719
    %v3221 = vunpack.c.h.b16 %v1719
    %v3222 = vunpack.c.l.b16 %v1720
    %v3223 = vunpack.c.h.b16 %v1720
    %v3224 = vunpack.c.l.b16 %v1721
    %v3225 = vunpack.c.h.b16 %v1721
    %v3226 = vunpack.c.l.b16 %v1722
    %v3227 = vunpack.c.h.b16 %v1722
    %v3228 = vunpack.c.l.b16 %v1723
    %v3229 = vunpack.c.h.b16 %v1723
    %v3230 = vunpack.c.l.b16 %v1724
    %v3231 = vunpack.c.h.b16 %v1724
    %v3232 = vunpack.c.l.b16 %v1725
    %v3233 = vunpack.c.h.b16 %v1725
    %v3234 = vunpack.c.l.b16 %v1726
    %v3235 = vunpack.c.h.b16 %v1726
    %v3236 = vunpack.c.l.b16 %v1727
    %v3237 = vunpack.c.h.b16 %v1727
    %v3238 = vunpack.c.l.b16 %v1728
    %v3239 = vunpack.c.h.b16 %v1728
    %v3240 = vunpack.c.l.b16 %v1729
    %v3241 = vunpack.c.h.b16 %v1729
    %v3242 = vunpack.c.l.b16 %v1730
    %v3243 = vunpack.c.h.b16 %v1730
    %v3244 = vunpack.c.l.b16 %v1731
    %v3245 = vunpack.c.h.b16 %v1731
    %v3246 = vunpack.c.l.b16 %v1732
    %v3247 = vunpack.c.h.b16 %v1732
    %v3248 = vunpack.c.l.b16 %v1733
    %v3249 = vunpack.c.h.b16 %v1733
    %v3250 = vunpack.c.l.b16 %v1734
    %v3251 = vunpack.c.h.b16 %v1734
    %v3252 = vunpack.c.l.b16 %v1735
    %v3253 = vunpack.c.h.b16 %v1735
    %v3254 = vunpack.c.l.b16 %v1736
    %v3255 = vunpack.c.h.b16 %v1736
    %v3256 = vunpack.c.l.b16 %v1737
    %v3257 = vunpack.c.h.b16 %v1737
    %v3258 = vunpack.c.l.b16 %v1738
    %v3259 = vunpack.c.h.b16 %v1738
    %v3260 = vunpack.c.l.b16 %v1739
    %v3261 = vunpack.c.h.b16 %v1739
    %v3262 = vunpack.c.l.b16 %v1740
    %v3263 = vunpack.c.h.b16 %v1740
    %v3264 = vunpack.c.l.b16 %v1741
    %v3265 = vunpack.c.h.b16 %v1741
    %v3266 = vunpack.c.l.b16 %v1742
    %v3267 = vunpack.c.h.b16 %v1742
    %v3268 = vunpack.c.l.b16 %v1743
    %v3269 = vunpack.c.h.b16 %v1743
    %v3270 = vunpack.c.l.b16 %v1744
    %v3271 = vunpack.c.h.b16 %v1744
    %v3272 = vunpack.c.l.b16 %v1745
    %v3273 = vunpack.c.h.b16 %v1745
    %v3274 = vunpack.c.l.b16 %v1746
    %v3275 = vunpack.c.h.b16 %v1746
    %v3276 = vunpack.c.l.b16 %v1747
    %v3277 = vunpack.c.h.b16 %v1747
    %v3278 = vunpack.c.l.b16 %v1748
    %v3279 = vunpack.c.h.b16 %v1748
    %v3280 = vunpack.c.l.b16 %v1749
    %v3281 = vunpack.c.h.b16 %v1749
    %v3282 = vunpack.c.l.b16 %v1750
    %v3283 = vunpack.c.h.b16 %v1750
    %v3284 = vunpack.c.l.b16 %v1751
    %v3285 = vunpack.c.h.b16 %v1751
    %v3286 = vunpack.c.l.b16 %v1752
    %v3287 = vunpack.c.h.b16 %v1752
    %v3288 = vunpack.c.l.b16 %v1753
    %v3289 = vunpack.c.h.b16 %v1753
    %v3290 = vunpack.c.l.b16 %v1754
    %v3291 = vunpack.c.h.b16 %v1754
    %v3292 = vunpack.c.l.b16 %v1755
    %v3293 = vunpack.c.h.b16 %v1755
    %v3294 = vunpack.c.l.b16 %v1756
    %v3295 = vunpack.c.h.b16 %v1756
    %v3296 = vunpack.c.l.b16 %v1757
    %v3297 = vunpack.c.h.b16 %v1757
    %v3298 = vunpack.c.l.b16 %v1758
    %v3299 = vunpack.c.h.b16 %v1758
    %v3300 = vunpack.c.l.b16 %v1759
    %v3301 = vunpack.c.h.b16 %v1759
    %v3302 = vunpack.c.l.b16 %v1760
    %v3303 = vunpack.c.h.b16 %v1760
    %v3304 = vunpack.c.l.b16 %v1761
    %v3305 = vunpack.c.h.b16 %v1761
    %v3306 = vunpack.c.l.b16 %v1762
    %v3307 = vunpack.c.h.b16 %v1762
    %v3308 = vunpack.c.l.b16 %v1763
    %v3309 = vunpack.c.h.b16 %v1763
    %v3310 = vunpack.c.l.b16 %v1764
    %v3311 = vunpack.c.h.b16 %v1764
    %v3312 = vunpack.c.l.b16 %v1765
    %v3313 = vunpack.c.h.b16 %v1765
    %v3314 = vunpack.c.l.b16 %v1766
    %v3315 = vunpack.c.h.b16 %v1766
    %v3316 = vunpack.c.l.b16 %v1767
    %v3317 = vunpack.c.h.b16 %v1767
    %v3318 = vunpack.c.l.b16 %v1768
    %v3319 = vunpack.c.h.b16 %v1768
    %v3320 = vunpack.c.l.b16 %v1769
    %v3321 = vunpack.c.h.b16 %v1769
    %v3322 = vunpack.c.l.b16 %v1770
    %v3323 = vunpack.c.h.b16 %v1770
    %v3324 = vunpack.c.l.b16 %v1771
    %v3325 = vunpack.c.h.b16 %v1771
    %v3326 = vunpack.c.l.b16 %v1772
    %v3327 = vunpack.c.h.b16 %v1772
    %v3328 = vunpack.c.l.b16 %v1773
    %v3329 = vunpack.c.h.b16 %v1773
    %v3330 = vunpack.c.l.b16 %v1774
    %v3331 = vunpack.c.h.b16 %v1774
    %v3332 = vunpack.c.l.b16 %v1775
    %v3333 = vunpack.c.h.b16 %v1775
    %v3334 = vunpack.c.l.b16 %v1776
    %v3335 = vunpack.c.h.b16 %v1776
    %v3336 = vunpack.c.l.b16 %v1777
    %v3337 = vunpack.c.h.b16 %v1777
    %v3338 = vunpack.c.l.b16 %v1778
    %v3339 = vunpack.c.h.b16 %v1778
    %v3340 = vunpack.c.l.b16 %v1779
    %v3341 = vunpack.c.h.b16 %v1779
    %v3342 = vunpack.c.l.b16 %v1780
    %v3343 = vunpack.c.h.b16 %v1780
    %v3344 = vunpack.c.l.b16 %v1781
    %v3345 = vunpack.c.h.b16 %v1781
    %v3346 = vunpack.c.l.b16 %v1782
    %v3347 = vunpack.c.h.b16 %v1782
    %v3348 = vunpack.c.l.b16 %v1783
    %v3349 = vunpack.c.h.b16 %v1783
    %v3350 = vunpack.c.l.b16 %v1784
    %v3351 = vunpack.c.h.b16 %v1784
    %v3352 = vunpack.c.l.b16 %v1785
    %v3353 = vunpack.c.h.b16 %v1785
    %v3354 = vunpack.c.l.b16 %v1786
    %v3355 = vunpack.c.h.b16 %v1786
    %v3356 = vunpack.c.l.b16 %v1787
    %v3357 = vunpack.c.h.b16 %v1787
    %v3358 = vunpack.c.l.b16 %v1788
    %v3359 = vunpack.c.h.b16 %v1788
    %v3360 = vunpack.c.l.b16 %v1789
    %v3361 = vunpack.c.h.b16 %v1789
    %v3362 = vunpack.c.l.b16 %v1790
    %v3363 = vunpack.c.h.b16 %v1790
    %v3364 = vunpack.c.l.b16 %v1791
    %v3365 = vunpack.c.h.b16 %v1791
    %v3366 = vunpack.c.l.b16 %v1792
    %v3367 = vunpack.c.h.b16 %v1792
    %v3368 = vunpack.c.l.b16 %v1793
    %v3369 = vunpack.c.h.b16 %v1793
    %v3370 = vunpack.c.l.b16 %v1794
    %v3371 = vunpack.c.h.b16 %v1794
    %v3372 = vunpack.c.l.b16 %v1795
    %v3373 = vunpack.c.h.b16 %v1795
    %v3374 = vunpack.c.l.b16 %v1796
    %v3375 = vunpack.c.h.b16 %v1796
    %v3376 = vunpack.c.l.b16 %v1797
    %v3377 = vunpack.c.h.b16 %v1797
    %v3378 = vunpack.c.l.b16 %v1798
    %v3379 = vunpack.c.h.b16 %v1798
    %v3380 = vunpack.c.l.b16 %v1799
    %v3381 = vunpack.c.h.b16 %v1799
    %v3382 = vunpack.c.l.b16 %v1800
    %v3383 = vunpack.c.h.b16 %v1800
    %v3384 = vunpack.c.l.b16 %v1801
    %v3385 = vunpack.c.h.b16 %v1801
    %v3386 = vunpack.c.l.b16 %v1802
    %v3387 = vunpack.c.h.b16 %v1802
    %v3388 = vunpack.c.l.b16 %v1803
    %v3389 = vunpack.c.h.b16 %v1803
    %v3390 = vunpack.c.l.b16 %v1804
    %v3391 = vunpack.c.h.b16 %v1804
    %v3392 = vunpack.c.l.b16 %v1805
    %v3393 = vunpack.c.h.b16 %v1805
    %v3394 = vunpack.c.l.b16 %v1806
    %v3395 = vunpack.c.h.b16 %v1806
    %v3396 = vunpack.c.l.b16 %v1807
    %v3397 = vunpack.c.h.b16 %v1807
    %v3398 = vunpack.c.l.b16 %v1808
    %v3399 = vunpack.c.h.b16 %v1808
    %v3400 = vunpack.c.l.b16 %v1809
    %v3401 = vunpack.c.h.b16 %v1809
    %v3402 = vunpack.c.l.b16 %v1810
    %v3403 = vunpack.c.h.b16 %v1810
    %v3404 = vunpack.c.l.b16 %v1811
    %v3405 = vunpack.c.h.b16 %v1811
    %v3406 = vunpack.c.l.b16 %v1812
    %v3407 = vunpack.c.h.b16 %v1812
    %v3408 = vunpack.c.l.b16 %v1813
    %v3409 = vunpack.c.h.b16 %v1813
    %v3410 = vunpack.c.l.b16 %v1814
    %v3411 = vunpack.c.h.b16 %v1814
    %v3412 = vunpack.c.l.b16 %v1815
    %v3413 = vunpack.c.h.b16 %v1815
    %v3414 = vunpack.c.l.b16 %v1816
    %v3415 = vunpack.c.h.b16 %v1816
    %v3416 = vunpack.c.l.b16 %v1817
    %v3417 = vunpack.c.h.b16 %v1817
    %v3418 = vunpack.c.l.b16 %v1818
    %v3419 = vunpack.c.h.b16 %v1818
    %v3420 = vunpack.c.l.b16 %v1819
    %v3421 = vunpack.c.h.b16 %v1819
    %v3422 = vunpack.c.l.b16 %v1820
    %v3423 = vunpack.c.h.b16 %v1820
    %v3424 = vunpack.c.l.b16 %v1821
    %v3425 = vunpack.c.h.b16 %v1821
    %v3426 = vunpack.c.l.b16 %v1822
    %v3427 = vunpack.c.h.b16 %v1822
    %v3428 = vunpack.c.l.b16 %v1823
    %v3429 = vunpack.c.h.b16 %v1823
    %v3430 = vunpack.c.l.b16 %v1824
    %v3431 = vunpack.c.h.b16 %v1824
    %v3432 = vunpack.c.l.b16 %v1825
    %v3433 = vunpack.c.h.b16 %v1825
    %v3434 = vunpack.c.l.b16 %v1826
    %v3435 = vunpack.c.h.b16 %v1826
    %v3436 = vunpack.c.l.b16 %v1827
    %v3437 = vunpack.c.h.b16 %v1827
    %v3438 = vunpack.c.l.b16 %v1828
    %v3439 = vunpack.c.h.b16 %v1828
    %v3440 = vunpack.c.l.b16 %v1829
    %v3441 = vunpack.c.h.b16 %v1829
    %v3442 = vunpack.c.l.b16 %v1830
    %v3443 = vunpack.c.h.b16 %v1830
    %v3444 = vunpack.c.l.b16 %v1831
    %v3445 = vunpack.c.h.b16 %v1831
    %v3446 = vunpack.c.l.b16 %v1832
    %v3447 = vunpack.c.h.b16 %v1832
    %v3448 = vunpack.c.l.b16 %v1833
    %v3449 = vunpack.c.h.b16 %v1833
    %v3450 = vunpack.c.l.b16 %v1834
    %v3451 = vunpack.c.h.b16 %v1834
    %v3452 = vunpack.c.l.b16 %v1835
    %v3453 = vunpack.c.h.b16 %v1835
    %v3454 = vunpack.c.l.b16 %v1836
    %v3455 = vunpack.c.h.b16 %v1836
    %v3456 = vunpack.c.l.b16 %v1837
    %v3457 = vunpack.c.h.b16 %v1837
    %v3458 = vunpack.c.l.b16 %v1838
    %v3459 = vunpack.c.h.b16 %v1838
    %v3460 = vunpack.c.l.b16 %v1839
    %v3461 = vunpack.c.h.b16 %v1839
    %v3462 = vunpack.c.l.b16 %v1840
    %v3463 = vunpack.c.h.b16 %v1840
    %v3464 = vunpack.c.l.b16 %v1841
    %v3465 = vunpack.c.h.b16 %v1841
    %v3466 = vunpack.c.l.b16 %v1842
    %v3467 = vunpack.c.h.b16 %v1842
    %v3468 = vunpack.c.l.b16 %v1843
    %v3469 = vunpack.c.h.b16 %v1843
    %v3470 = vunpack.c.l.b16 %v1844
    %v3471 = vunpack.c.h.b16 %v1844
    %v3472 = vunpack.c.l.b16 %v1845
    %v3473 = vunpack.c.h.b16 %v1845
    %v3474 = vunpack.c.l.b16 %v1846
    %v3475 = vunpack.c.h.b16 %v1846
    %v3476 = vunpack.c.l.b16 %v1847
    %v3477 = vunpack.c.h.b16 %v1847
    %v3478 = vunpack.c.l.b16 %v1848
    %v3479 = vunpack.c.h.b16 %v1848
    %v3480 = vunpack.c.l.b16 %v1849
    %v3481 = vunpack.c.h.b16 %v1849
    %v3482 = vunpack.c.l.b16 %v1850
    %v3483 = vunpack.c.h.b16 %v1850
    %v3484 = vunpack.c.l.b16 %v1851
    %v3485 = vunpack.c.h.b16 %v1851
    %v3486 = vunpack.c.l.b16 %v1852
    %v3487 = vunpack.c.h.b16 %v1852
    %v3488 = vunpack.c.l.b16 %v1853
    %v3489 = vunpack.c.h.b16 %v1853
    %v3490 = vunpack.c.l.b16 %v1854
    %v3491 = vunpack.c.h.b16 %v1854
    %v3492 = vunpack.c.l.b16 %v1855
    %v3493 = vunpack.c.h.b16 %v1855
    %v3494 = vunpack.c.l.b16 %v1856
    %v3495 = vunpack.c.h.b16 %v1856
    %v3496 = vunpack.c.l.b16 %v1857
    %v3497 = vunpack.c.h.b16 %v1857
    %v3498 = vunpack.c.l.b16 %v1858
    %v3499 = vunpack.c.h.b16 %v1858
    %v3500 = vunpack.c.l.b16 %v1859
    %v3501 = vunpack.c.h.b16 %v1859
    %v3502 = vunpack.c.l.b16 %v1860
    %v3503 = vunpack.c.h.b16 %v1860
    %v3504 = vunpack.c.l.b16 %v1861
    %v3505 = vunpack.c.h.b16 %v1861
    %v3506 = vunpack.c.l.b16 %v1862
    %v3507 = vunpack.c.h.b16 %v1862
    %v3508 = vunpack.c.l.b16 %v1863
    %v3509 = vunpack.c.h.b16 %v1863
    %v3510 = vunpack.c.l.b16 %v1864
    %v3511 = vunpack.c.h.b16 %v1864
    %v3512 = vunpack.c.l.b16 %v1865
    %v3513 = vunpack.c.h.b16 %v1865
    %v3514 = vunpack.c.l.b16 %v1866
    %v3515 = vunpack.c.h.b16 %v1866
    %v3516 = vunpack.c.l.b16 %v1867
    %v3517 = vunpack.c.h.b16 %v1867
    %v3518 = vunpack.c.l.b16 %v1868
    %v3519 = vunpack.c.h.b16 %v1868
    %v3520 = vunpack.c.l.b16 %v1869
    %v3521 = vunpack.c.h.b16 %v1869
    %v3522 = vunpack.c.l.b16 %v1870
    %v3523 = vunpack.c.h.b16 %v1870
    %v3524 = vunpack.c.l.b16 %v1871
    %v3525 = vunpack.c.h.b16 %v1871
    %v3526 = vunpack.c.l.b16 %v1872
    %v3527 = vunpack.c.h.b16 %v1872
    %v3528 = vunpack.c.l.b16 %v1873
    %v3529 = vunpack.c.h.b16 %v1873
    %v3530 = vunpack.c.l.b16 %v1874
    %v3531 = vunpack.c.h.b16 %v1874
    %v3532 = vunpack.c.l.b16 %v1875
    %v3533 = vunpack.c.h.b16 %v1875
    %v3534 = vunpack.c.l.b16 %v1876
    %v3535 = vunpack.c.h.b16 %v1876
    %v3536 = vunpack.c.l.b16 %v1877
    %v3537 = vunpack.c.h.b16 %v1877
    %v3538 = vunpack.c.l.b16 %v1878
    %v3539 = vunpack.c.h.b16 %v1878
    %v3540 = vunpack.c.l.b16 %v1879
    %v3541 = vunpack.c.h.b16 %v1879
    %v3542 = vunpack.c.l.b16 %v1880
    %v3543 = vunpack.c.h.b16 %v1880
    %v3544 = vunpack.c.l.b16 %v1881
    %v3545 = vunpack.c.h.b16 %v1881
    %v3546 = vunpack.c.l.b16 %v1882
    %v3547 = vunpack.c.h.b16 %v1882
    %v3548 = vunpack.c.l.b16 %v1883
    %v3549 = vunpack.c.h.b16 %v1883
    %v3550 = vunpack.c.l.b16 %v1884
    %v3551 = vunpack.c.h.b16 %v1884
    %v3552 = vunpack.c.l.b16 %v1885
    %v3553 = vunpack.c.h.b16 %v1885
    %v3554 = vunpack.c.l.b16 %v1886
    %v3555 = vunpack.c.h.b16 %v1886
    %v3556 = vunpack.c.l.b16 %v1887
    %v3557 = vunpack.c.h.b16 %v1887
    %v3558 = vunpack.c.l.b16 %v1888
    %v3559 = vunpack.c.h.b16 %v1888
    %v3560 = vunpack.c.l.b16 %v1889
    %v3561 = vunpack.c.h.b16 %v1889
    %v3562 = vunpack.c.l.b16 %v1890
    %v3563 = vunpack.c.h.b16 %v1890
    %v3564 = vunpack.c.l.b16 %v1891
    %v3565 = vunpack.c.h.b16 %v1891
    %v3566 = vunpack.c.l.b16 %v1892
    %v3567 = vunpack.c.h.b16 %v1892
    %v3568 = vunpack.c.l.b16 %v1893
    %v3569 = vunpack.c.h.b16 %v1893
    %v3570 = vunpack.c.l.b16 %v1894
    %v3571 = vunpack.c.h.b16 %v1894
    %v3572 = vunpack.c.l.b16 %v1895
    %v3573 = vunpack.c.h.b16 %v1895
    %v3574 = vunpack.c.l.b16 %v1896
    %v3575 = vunpack.c.h.b16 %v1896
    %v3576 = vunpack.c.l.b16 %v1897
    %v3577 = vunpack.c.h.b16 %v1897
    %v3578 = vunpack.c.l.b16 %v1898
    %v3579 = vunpack.c.h.b16 %v1898
    %v3580 = vunpack.c.l.b16 %v1899
    %v3581 = vunpack.c.h.b16 %v1899
    %v3582 = vunpack.c.l.b16 %v1900
    %v3583 = vunpack.c.h.b16 %v1900
    %v3584 = vunpack.c.l.b16 %v1901
    %v3585 = vunpack.c.h.b16 %v1901
    %v3586 = vunpack.c.l.b16 %v1902
    %v3587 = vunpack.c.h.b16 %v1902
    %v3588 = vunpack.c.l.b16 %v1903
    %v3589 = vunpack.c.h.b16 %v1903
    %v3590 = vunpack.c.l.b16 %v1904
    %v3591 = vunpack.c.h.b16 %v1904
    %v3592 = vunpack.c.l.b16 %v1905
    %v3593 = vunpack.c.h.b16 %v1905
    %v3594 = vunpack.c.l.b16 %v1906
    %v3595 = vunpack.c.h.b16 %v1906
    %v3596 = vunpack.c.l.b16 %v1907
    %v3597 = vunpack.c.h.b16 %v1907
    %v3598 = vunpack.c.l.b16 %v1908
    %v3599 = vunpack.c.h.b16 %v1908
    %v3600 = vunpack.c.l.b16 %v1909
    %v3601 = vunpack.c.h.b16 %v1909
    %v3602 = vunpack.c.l.b16 %v1910
    %v3603 = vunpack.c.h.b16 %v1910
    %v3604 = vunpack.c.l.b16 %v1911
    %v3605 = vunpack.c.h.b16 %v1911
    %v3606 = vunpack.c.l.b16 %v1912
    %v3607 = vunpack.c.h.b16 %v1912
    %v3608 = vunpack.c.l.b16 %v1913
    %v3609 = vunpack.c.h.b16 %v1913
    %v3610 = vunpack.c.l.b16 %v1914
    %v3611 = vunpack.c.h.b16 %v1914
    %v3612 = vunpack.c.l.b16 %v1915
    %v3613 = vunpack.c.h.b16 %v1915
    %v3614 = vunpack.c.l.b16 %v1916
    %v3615 = vunpack.c.h.b16 %v1916
    %v3616 = vunpack.c.l.b16 %v1917
    %v3617 = vunpack.c.h.b16 %v1917
    %v3618 = vunpack.c.l.b16 %v1918
    %v3619 = vunpack.c.h.b16 %v1918
    %v3620 = vunpack.c.l.b16 %v1919
    %v3621 = vunpack.c.h.b16 %v1919
    %v3622 = vunpack.c.l.b16 %v1920
    %v3623 = vunpack.c.h.b16 %v1920
    %v3624 = vunpack.c.l.b16 %v1921
    %v3625 = vunpack.c.h.b16 %v1921
    %v3626 = vunpack.c.l.b16 %v1922
    %v3627 = vunpack.c.h.b16 %v1922
    %v3628 = vunpack.c.l.b16 %v1923
    %v3629 = vunpack.c.h.b16 %v1923
    %v3630 = vunpack.c.l.b16 %v1924
    %v3631 = vunpack.c.h.b16 %v1924
    %v3632 = vunpack.c.l.b16 %v1925
    %v3633 = vunpack.c.h.b16 %v1925
    %v3634 = vunpack.c.l.b16 %v1926
    %v3635 = vunpack.c.h.b16 %v1926
    %v3636 = vunpack.c.l.b16 %v1927
    %v3637 = vunpack.c.h.b16 %v1927
    %v3638 = vunpack.c.l.b16 %v1928
    %v3639 = vunpack.c.h.b16 %v1928
    %v3640 = vpack.c.b16 %v2748, %v2744
    %v3641 = vpack.c.b16 %v2749, %v2745
    %v3642 = vpack.c.b16 %v2750, %v2746
    %v3643 = vpack.c.b16 %v2751, %v2747
    %v3644 = vpack.c.b16 %v2756, %v2752
    %v3645 = vpack.c.b16 %v2757, %v2753
    %v3646 = vpack.c.b16 %v2758, %v2754
    %v3647 = vpack.c.b16 %v2759, %v2755
    %v3648 = vpack.c.b16 %v2764, %v2760
    %v3649 = vpack.c.b16 %v2765, %v2761
    %v3650 = vpack.c.b16 %v2766, %v2762
    %v3651 = vpack.c.b16 %v2767, %v2763
    %v3652 = vpack.c.b16 %v2772, %v2768
    %v3653 = vpack.c.b16 %v2773, %v2769
    %v3654 = vpack.c.b16 %v2774, %v2770
    %v3655 = vpack.c.b16 %v2775, %v2771
    %v3656 = vpack.c.b16 %v2780, %v2776
    %v3657 = vpack.c.b16 %v2781, %v2777
    %v3658 = vpack.c.b16 %v2782, %v2778
    %v3659 = vpack.c.b16 %v2783, %v2779
    %v3660 = vpack.c.b16 %v2788, %v2784
    %v3661 = vpack.c.b16 %v2789, %v2785
    %v3662 = vpack.c.b16 %v2790, %v2786
    %v3663 = vpack.c.b16 %v2791, %v2787
    %v3664 = vpack.c.b16 %v2796, %v2792
    %v3665 = vpack.c.b16 %v2797, %v2793
    %v3666 = vpack.c.b16 %v2798, %v2794
    %v3667 = vpack.c.b16 %v2799, %v2795
    %v3668 = vpack.c.b16 %v2804, %v2800
    %v3669 = vpack.c.b16 %v2805, %v2801
    %v3670 = vpack.c.b16 %v2806, %v2802
    %v3671 = vpack.c.b16 %v2807, %v2803
    %v3672 = vpack.c.b16 %v2812, %v2808
    %v3673 = vpack.c.b16 %v2813, %v2809
    %v3674 = vpack.c.b16 %v2814, %v2810
    %v3675 = vpack.c.b16 %v2815, %v2811
    %v3676 = vpack.c.b16 %v2820, %v2816
    %v3677 = vpack.c.b16 %v2821, %v2817
    %v3678 = vpack.c.b16 %v2822, %v2818
    %v3679 = vpack.c.b16 %v2823, %v2819
    %v3680 = vpack.c.b16 %v2828, %v2824
    %v3681 = vpack.c.b16 %v2829, %v2825
    %v3682 = vpack.c.b16 %v2830, %v2826
    %v3683 = vpack.c.b16 %v2831, %v2827
    %v3684 = vpack.c.b16 %v2836, %v2832
    %v3685 = vpack.c.b16 %v2837, %v2833
    %v3686 = vpack.c.b16 %v2838, %v2834
    %v3687 = vpack.c.b16 %v2839, %v2835
    %v3688 = vpack.c.b16 %v2844, %v2840
    %v3689 = vpack.c.b16 %v2845, %v2841
    %v3690 = vpack.c.b16 %v2846, %v2842
    %v3691 = vpack.c.b16 %v2847, %v2843
    %v3692 = vpack.c.b16 %v2852, %v2848
    %v3693 = vpack.c.b16 %v2853, %v2849
    %v3694 = vpack.c.b16 %v2854, %v2850
    %v3695 = vpack.c.b16 %v2855, %v2851
    %v3696 = vpack.c.b16 %v2860, %v2856
    %v3697 = vpack.c.b16 %v2861, %v2857
    %v3698 = vpack.c.b16 %v2862, %v2858
    %v3699 = vpack.c.b16 %v2863, %v2859
    %v3700 = vpack.c.b16 %v2868, %v2864
    %v3701 = vpack.c.b16 %v2869, %v2865
    %v3702 = vpack.c.b16 %v2870, %v2866
    %v3703 = vpack.c.b16 %v2871, %v2867
    %v3704 = vpack.c.b16 %v2876, %v2872
    %v3705 = vpack.c.b16 %v2877, %v2873
    %v3706 = vpack.c.b16 %v2878, %v2874
    %v3707 = vpack.c.b16 %v2879, %v2875
    %v3708 = vpack.c.b16 %v2884, %v2880
    %v3709 = vpack.c.b16 %v2885, %v2881
    %v3710 = vpack.c.b16 %v2886, %v2882
    %v3711 = vpack.c.b16 %v2887, %v2883
    %v3712 = vpack.c.b16 %v2892, %v2888
    %v3713 = vpack.c.b16 %v2893, %v2889
    %v3714 = vpack.c.b16 %v2894, %v2890
    %v3715 = vpack.c.b16 %v2895, %v2891
    %v3716 = vpack.c.b16 %v2900, %v2896
    %v3717 = vpack.c.b16 %v2901, %v2897
    %v3718 = vpack.c.b16 %v2902, %v2898
    %v3719 = vpack.c.b16 %v2903, %v2899
    %v3720 = vpack.c.b16 %v2908, %v2904
    %v3721 = vpack.c.b16 %v2909, %v2905
    %v3722 = vpack.c.b16 %v2910, %v2906
    %v3723 = vpack.c.b16 %v2911, %v2907
    %v3724 = vpack.c.b16 %v2916, %v2912
    %v3725 = vpack.c.b16 %v2917, %v2913
    %v3726 = vpack.c.b16 %v2918, %v2914
    %v3727 = vpack.c.b16 %v2919, %v2915
    %v3728 = vpack.c.b16 %v2924, %v2920
    %v3729 = vpack.c.b16 %v2925, %v2921
    %v3730 = vpack.c.b16 %v2926, %v2922
    %v3731 = vpack.c.b16 %v2927, %v2923
    %v3732 = vpack.c.b16 %v2932, %v2928
    %v3733 = vpack.c.b16 %v2933, %v2929
    %v3734 = vpack.c.b16 %v2934, %v2930
    %v3735 = vpack.c.b16 %v2935, %v2931
    %v3736 = vpack.c.b16 %v2940, %v2936
    %v3737 = vpack.c.b16 %v2941, %v2937
    %v3738 = vpack.c.b16 %v2942, %v2938
    %v3739 = vpack.c.b16 %v2943, %v2939
    %v3740 = vpack.c.b16 %v2948, %v2944
    %v3741 = vpack.c.b16 %v2949, %v2945
    %v3742 = vpack.c.b16 %v2950, %v2946
    %v3743 = vpack.c.b16 %v2951, %v2947
    %v3744 = vpack.c.b16 %v2956, %v2952
    %v3745 = vpack.c.b16 %v2957, %v2953
    %v3746 = vpack.c.b16 %v2958, %v2954
    %v3747 = vpack.c.b16 %v2959, %v2955
    %v3748 = vpack.c.b16 %v2964, %v2960
    %v3749 = vpack.c.b16 %v2965, %v2961
    %v3750 = vpack.c.b16 %v2966, %v2962
    %v3751 = vpack.c.b16 %v2967, %v2963
    %v3752 = vpack.c.b16 %v2972, %v2968
    %v3753 = vpack.c.b16 %v2973, %v2969
    %v3754 = vpack.c.b16 %v2974, %v2970
    %v3755 = vpack.c.b16 %v2975, %v2971
    %v3756 = vpack.c.b16 %v2980, %v2976
    %v3757 = vpack.c.b16 %v2981, %v2977
    %v3758 = vpack.c.b16 %v2982, %v2978
    %v3759 = vpack.c.b16 %v2983, %v2979
    %v3760 = vpack.c.b16 %v2988, %v2984
    %v3761 = vpack.c.b16 %v2989, %v2985
    %v3762 = vpack.c.b16 %v2990, %v2986
    %v3763 = vpack.c.b16 %v2991, %v2987
    %v3764 = vpack.c.b16 %v2996, %v2992
    %v3765 = vpack.c.b16 %v2997, %v2993
    %v3766 = vpack.c.b16 %v2998, %v2994
    %v3767 = vpack.c.b16 %v2999, %v2995
    %v3768 = vpack.c.b16 %v3004, %v3000
    %v3769 = vpack.c.b16 %v3005, %v3001
    %v3770 = vpack.c.b16 %v3006, %v3002
    %v3771 = vpack.c.b16 %v3007, %v3003
    %v3772 = vpack.c.b16 %v3012, %v3008
    %v3773 = vpack.c.b16 %v3013, %v3009
    %v3774 = vpack.c.b16 %v3014, %v3010
    %v3775 = vpack.c.b16 %v3015, %v3011
    %v3776 = vpack.c.b16 %v3020, %v3016
    %v3777 = vpack.c.b16 %v3021, %v3017
    %v3778 = vpack.c.b16 %v3022, %v3018
    %v3779 = vpack.c.b16 %v3023, %v3019
    %v3780 = vpack.c.b16 %v3028, %v3024
    %v3781 = vpack.c.b16 %v3029, %v3025
    %v3782 = vpack.c.b16 %v3030, %v3026
    %v3783 = vpack.c.b16 %v3031, %v3027
    %v3784 = vpack.c.b16 %v3036, %v3032
    %v3785 = vpack.c.b16 %v3037, %v3033
    %v3786 = vpack.c.b16 %v3038, %v3034
    %v3787 = vpack.c.b16 %v3039, %v3035
    %v3788 = vpack.c.b16 %v3044, %v3040
    %v3789 = vpack.c.b16 %v3045, %v3041
    %v3790 = vpack.c.b16 %v3046, %v3042
    %v3791 = vpack.c.b16 %v3047, %v3043
    %v3792 = vpack.c.b16 %v3052, %v3048
    %v3793 = vpack.c.b16 %v3053, %v3049
    %v3794 = vpack.c.b16 %v3054, %v3050
    %v3795 = vpack.c.b16 %v3055, %v3051
    %v3796 = vpack.c.b16 %v3060, %v3056
    %v3797 = vpack.c.b16 %v3061, %v3057
    %v3798 = vpack.c.b16 %v3062, %v3058
    %v3799 = vpack.c.b16 %v3063, %v3059
    %v3800 = vpack.c.b16 %v3068, %v3064
    %v3801 = vpack.c.b16 %v3069, %v3065
    %v3802 = vpack.c.b16 %v3070, %v3066
    %v3803 = vpack.c.b16 %v3071, %v3067
    %v3804 = vpack.c.b16 %v3076, %v3072
    %v3805 = vpack.c.b16 %v3077, %v3073
    %v3806 = vpack.c.b16 %v3078, %v3074
    %v3807 = vpack.c.b16 %v3079, %v3075
    %v3808 = vpack.c.b16 %v3084, %v3080
    %v3809 = vpack.c.b16 %v3085, %v3081
    %v3810 = vpack.c.b16 %v3086, %v3082
    %v3811 = vpack.c.b16 %v3087, %v3083
    %v3812 = vpack.c.b16 %v3092, %v3088
    %v3813 = vpack.c.b16 %v3093, %v3089
    %v3814 = vpack.c.b16 %v3094, %v3090
    %v3815 = vpack.c.b16 %v3095, %v3091
    %v3816 = vpack.c.b16 %v3100, %v3096
    %v3817 = vpack.c.b16 %v3101, %v3097
    %v3818 = vpack.c.b16 %v3102, %v3098
    %v3819 = vpack.c.b16 %v3103, %v3099
    %v3820 = vpack.c.b16 %v3108, %v3104
    %v3821 = vpack.c.b16 %v3109, %v3105
    %v3822 = vpack.c.b16 %v3110, %v3106
    %v3823 = vpack.c.b16 %v3111, %v3107
    %v3824 = vpack.c.b16 %v3116, %v3112
    %v3825 = vpack.c.b16 %v3117, %v3113
    %v3826 = vpack.c.b16 %v3118, %v3114
    %v3827 = vpack.c.b16 %v3119, %v3115
    %v3828 = vpack.c.b16 %v3124, %v3120
    %v3829 = vpack.c.b16 %v3125, %v3121
    %v3830 = vpack.c.b16 %v3126, %v3122
    %v3831 = vpack.c.b16 %v3127, %v3123
    %v3832 = vpack.c.b16 %v3132, %v3128
    %v3833 = vpack.c.b16 %v3133, %v3129
    %v3834 = vpack.c.b16 %v3134, %v3130
    %v3835 = vpack.c.b16 %v3135, %v3131
    %v3836 = vpack.c.b16 %v3140, %v3136
    %v3837 = vpack.c.b16 %v3141, %v3137
    %v3838 = vpack.c.b16 %v3142, %v3138
    %v3839 = vpack.c.b16 %v3143, %v3139
    %v3840 = vpack.c.b16 %v3148, %v3144
    %v3841 = vpack.c.b16 %v3149, %v3145
    %v3842 = vpack.c.b16 %v3150, %v3146
    %v3843 = vpack.c.b16 %v3151, %v3147
    %v3844 = vpack.c.b16 %v3156, %v3152
    %v3845 = vpack.c.b16 %v3157, %v3153
    %v3846 = vpack.c.b16 %v3158, %v3154
    %v3847 = vpack.c.b16 %v3159, %v3155
    %v3848 = vpack.c.b16 %v3164, %v3160
    %v3849 = vpack.c.b16 %v3165, %v3161
    %v3850 = vpack.c.b16 %v3166, %v3162
    %v3851 = vpack.c.b16 %v3167, %v3163
    %v3852 = vpack.c.b16 %v3172, %v3168
    %v3853 = vpack.c.b16 %v3173, %v3169
    %v3854 = vpack.c.b16 %v3174, %v3170
    %v3855 = vpack.c.b16 %v3175, %v3171
    %v3856 = vpack.c.b16 %v3180, %v3176
    %v3857 = vpack.c.b16 %v3181, %v3177
    %v3858 = vpack.c.b16 %v3182, %v3178
    %v3859 = vpack.c.b16 %v3183, %v3179
    %v3860 = vpack.c.b16 %v3188, %v3184
    %v3861 = vpack.c.b16 %v3189, %v3185
    %v3862 = vpack.c.b16 %v3190, %v3186
    %v3863 = vpack.c.b16 %v3191, %v3187
    %v3864 = vpack.c.b16 %v3196, %v3192
    %v3865 = vpack.c.b16 %v3197, %v3193
    %v3866 = vpack.c.b16 %v3198, %v3194
    %v3867 = vpack.c.b16 %v3199, %v3195
    %v3868 = vpack.c.b16 %v3204, %v3200
    %v3869 = vpack.c.b16 %v3205, %v3201
    %v3870 = vpack.c.b16 %v3206, %v3202
    %v3871 = vpack.c.b16 %v3207, %v3203
    %v3872 = vpack.c.b16 %v3212, %v3208
    %v3873 = vpack.c.b16 %v3213, %v3209
    %v3874 = vpack.c.b16 %v3214, %v3210
    %v3875 = vpack.c.b16 %v3215, %v3211
    %v3876 = vpack.c.b16 %v3220, %v3216
    %v3877 = vpack.c.b16 %v3221, %v3217
    %v3878 = vpack.c.b16 %v3222, %v3218
    %v3879 = vpack.c.b16 %v3223, %v3219
    %v3880 = vpack.c.b16 %v3228, %v3224
    %v3881 = vpack.c.b16 %v3229, %v3225
    %v3882 = vpack.c.b16 %v3230, %v3226
    %v3883 = vpack.c.b16 %v3231, %v3227
    %v3884 = vpack.c.b16 %v3236, %v3232
    %v3885 = vpack.c.b16 %v3237, %v3233
    %v3886 = vpack.c.b16 %v3238, %v3234
    %v3887 = vpack.c.b16 %v3239, %v3235
    %v3888 = vpack.c.b16 %v3244, %v3240
    %v3889 = vpack.c.b16 %v3245, %v3241
    %v3890 = vpack.c.b16 %v3246, %v3242
    %v3891 = vpack.c.b16 %v3247, %v3243
    %v3892 = vpack.c.b16 %v3252, %v3248
    %v3893 = vpack.c.b16 %v3253, %v3249
    %v3894 = vpack.c.b16 %v3254, %v3250
    %v3895 = vpack.c.b16 %v3255, %v3251
    %v3896 = vpack.c.b16 %v3260, %v3256
    %v3897 = vpack.c.b16 %v3261, %v3257
    %v3898 = vpack.c.b16 %v3262, %v3258
    %v3899 = vpack.c.b16 %v3263, %v3259
    %v3900 = vpack.c.b16 %v3268, %v3264
    %v3901 = vpack.c.b16 %v3269, %v3265
    %v3902 = vpack.c.b16 %v3270, %v3266
    %v3903 = vpack.c.b16 %v3271, %v3267
    %v3904 = vpack.c.b16 %v3276, %v3272
    %v3905 = vpack.c.b16 %v3277, %v3273
    %v3906 = vpack.c.b16 %v3278, %v3274
    %v3907 = vpack.c.b16 %v3279, %v3275
    %v3908 = vpack.c.b16 %v3284, %v3280
    %v3909 = vpack.c.b16 %v3285, %v3281
    %v3910 = vpack.c.b16 %v3286, %v3282
    %v3911 = vpack.c.b16 %v3287, %v3283
    %v3912 = vpack.c.b16 %v3292, %v3288
    %v3913 = vpack.c.b16 %v3293, %v3289
    %v3914 = vpack.c.b16 %v3294, %v3290
    %v3915 = vpack.c.b16 %v3295, %v3291
    %v3916 = vpack.c.b16 %v3300, %v3296
    %v3917 = vpack.c.b16 %v3301, %v3297
    %v3918 = vpack.c.b16 %v3302, %v3298
    %v3919 = vpack.c.b16 %v3303, %v3299
    %v3920 = vpack.c.b16 %v3308, %v3304
    %v3921 = vpack.c.b16 %v3309, %v3305
    %v3922 = vpack.c.b16 %v3310, %v3306
    %v3923 = vpack.c.b16 %v3311, %v3307
    %v3924 = vpack.c.b16 %v3316, %v3312
    %v3925 = vpack.c.b16 %v3317, %v3313
    %v3926 = vpack.c.b16 %v3318, %v3314
    %v3927 = vpack.c.b16 %v3319, %v3315
    %v3928 = vpack.c.b16 %v3324, %v3320
    %v3929 = vpack.c.b16 %v3325, %v3321
    %v3930 = vpack.c.b16 %v3326, %v3322
    %v3931 = vpack.c.b16 %v3327, %v3323
    %v3932 = vpack.c.b16 %v3332, %v3328
    %v3933 = vpack.c.b16 %v3333, %v3329
    %v3934 = vpack.c.b16 %v3334, %v3330
    %v3935 = vpack.c.b16 %v3335, %v3331
    %v3936 = vpack.c.b16 %v3340, %v3336
    %v3937 = vpack.c.b16 %v3341, %v3337
    %v3938 = vpack.c.b16 %v3342, %v3338
    %v3939 = vpack.c.b16 %v3343, %v3339
    %v3940 = vpack.c.b16 %v3348, %v3344
    %v3941 = vpack.c.b16 %v3349, %v3345
    %v3942 = vpack.c.b16 %v3350, %v3346
    %v3943 = vpack.c.b16 %v3351, %v3347
    %v3944 = vpack.c.b16 %v3356, %v3352
    %v3945 = vpack.c.b16 %v3357, %v3353
    %v3946 = vpack.c.b16 %v3358, %v3354
    %v3947 = vpack.c.b16 %v3359, %v3355
    %v3948 = vpack.c.b16 %v3364, %v3360
    %v3949 = vpack.c.b16 %v3365, %v3361
    %v3950 = vpack.c.b16 %v3366, %v3362
    %v3951 = vpack.c.b16 %v3367, %v3363
    %v3952 = vpack.c.b16 %v3372, %v3368
    %v3953 = vpack.c.b16 %v3373, %v3369
    %v3954 = vpack.c.b16 %v3374, %v3370
    %v3955 = vpack.c.b16 %v3375, %v3371
    %v3956 = vpack.c.b16 %v3380, %v3376
    %v3957 = vpack.c.b16 %v3381, %v3377
    %v3958 = vpack.c.b16 %v3382, %v3378
    %v3959 = vpack.c.b16 %v3383, %v3379
    %v3960 = vpack.c.b16 %v3388, %v3384
    %v3961 = vpack.c.b16 %v3389, %v3385
    %v3962 = vpack.c.b16 %v3390, %v3386
    %v3963 = vpack.c.b16 %v3391, %v3387
    %v3964 = vpack.c.b16 %v3396, %v3392
    %v3965 = vpack.c.b16 %v3397, %v3393
    %v3966 = vpack.c.b16 %v3398, %v3394
    %v3967 = vpack.c.b16 %v3399, %v3395
    %v3968 = vpack.c.b16 %v3404, %v3400
    %v3969 = vpack.c.b16 %v3405, %v3401
    %v3970 = vpack.c.b16 %v3406, %v3402
    %v3971 = vpack.c.b16 %v3407, %v3403
    %v3972 = vpack.c.b16 %v3412, %v3408
    %v3973 = vpack.c.b16 %v3413, %v3409
    %v3974 = vpack.c.b16 %v3414, %v3410
    %v3975 = vpack.c.b16 %v3415, %v3411
    %v3976 = vpack.c.b16 %v3420, %v3416
    %v3977 = vpack.c.b16 %v3421, %v3417
    %v3978 = vpack.c.b16 %v3422, %v3418
    %v3979 = vpack.c.b16 %v3423, %v3419
    %v3980 = vpack.c.b16 %v3428, %v3424
    %v3981 = vpack.c.b16 %v3429, %v3425
    %v3982 = vpack.c.b16 %v3430, %v3426
    %v3983 = vpack.c.b16 %v3431, %v3427
    %v3984 = vpack.c.b16 %v3436, %v3432
    %v3985 = vpack.c.b16 %v3437, %v3433
    %v3986 = vpack.c.b16 %v3438, %v3434
    %v3987 = vpack.c.b16 %v3439, %v3435
    %v3988 = vpack.c.b16 %v3444, %v3440
    %v3989 = vpack.c.b16 %v3445, %v3441
    %v3990 = vpack.c.b16 %v3446, %v3442
    %v3991 = vpack.c.b16 %v3447, %v3443
    %v3992 = vpack.c.b16 %v3452, %v3448
    %v3993 = vpack.c.b16 %v3453, %v3449
    %v3994 = vpack.c.b16 %v3454, %v3450
    %v3995 = vpack.c.b16 %v3455, %v3451
    %v3996 = vpack.c.b16 %v3460, %v3456
    %v3997 = vpack.c.b16 %v3461, %v3457
    %v3998 = vpack.c.b16 %v3462, %v3458
    %v3999 = vpack.c.b16 %v3463, %v3459
    %v4000 = vpack.c.b16 %v3468, %v3464
    %v4001 = vpack.c.b16 %v3469, %v3465
    %v4002 = vpack.c.b16 %v3470, %v3466
    %v4003 = vpack.c.b16 %v3471, %v3467
    %v4004 = vpack.c.b16 %v3476, %v3472
    %v4005 = vpack.c.b16 %v3477, %v3473
    %v4006 = vpack.c.b16 %v3478, %v3474
    %v4007 = vpack.c.b16 %v3479, %v3475
    %v4008 = vpack.c.b16 %v3484, %v3480
    %v4009 = vpack.c.b16 %v3485, %v3481
    %v4010 = vpack.c.b16 %v3486, %v3482
    %v4011 = vpack.c.b16 %v3487, %v3483
    %v4012 = vpack.c.b16 %v3492, %v3488
    %v4013 = vpack.c.b16 %v3493, %v3489
    %v4014 = vpack.c.b16 %v3494, %v3490
    %v4015 = vpack.c.b16 %v3495, %v3491
    %v4016 = vpack.c.b16 %v3500, %v3496
    %v4017 = vpack.c.b16 %v3501, %v3497
    %v4018 = vpack.c.b16 %v3502, %v3498
    %v4019 = vpack.c.b16 %v3503, %v3499
    %v4020 = vpack.c.b16 %v3508, %v3504
    %v4021 = vpack.c.b16 %v3509, %v3505
    %v4022 = vpack.c.b16 %v3510, %v3506
    %v4023 = vpack.c.b16 %v3511, %v3507
    %v4024 = vpack.c.b16 %v3516, %v3512
    %v4025 = vpack.c.b16 %v3517, %v3513
    %v4026 = vpack.c.b16 %v3518, %v3514
    %v4027 = vpack.c.b16 %v3519, %v3515
    %v4028 = vpack.c.b16 %v3524, %v3520
    %v4029 = vpack.c.b16 %v3525, %v3521
    %v4030 = vpack.c.b16 %v3526, %v3522
    %v4031 = vpack.c.b16 %v3527, %v3523
    %v4032 = vpack.c.b16 %v3532, %v3528
    %v4033 = vpack.c.b16 %v3533, %v3529
    %v4034 = vpack.c.b16 %v3534, %v3530
    %v4035 = vpack.c.b16 %v3535, %v3531
    %v4036 = vpack.c.b16 %v3540, %v3536
    %v4037 = vpack.c.b16 %v3541, %v3537
    %v4038 = vpack.c.b16 %v3542, %v3538
    %v4039 = vpack.c.b16 %v3543, %v3539
    %v4040 = vpack.c.b16 %v3548, %v3544
    %v4041 = vpack.c.b16 %v3549, %v3545
    %v4042 = vpack.c.b16 %v3550, %v3546
    %v4043 = vpack.c.b16 %v3551, %v3547
    %v4044 = vpack.c.b16 %v3556, %v3552
    %v4045 = vpack.c.b16 %v3557, %v3553
    %v4046 = vpack.c.b16 %v3558, %v3554
    %v4047 = vpack.c.b16 %v3559, %v3555
    %v4048 = vpack.c.b16 %v3564, %v3560
    %v4049 = vpack.c.b16 %v3565, %v3561
    %v4050 = vpack.c.b16 %v3566, %v3562
    %v4051 = vpack.c.b16 %v3567, %v3563
    %v4052 = vpack.c.b16 %v3572, %v3568
    %v4053 = vpack.c.b16 %v3573, %v3569
    %v4054 = vpack.c.b16 %v3574, %v3570
    %v4055 = vpack.c.b16 %v3575, %v3571
    %v4056 = vpack.c.b16 %v3580, %v3576
    %v4057 = vpack.c.b16 %v3581, %v3577
    %v4058 = vpack.c.b16 %v3582, %v3578
    %v4059 = vpack.c.b16 %v3583, %v3579
    %v4060 = vpack.c.b16 %v3588, %v3584
    %v4061 = vpack.c.b16 %v3589, %v3585
    %v4062 = vpack.c.b16 %v3590, %v3586
    %v4063 = vpack.c.b16 %v3591, %v3587
    %v4064 = vpack.c.b16 %v3596, %v3592
    %v4065 = vpack.c.b16 %v3597, %v3593
    %v4066 = vpack.c.b16 %v3598, %v3594
    %v4067 = vpack.c.b16 %v3599, %v3595
    %v4068 = vpack.c.b16 %v3604, %v3600
    %v4069 = vpack.c.b16 %v3605, %v3601
    %v4070 = vpack.c.b16 %v3606, %v3602
    %v4071 = vpack.c.b16 %v3607, %v3603
    %v4072 = vpack.c.b16 %v3612, %v3608
    %v4073 = vpack.c.b16 %v3613, %v3609
    %v4074 = vpack.c.b16 %v3614, %v3610
    %v4075 = vpack.c.b16 %v3615, %v3611
    %v4076 = vpack.c.b16 %v3620, %v3616
    %v4077 = vpack.c.b16 %v3621, %v3617
    %v4078 = vpack.c.b16 %v3622, %v3618
    %v4079 = vpack.c.b16 %v3623, %v3619
    %v4080 = vpack.c.b16 %v3628, %v3624
    %v4081 = vpack.c.b16 %v3629, %v3625
    %v4082 = vpack.c.b16 %v3630, %v3626
    %v4083 = vpack.c.b16 %v3631, %v3627
    %v4084 = vpack.c.b16 %v3636, %v3632
    %v4085 = vpack.c.b16 %v3637, %v3633
    %v4086 = vpack.c.b16 %v3638, %v3634
    %v4087 = vpack.c.b16 %v3639, %v3635
    %4536 = vmatpush.bf16.msra.mxu0 %v3668
    %4537 = vmatpush.bf16.msra.mxu0 %v3664
    %4538 = vmatpush.bf16.msra.mxu0 %v3660
    %4539 = vmatpush.bf16.msra.mxu0 %v3656
    %4540 = vmatpush.bf16.msra.mxu0 %v3652
    %4541 = vmatpush.bf16.msra.mxu0 %v3648
    %4542 = vmatpush.bf16.msra.mxu0 %v3644
    %4543 = vmatpush.bf16.msra.mxu0 %v3640
    %4544 = vmatmul.bf16.gmra.mxu0 %v2268
    %v4545 = vpop.f32.mrf.mxu0
    %v4546 = vadd.f32 %v1931, %v4545
    %v4547 = vpop.f32.mrf.mxu0
    %4548 = vdwg.mxu0
    %4549 = vmatpush.bf16.msra.mxu0 %v3700
    %4550 = vmatpush.bf16.msra.mxu0 %v3696
    %4551 = vmatpush.bf16.msra.mxu0 %v3692
    %4552 = vmatpush.bf16.msra.mxu0 %v3688
    %4553 = vmatpush.bf16.msra.mxu0 %v3684
    %4554 = vmatpush.bf16.msra.mxu0 %v3680
    %4555 = vmatpush.bf16.msra.mxu0 %v3676
    %4556 = vmatpush.bf16.msra.mxu0 %v3672
    %4557 = vmatmul.bf16.gmra.mxu0 %v2269
    %v4558 = vpop.f32.mrf.mxu0
    %v4559 = vadd.f32 %v4546, %v4558
    %v4560 = vpop.f32.mrf.mxu0
    %4561 = vdwg.mxu0
    %4562 = vmatpush.bf16.msra.mxu0 %v3732
    %4563 = vmatpush.bf16.msra.mxu0 %v3728
    %4564 = vmatpush.bf16.msra.mxu0 %v3724
    %4565 = vmatpush.bf16.msra.mxu0 %v3720
    %4566 = vmatpush.bf16.msra.mxu0 %v3716
    %4567 = vmatpush.bf16.msra.mxu0 %v3712
    %4568 = vmatpush.bf16.msra.mxu0 %v3708
    %4569 = vmatpush.bf16.msra.mxu0 %v3704
    %4570 = vmatmul.bf16.gmra.mxu0 %v2270
    %v4571 = vpop.f32.mrf.mxu0
    %v4572 = vadd.f32 %v4559, %v4571
    %v4573 = vpop.f32.mrf.mxu0
    %4574 = vdwg.mxu0
    %4575 = vmatpush.bf16.msra.mxu0 %v3764
    %4576 = vmatpush.bf16.msra.mxu0 %v3760
    %4577 = vmatpush.bf16.msra.mxu0 %v3756
    %4578 = vmatpush.bf16.msra.mxu0 %v3752
    %4579 = vmatpush.bf16.msra.mxu0 %v3748
    %4580 = vmatpush.bf16.msra.mxu0 %v3744
    %4581 = vmatpush.bf16.msra.mxu0 %v3740
    %4582 = vmatpush.bf16.msra.mxu0 %v3736
    %4583 = vmatmul.bf16.gmra.mxu0 %v2271
    %v4584 = vpop.f32.mrf.mxu0
    %v4585 = vadd.f32 %v4572, %v4584
    %v4586 = vpop.f32.mrf.mxu0
    %4587 = vdwg.mxu0
    %4588 = vmatpush.bf16.msra.mxu0 %v3796
    %4589 = vmatpush.bf16.msra.mxu0 %v3792
    %4590 = vmatpush.bf16.msra.mxu0 %v3788
    %4591 = vmatpush.bf16.msra.mxu0 %v3784
    %4592 = vmatpush.bf16.msra.mxu0 %v3780
    %4593 = vmatpush.bf16.msra.mxu0 %v3776
    %4594 = vmatpush.bf16.msra.mxu0 %v3772
    %4595 = vmatpush.bf16.msra.mxu0 %v3768
    %4596 = vmatmul.bf16.gmra.mxu0 %v2272
    %v4597 = vpop.f32.mrf.mxu0
    %v4598 = vadd.f32 %v4585, %v4597
    %v4599 = vpop.f32.mrf.mxu0
    %4600 = vdwg.mxu0
    %4601 = vmatpush.bf16.msra.mxu0 %v3828
    %4602 = vmatpush.bf16.msra.mxu0 %v3824
    %4603 = vmatpush.bf16.msra.mxu0 %v3820
    %4604 = vmatpush.bf16.msra.mxu0 %v3816
    %4605 = vmatpush.bf16.msra.mxu0 %v3812
    %4606 = vmatpush.bf16.msra.mxu0 %v3808
    %4607 = vmatpush.bf16.msra.mxu0 %v3804
    %4608 = vmatpush.bf16.msra.mxu0 %v3800
    %4609 = vmatmul.bf16.gmra.mxu0 %v2273
    %v4610 = vpop.f32.mrf.mxu0
    %v4611 = vadd.f32 %v4598, %v4610
    %v4612 = vpop.f32.mrf.mxu0
    %4613 = vdwg.mxu0
    %4614 = vmatpush.bf16.msra.mxu0 %v3860
    %4615 = vmatpush.bf16.msra.mxu0 %v3856
    %4616 = vmatpush.bf16.msra.mxu0 %v3852
    %4617 = vmatpush.bf16.msra.mxu0 %v3848
    %4618 = vmatpush.bf16.msra.mxu0 %v3844
    %4619 = vmatpush.bf16.msra.mxu0 %v3840
    %4620 = vmatpush.bf16.msra.mxu0 %v3836
    %4621 = vmatpush.bf16.msra.mxu0 %v3832
    %4622 = vmatmul.bf16.gmra.mxu0 %v2274
    %v4623 = vpop.f32.mrf.mxu0
    %v4624 = vadd.f32 %v4611, %v4623
    %v4625 = vpop.f32.mrf.mxu0
    %4626 = vdwg.mxu0
    %4627 = vmatpush.bf16.msra.mxu0 %v3892
    %4628 = vmatpush.bf16.msra.mxu0 %v3888
    %4629 = vmatpush.bf16.msra.mxu0 %v3884
    %4630 = vmatpush.bf16.msra.mxu0 %v3880
    %4631 = vmatpush.bf16.msra.mxu0 %v3876
    %4632 = vmatpush.bf16.msra.mxu0 %v3872
    %4633 = vmatpush.bf16.msra.mxu0 %v3868
    %4634 = vmatpush.bf16.msra.mxu0 %v3864
    %4635 = vmatmul.bf16.gmra.mxu0 %v2275
    %v4636 = vpop.f32.mrf.mxu0
    %v4637 = vadd.f32 %v4624, %v4636
    %v4638 = vpop.f32.mrf.mxu0
    %4639 = vdwg.mxu0
    %4640 = vmatpush.bf16.msra.mxu0 %v3924
    %4641 = vmatpush.bf16.msra.mxu0 %v3920
    %4642 = vmatpush.bf16.msra.mxu0 %v3916
    %4643 = vmatpush.bf16.msra.mxu0 %v3912
    %4644 = vmatpush.bf16.msra.mxu0 %v3908
    %4645 = vmatpush.bf16.msra.mxu0 %v3904
    %4646 = vmatpush.bf16.msra.mxu0 %v3900
    %4647 = vmatpush.bf16.msra.mxu0 %v3896
    %4648 = vmatmul.bf16.gmra.mxu0 %v2276
    %v4649 = vpop.f32.mrf.mxu0
    %v4650 = vadd.f32 %v4637, %v4649
    %v4651 = vpop.f32.mrf.mxu0
    %4652 = vdwg.mxu0
    %4653 = vmatpush.bf16.msra.mxu0 %v3956
    %4654 = vmatpush.bf16.msra.mxu0 %v3952
    %4655 = vmatpush.bf16.msra.mxu0 %v3948
    %4656 = vmatpush.bf16.msra.mxu0 %v3944
    %4657 = vmatpush.bf16.msra.mxu0 %v3940
    %4658 = vmatpush.bf16.msra.mxu0 %v3936
    %4659 = vmatpush.bf16.msra.mxu0 %v3932
    %4660 = vmatpush.bf16.msra.mxu0 %v3928
    %4661 = vmatmul.bf16.gmra.mxu0 %v2277
    %v4662 = vpop.f32.mrf.mxu0
    %v4663 = vadd.f32 %v4650, %v4662
    %v4664 = vpop.f32.mrf.mxu0
    %4665 = vdwg.mxu0
    %4666 = vmatpush.bf16.msra.mxu0 %v3988
    %4667 = vmatpush.bf16.msra.mxu0 %v3984
    %4668 = vmatpush.bf16.msra.mxu0 %v3980
    %4669 = vmatpush.bf16.msra.mxu0 %v3976
    %4670 = vmatpush.bf16.msra.mxu0 %v3972
    %4671 = vmatpush.bf16.msra.mxu0 %v3968
    %4672 = vmatpush.bf16.msra.mxu0 %v3964
    %4673 = vmatpush.bf16.msra.mxu0 %v3960
    %4674 = vmatmul.bf16.gmra.mxu0 %v2278
    %v4675 = vpop.f32.mrf.mxu0
    %v4676 = vadd.f32 %v4663, %v4675
    %v4677 = vpop.f32.mrf.mxu0
    %4678 = vdwg.mxu0
    %4679 = vmatpush.bf16.msra.mxu0 %v4020
    %4680 = vmatpush.bf16.msra.mxu0 %v4016
    %4681 = vmatpush.bf16.msra.mxu0 %v4012
    %4682 = vmatpush.bf16.msra.mxu0 %v4008
    %4683 = vmatpush.bf16.msra.mxu0 %v4004
    %4684 = vmatpush.bf16.msra.mxu0 %v4000
    %4685 = vmatpush.bf16.msra.mxu0 %v3996
    %4686 = vmatpush.bf16.msra.mxu0 %v3992
    %4687 = vmatmul.bf16.gmra.mxu0 %v2279
    %v4688 = vpop.f32.mrf.mxu0
    %v4689 = vadd.f32 %v4676, %v4688
    %v4690 = vpop.f32.mrf.mxu0
    %4691 = vdwg.mxu0
    %4692 = vmatpush.bf16.msra.mxu0 %v4052
    %4693 = vmatpush.bf16.msra.mxu0 %v4048
    %4694 = vmatpush.bf16.msra.mxu0 %v4044
    %4695 = vmatpush.bf16.msra.mxu0 %v4040
    %4696 = vmatpush.bf16.msra.mxu0 %v4036
    %4697 = vmatpush.bf16.msra.mxu0 %v4032
    %4698 = vmatpush.bf16.msra.mxu0 %v4028
    %4699 = vmatpush.bf16.msra.mxu0 %v4024
    %4700 = vmatmul.bf16.gmra.mxu0 %v2280
    %v4701 = vpop.f32.mrf.mxu0
    %v4702 = vadd.f32 %v4689, %v4701
    %v4703 = vpop.f32.mrf.mxu0
    %4704 = vdwg.mxu0
    %4705 = vmatpush.bf16.msra.mxu0 %v4084
    %4706 = vmatpush.bf16.msra.mxu0 %v4080
    %4707 = vmatpush.bf16.msra.mxu0 %v4076
    %4708 = vmatpush.bf16.msra.mxu0 %v4072
    %4709 = vmatpush.bf16.msra.mxu0 %v4068
    %4710 = vmatpush.bf16.msra.mxu0 %v4064
    %4711 = vmatpush.bf16.msra.mxu0 %v4060
    %4712 = vmatpush.bf16.msra.mxu0 %v4056
    %4713 = vmatmul.bf16.gmra.mxu0 %v2281
    %v4714 = vpop.f32.mrf.mxu0
    %v4715 = vadd.f32 %v4702, %v4714
    %v4716 = vpop.f32.mrf.mxu0
    %4717 = vdwg.mxu0
    %4718 = vmatpush.bf16.msra.mxu0 %v3669
    %4719 = vmatpush.bf16.msra.mxu0 %v3665
    %4720 = vmatpush.bf16.msra.mxu0 %v3661
    %4721 = vmatpush.bf16.msra.mxu0 %v3657
    %4722 = vmatpush.bf16.msra.mxu0 %v3653
    %4723 = vmatpush.bf16.msra.mxu0 %v3649
    %4724 = vmatpush.bf16.msra.mxu0 %v3645
    %4725 = vmatpush.bf16.msra.mxu0 %v3641
    %4726 = vmatmul.bf16.gmra.mxu0 %v2268
    %v4727 = vpop.f32.mrf.mxu0
    %v4728 = vadd.f32 %v1932, %v4727
    %v4729 = vpop.f32.mrf.mxu0
    %4730 = vdwg.mxu0
    %4731 = vmatpush.bf16.msra.mxu0 %v3701
    %4732 = vmatpush.bf16.msra.mxu0 %v3697
    %4733 = vmatpush.bf16.msra.mxu0 %v3693
    %4734 = vmatpush.bf16.msra.mxu0 %v3689
    %4735 = vmatpush.bf16.msra.mxu0 %v3685
    %4736 = vmatpush.bf16.msra.mxu0 %v3681
    %4737 = vmatpush.bf16.msra.mxu0 %v3677
    %4738 = vmatpush.bf16.msra.mxu0 %v3673
    %4739 = vmatmul.bf16.gmra.mxu0 %v2269
    %v4740 = vpop.f32.mrf.mxu0
    %v4741 = vadd.f32 %v4728, %v4740
    %v4742 = vpop.f32.mrf.mxu0
    %4743 = vdwg.mxu0
    %4744 = vmatpush.bf16.msra.mxu0 %v3733
    %4745 = vmatpush.bf16.msra.mxu0 %v3729
    %4746 = vmatpush.bf16.msra.mxu0 %v3725
    %4747 = vmatpush.bf16.msra.mxu0 %v3721
    %4748 = vmatpush.bf16.msra.mxu0 %v3717
    %4749 = vmatpush.bf16.msra.mxu0 %v3713
    %4750 = vmatpush.bf16.msra.mxu0 %v3709
    %4751 = vmatpush.bf16.msra.mxu0 %v3705
    %4752 = vmatmul.bf16.gmra.mxu0 %v2270
    %v4753 = vpop.f32.mrf.mxu0
    %v4754 = vadd.f32 %v4741, %v4753
    %v4755 = vpop.f32.mrf.mxu0
    %4756 = vdwg.mxu0
    %4757 = vmatpush.bf16.msra.mxu0 %v3765
    %4758 = vmatpush.bf16.msra.mxu0 %v3761
    %4759 = vmatpush.bf16.msra.mxu0 %v3757
    %4760 = vmatpush.bf16.msra.mxu0 %v3753
    %4761 = vmatpush.bf16.msra.mxu0 %v3749
    %4762 = vmatpush.bf16.msra.mxu0 %v3745
    %4763 = vmatpush.bf16.msra.mxu0 %v3741
    %4764 = vmatpush.bf16.msra.mxu0 %v3737
    %4765 = vmatmul.bf16.gmra.mxu0 %v2271
    %v4766 = vpop.f32.mrf.mxu0
    %v4767 = vadd.f32 %v4754, %v4766
    %v4768 = vpop.f32.mrf.mxu0
    %4769 = vdwg.mxu0
    %4770 = vmatpush.bf16.msra.mxu0 %v3797
    %4771 = vmatpush.bf16.msra.mxu0 %v3793
    %4772 = vmatpush.bf16.msra.mxu0 %v3789
    %4773 = vmatpush.bf16.msra.mxu0 %v3785
    %4774 = vmatpush.bf16.msra.mxu0 %v3781
    %4775 = vmatpush.bf16.msra.mxu0 %v3777
    %4776 = vmatpush.bf16.msra.mxu0 %v3773
    %4777 = vmatpush.bf16.msra.mxu0 %v3769
    %4778 = vmatmul.bf16.gmra.mxu0 %v2272
    %v4779 = vpop.f32.mrf.mxu0
    %v4780 = vadd.f32 %v4767, %v4779
    %v4781 = vpop.f32.mrf.mxu0
    %4782 = vdwg.mxu0
    %4783 = vmatpush.bf16.msra.mxu0 %v3829
    %4784 = vmatpush.bf16.msra.mxu0 %v3825
    %4785 = vmatpush.bf16.msra.mxu0 %v3821
    %4786 = vmatpush.bf16.msra.mxu0 %v3817
    %4787 = vmatpush.bf16.msra.mxu0 %v3813
    %4788 = vmatpush.bf16.msra.mxu0 %v3809
    %4789 = vmatpush.bf16.msra.mxu0 %v3805
    %4790 = vmatpush.bf16.msra.mxu0 %v3801
    %4791 = vmatmul.bf16.gmra.mxu0 %v2273
    %v4792 = vpop.f32.mrf.mxu0
    %v4793 = vadd.f32 %v4780, %v4792
    %v4794 = vpop.f32.mrf.mxu0
    %4795 = vdwg.mxu0
    %4796 = vmatpush.bf16.msra.mxu0 %v3861
    %4797 = vmatpush.bf16.msra.mxu0 %v3857
    %4798 = vmatpush.bf16.msra.mxu0 %v3853
    %4799 = vmatpush.bf16.msra.mxu0 %v3849
    %4800 = vmatpush.bf16.msra.mxu0 %v3845
    %4801 = vmatpush.bf16.msra.mxu0 %v3841
    %4802 = vmatpush.bf16.msra.mxu0 %v3837
    %4803 = vmatpush.bf16.msra.mxu0 %v3833
    %4804 = vmatmul.bf16.gmra.mxu0 %v2274
    %v4805 = vpop.f32.mrf.mxu0
    %v4806 = vadd.f32 %v4793, %v4805
    %v4807 = vpop.f32.mrf.mxu0
    %4808 = vdwg.mxu0
    %4809 = vmatpush.bf16.msra.mxu0 %v3893
    %4810 = vmatpush.bf16.msra.mxu0 %v3889
    %4811 = vmatpush.bf16.msra.mxu0 %v3885
    %4812 = vmatpush.bf16.msra.mxu0 %v3881
    %4813 = vmatpush.bf16.msra.mxu0 %v3877
    %4814 = vmatpush.bf16.msra.mxu0 %v3873
    %4815 = vmatpush.bf16.msra.mxu0 %v3869
    %4816 = vmatpush.bf16.msra.mxu0 %v3865
    %4817 = vmatmul.bf16.gmra.mxu0 %v2275
    %v4818 = vpop.f32.mrf.mxu0
    %v4819 = vadd.f32 %v4806, %v4818
    %v4820 = vpop.f32.mrf.mxu0
    %4821 = vdwg.mxu0
    %4822 = vmatpush.bf16.msra.mxu0 %v3925
    %4823 = vmatpush.bf16.msra.mxu0 %v3921
    %4824 = vmatpush.bf16.msra.mxu0 %v3917
    %4825 = vmatpush.bf16.msra.mxu0 %v3913
    %4826 = vmatpush.bf16.msra.mxu0 %v3909
    %4827 = vmatpush.bf16.msra.mxu0 %v3905
    %4828 = vmatpush.bf16.msra.mxu0 %v3901
    %4829 = vmatpush.bf16.msra.mxu0 %v3897
    %4830 = vmatmul.bf16.gmra.mxu0 %v2276
    %v4831 = vpop.f32.mrf.mxu0
    %v4832 = vadd.f32 %v4819, %v4831
    %v4833 = vpop.f32.mrf.mxu0
    %4834 = vdwg.mxu0
    %4835 = vmatpush.bf16.msra.mxu0 %v3957
    %4836 = vmatpush.bf16.msra.mxu0 %v3953
    %4837 = vmatpush.bf16.msra.mxu0 %v3949
    %4838 = vmatpush.bf16.msra.mxu0 %v3945
    %4839 = vmatpush.bf16.msra.mxu0 %v3941
    %4840 = vmatpush.bf16.msra.mxu0 %v3937
    %4841 = vmatpush.bf16.msra.mxu0 %v3933
    %4842 = vmatpush.bf16.msra.mxu0 %v3929
    %4843 = vmatmul.bf16.gmra.mxu0 %v2277
    %v4844 = vpop.f32.mrf.mxu0
    %v4845 = vadd.f32 %v4832, %v4844
    %v4846 = vpop.f32.mrf.mxu0
    %4847 = vdwg.mxu0
    %4848 = vmatpush.bf16.msra.mxu0 %v3989
    %4849 = vmatpush.bf16.msra.mxu0 %v3985
    %4850 = vmatpush.bf16.msra.mxu0 %v3981
    %4851 = vmatpush.bf16.msra.mxu0 %v3977
    %4852 = vmatpush.bf16.msra.mxu0 %v3973
    %4853 = vmatpush.bf16.msra.mxu0 %v3969
    %4854 = vmatpush.bf16.msra.mxu0 %v3965
    %4855 = vmatpush.bf16.msra.mxu0 %v3961
    %4856 = vmatmul.bf16.gmra.mxu0 %v2278
    %v4857 = vpop.f32.mrf.mxu0
    %v4858 = vadd.f32 %v4845, %v4857
    %v4859 = vpop.f32.mrf.mxu0
    %4860 = vdwg.mxu0
    %4861 = vmatpush.bf16.msra.mxu0 %v4021
    %4862 = vmatpush.bf16.msra.mxu0 %v4017
    %4863 = vmatpush.bf16.msra.mxu0 %v4013
    %4864 = vmatpush.bf16.msra.mxu0 %v4009
    %4865 = vmatpush.bf16.msra.mxu0 %v4005
    %4866 = vmatpush.bf16.msra.mxu0 %v4001
    %4867 = vmatpush.bf16.msra.mxu0 %v3997
    %4868 = vmatpush.bf16.msra.mxu0 %v3993
    %4869 = vmatmul.bf16.gmra.mxu0 %v2279
    %v4870 = vpop.f32.mrf.mxu0
    %v4871 = vadd.f32 %v4858, %v4870
    %v4872 = vpop.f32.mrf.mxu0
    %4873 = vdwg.mxu0
    %4874 = vmatpush.bf16.msra.mxu0 %v4053
    %4875 = vmatpush.bf16.msra.mxu0 %v4049
    %4876 = vmatpush.bf16.msra.mxu0 %v4045
    %4877 = vmatpush.bf16.msra.mxu0 %v4041
    %4878 = vmatpush.bf16.msra.mxu0 %v4037
    %4879 = vmatpush.bf16.msra.mxu0 %v4033
    %4880 = vmatpush.bf16.msra.mxu0 %v4029
    %4881 = vmatpush.bf16.msra.mxu0 %v4025
    %4882 = vmatmul.bf16.gmra.mxu0 %v2280
    %v4883 = vpop.f32.mrf.mxu0
    %v4884 = vadd.f32 %v4871, %v4883
    %v4885 = vpop.f32.mrf.mxu0
    %4886 = vdwg.mxu0
    %4887 = vmatpush.bf16.msra.mxu0 %v4085
    %4888 = vmatpush.bf16.msra.mxu0 %v4081
    %4889 = vmatpush.bf16.msra.mxu0 %v4077
    %4890 = vmatpush.bf16.msra.mxu0 %v4073
    %4891 = vmatpush.bf16.msra.mxu0 %v4069
    %4892 = vmatpush.bf16.msra.mxu0 %v4065
    %4893 = vmatpush.bf16.msra.mxu0 %v4061
    %4894 = vmatpush.bf16.msra.mxu0 %v4057
    %4895 = vmatmul.bf16.gmra.mxu0 %v2281
    %v4896 = vpop.f32.mrf.mxu0
    %v4897 = vadd.f32 %v4884, %v4896
    %v4898 = vpop.f32.mrf.mxu0
    %4899 = vdwg.mxu0
    %4900 = vmatpush.bf16.msra.mxu0 %v3670
    %4901 = vmatpush.bf16.msra.mxu0 %v3666
    %4902 = vmatpush.bf16.msra.mxu0 %v3662
    %4903 = vmatpush.bf16.msra.mxu0 %v3658
    %4904 = vmatpush.bf16.msra.mxu0 %v3654
    %4905 = vmatpush.bf16.msra.mxu0 %v3650
    %4906 = vmatpush.bf16.msra.mxu0 %v3646
    %4907 = vmatpush.bf16.msra.mxu0 %v3642
    %4908 = vmatmul.bf16.gmra.mxu0 %v2268
    %v4909 = vpop.f32.mrf.mxu0
    %v4910 = vadd.f32 %v1933, %v4909
    %v4911 = vpop.f32.mrf.mxu0
    %4912 = vdwg.mxu0
    %4913 = vmatpush.bf16.msra.mxu0 %v3702
    %4914 = vmatpush.bf16.msra.mxu0 %v3698
    %4915 = vmatpush.bf16.msra.mxu0 %v3694
    %4916 = vmatpush.bf16.msra.mxu0 %v3690
    %4917 = vmatpush.bf16.msra.mxu0 %v3686
    %4918 = vmatpush.bf16.msra.mxu0 %v3682
    %4919 = vmatpush.bf16.msra.mxu0 %v3678
    %4920 = vmatpush.bf16.msra.mxu0 %v3674
    %4921 = vmatmul.bf16.gmra.mxu0 %v2269
    %v4922 = vpop.f32.mrf.mxu0
    %v4923 = vadd.f32 %v4910, %v4922
    %v4924 = vpop.f32.mrf.mxu0
    %4925 = vdwg.mxu0
    %4926 = vmatpush.bf16.msra.mxu0 %v3734
    %4927 = vmatpush.bf16.msra.mxu0 %v3730
    %4928 = vmatpush.bf16.msra.mxu0 %v3726
    %4929 = vmatpush.bf16.msra.mxu0 %v3722
    %4930 = vmatpush.bf16.msra.mxu0 %v3718
    %4931 = vmatpush.bf16.msra.mxu0 %v3714
    %4932 = vmatpush.bf16.msra.mxu0 %v3710
    %4933 = vmatpush.bf16.msra.mxu0 %v3706
    %4934 = vmatmul.bf16.gmra.mxu0 %v2270
    %v4935 = vpop.f32.mrf.mxu0
    %v4936 = vadd.f32 %v4923, %v4935
    %v4937 = vpop.f32.mrf.mxu0
    %4938 = vdwg.mxu0
    %4939 = vmatpush.bf16.msra.mxu0 %v3766
    %4940 = vmatpush.bf16.msra.mxu0 %v3762
    %4941 = vmatpush.bf16.msra.mxu0 %v3758
    %4942 = vmatpush.bf16.msra.mxu0 %v3754
    %4943 = vmatpush.bf16.msra.mxu0 %v3750
    %4944 = vmatpush.bf16.msra.mxu0 %v3746
    %4945 = vmatpush.bf16.msra.mxu0 %v3742
    %4946 = vmatpush.bf16.msra.mxu0 %v3738
    %4947 = vmatmul.bf16.gmra.mxu0 %v2271
    %v4948 = vpop.f32.mrf.mxu0
    %v4949 = vadd.f32 %v4936, %v4948
    %v4950 = vpop.f32.mrf.mxu0
    %4951 = vdwg.mxu0
    %4952 = vmatpush.bf16.msra.mxu0 %v3798
    %4953 = vmatpush.bf16.msra.mxu0 %v3794
    %4954 = vmatpush.bf16.msra.mxu0 %v3790
    %4955 = vmatpush.bf16.msra.mxu0 %v3786
    %4956 = vmatpush.bf16.msra.mxu0 %v3782
    %4957 = vmatpush.bf16.msra.mxu0 %v3778
    %4958 = vmatpush.bf16.msra.mxu0 %v3774
    %4959 = vmatpush.bf16.msra.mxu0 %v3770
    %4960 = vmatmul.bf16.gmra.mxu0 %v2272
    %v4961 = vpop.f32.mrf.mxu0
    %v4962 = vadd.f32 %v4949, %v4961
    %v4963 = vpop.f32.mrf.mxu0
    %4964 = vdwg.mxu0
    %4965 = vmatpush.bf16.msra.mxu0 %v3830
    %4966 = vmatpush.bf16.msra.mxu0 %v3826
    %4967 = vmatpush.bf16.msra.mxu0 %v3822
    %4968 = vmatpush.bf16.msra.mxu0 %v3818
    %4969 = vmatpush.bf16.msra.mxu0 %v3814
    %4970 = vmatpush.bf16.msra.mxu0 %v3810
    %4971 = vmatpush.bf16.msra.mxu0 %v3806
    %4972 = vmatpush.bf16.msra.mxu0 %v3802
    %4973 = vmatmul.bf16.gmra.mxu0 %v2273
    %v4974 = vpop.f32.mrf.mxu0
    %v4975 = vadd.f32 %v4962, %v4974
    %v4976 = vpop.f32.mrf.mxu0
    %4977 = vdwg.mxu0
    %4978 = vmatpush.bf16.msra.mxu0 %v3862
    %4979 = vmatpush.bf16.msra.mxu0 %v3858
    %4980 = vmatpush.bf16.msra.mxu0 %v3854
    %4981 = vmatpush.bf16.msra.mxu0 %v3850
    %4982 = vmatpush.bf16.msra.mxu0 %v3846
    %4983 = vmatpush.bf16.msra.mxu0 %v3842
    %4984 = vmatpush.bf16.msra.mxu0 %v3838
    %4985 = vmatpush.bf16.msra.mxu0 %v3834
    %4986 = vmatmul.bf16.gmra.mxu0 %v2274
    %v4987 = vpop.f32.mrf.mxu0
    %v4988 = vadd.f32 %v4975, %v4987
    %v4989 = vpop.f32.mrf.mxu0
    %4990 = vdwg.mxu0
    %4991 = vmatpush.bf16.msra.mxu0 %v3894
    %4992 = vmatpush.bf16.msra.mxu0 %v3890
    %4993 = vmatpush.bf16.msra.mxu0 %v3886
    %4994 = vmatpush.bf16.msra.mxu0 %v3882
    %4995 = vmatpush.bf16.msra.mxu0 %v3878
    %4996 = vmatpush.bf16.msra.mxu0 %v3874
    %4997 = vmatpush.bf16.msra.mxu0 %v3870
    %4998 = vmatpush.bf16.msra.mxu0 %v3866
    %4999 = vmatmul.bf16.gmra.mxu0 %v2275
    %v5000 = vpop.f32.mrf.mxu0
    %v5001 = vadd.f32 %v4988, %v5000
    %v5002 = vpop.f32.mrf.mxu0
    %5003 = vdwg.mxu0
    %5004 = vmatpush.bf16.msra.mxu0 %v3926
    %5005 = vmatpush.bf16.msra.mxu0 %v3922
    %5006 = vmatpush.bf16.msra.mxu0 %v3918
    %5007 = vmatpush.bf16.msra.mxu0 %v3914
    %5008 = vmatpush.bf16.msra.mxu0 %v3910
    %5009 = vmatpush.bf16.msra.mxu0 %v3906
    %5010 = vmatpush.bf16.msra.mxu0 %v3902
    %5011 = vmatpush.bf16.msra.mxu0 %v3898
    %5012 = vmatmul.bf16.gmra.mxu0 %v2276
    %v5013 = vpop.f32.mrf.mxu0
    %v5014 = vadd.f32 %v5001, %v5013
    %v5015 = vpop.f32.mrf.mxu0
    %5016 = vdwg.mxu0
    %5017 = vmatpush.bf16.msra.mxu0 %v3958
    %5018 = vmatpush.bf16.msra.mxu0 %v3954
    %5019 = vmatpush.bf16.msra.mxu0 %v3950
    %5020 = vmatpush.bf16.msra.mxu0 %v3946
    %5021 = vmatpush.bf16.msra.mxu0 %v3942
    %5022 = vmatpush.bf16.msra.mxu0 %v3938
    %5023 = vmatpush.bf16.msra.mxu0 %v3934
    %5024 = vmatpush.bf16.msra.mxu0 %v3930
    %5025 = vmatmul.bf16.gmra.mxu0 %v2277
    %v5026 = vpop.f32.mrf.mxu0
    %v5027 = vadd.f32 %v5014, %v5026
    %v5028 = vpop.f32.mrf.mxu0
    %5029 = vdwg.mxu0
    %5030 = vmatpush.bf16.msra.mxu0 %v3990
    %5031 = vmatpush.bf16.msra.mxu0 %v3986
    %5032 = vmatpush.bf16.msra.mxu0 %v3982
    %5033 = vmatpush.bf16.msra.mxu0 %v3978
    %5034 = vmatpush.bf16.msra.mxu0 %v3974
    %5035 = vmatpush.bf16.msra.mxu0 %v3970
    %5036 = vmatpush.bf16.msra.mxu0 %v3966
    %5037 = vmatpush.bf16.msra.mxu0 %v3962
    %5038 = vmatmul.bf16.gmra.mxu0 %v2278
    %v5039 = vpop.f32.mrf.mxu0
    %v5040 = vadd.f32 %v5027, %v5039
    %v5041 = vpop.f32.mrf.mxu0
    %5042 = vdwg.mxu0
    %5043 = vmatpush.bf16.msra.mxu0 %v4022
    %5044 = vmatpush.bf16.msra.mxu0 %v4018
    %5045 = vmatpush.bf16.msra.mxu0 %v4014
    %5046 = vmatpush.bf16.msra.mxu0 %v4010
    %5047 = vmatpush.bf16.msra.mxu0 %v4006
    %5048 = vmatpush.bf16.msra.mxu0 %v4002
    %5049 = vmatpush.bf16.msra.mxu0 %v3998
    %5050 = vmatpush.bf16.msra.mxu0 %v3994
    %5051 = vmatmul.bf16.gmra.mxu0 %v2279
    %v5052 = vpop.f32.mrf.mxu0
    %v5053 = vadd.f32 %v5040, %v5052
    %v5054 = vpop.f32.mrf.mxu0
    %5055 = vdwg.mxu0
    %5056 = vmatpush.bf16.msra.mxu0 %v4054
    %5057 = vmatpush.bf16.msra.mxu0 %v4050
    %5058 = vmatpush.bf16.msra.mxu0 %v4046
    %5059 = vmatpush.bf16.msra.mxu0 %v4042
    %5060 = vmatpush.bf16.msra.mxu0 %v4038
    %5061 = vmatpush.bf16.msra.mxu0 %v4034
    %5062 = vmatpush.bf16.msra.mxu0 %v4030
    %5063 = vmatpush.bf16.msra.mxu0 %v4026
    %5064 = vmatmul.bf16.gmra.mxu0 %v2280
    %v5065 = vpop.f32.mrf.mxu0
    %v5066 = vadd.f32 %v5053, %v5065
    %v5067 = vpop.f32.mrf.mxu0
    %5068 = vdwg.mxu0
    %5069 = vmatpush.bf16.msra.mxu0 %v4086
    %5070 = vmatpush.bf16.msra.mxu0 %v4082
    %5071 = vmatpush.bf16.msra.mxu0 %v4078
    %5072 = vmatpush.bf16.msra.mxu0 %v4074
    %5073 = vmatpush.bf16.msra.mxu0 %v4070
    %5074 = vmatpush.bf16.msra.mxu0 %v4066
    %5075 = vmatpush.bf16.msra.mxu0 %v4062
    %5076 = vmatpush.bf16.msra.mxu0 %v4058
    %5077 = vmatmul.bf16.gmra.mxu0 %v2281
    %v5078 = vpop.f32.mrf.mxu0
    %v5079 = vadd.f32 %v5066, %v5078
    %v5080 = vpop.f32.mrf.mxu0
    %5081 = vdwg.mxu0
    %5082 = vmatpush.bf16.msra.mxu0 %v3671
    %5083 = vmatpush.bf16.msra.mxu0 %v3667
    %5084 = vmatpush.bf16.msra.mxu0 %v3663
    %5085 = vmatpush.bf16.msra.mxu0 %v3659
    %5086 = vmatpush.bf16.msra.mxu0 %v3655
    %5087 = vmatpush.bf16.msra.mxu0 %v3651
    %5088 = vmatpush.bf16.msra.mxu0 %v3647
    %5089 = vmatpush.bf16.msra.mxu0 %v3643
    %5090 = vmatmul.bf16.gmra.mxu0 %v2268
    %v5091 = vpop.f32.mrf.mxu0
    %v5092 = vadd.f32 %v1934, %v5091
    %v5093 = vpop.f32.mrf.mxu0
    %5094 = vdwg.mxu0
    %5095 = vmatpush.bf16.msra.mxu0 %v3703
    %5096 = vmatpush.bf16.msra.mxu0 %v3699
    %5097 = vmatpush.bf16.msra.mxu0 %v3695
    %5098 = vmatpush.bf16.msra.mxu0 %v3691
    %5099 = vmatpush.bf16.msra.mxu0 %v3687
    %5100 = vmatpush.bf16.msra.mxu0 %v3683
    %5101 = vmatpush.bf16.msra.mxu0 %v3679
    %5102 = vmatpush.bf16.msra.mxu0 %v3675
    %5103 = vmatmul.bf16.gmra.mxu0 %v2269
    %v5104 = vpop.f32.mrf.mxu0
    %v5105 = vadd.f32 %v5092, %v5104
    %v5106 = vpop.f32.mrf.mxu0
    %5107 = vdwg.mxu0
    %5108 = vmatpush.bf16.msra.mxu0 %v3735
    %5109 = vmatpush.bf16.msra.mxu0 %v3731
    %5110 = vmatpush.bf16.msra.mxu0 %v3727
    %5111 = vmatpush.bf16.msra.mxu0 %v3723
    %5112 = vmatpush.bf16.msra.mxu0 %v3719
    %5113 = vmatpush.bf16.msra.mxu0 %v3715
    %5114 = vmatpush.bf16.msra.mxu0 %v3711
    %5115 = vmatpush.bf16.msra.mxu0 %v3707
    %5116 = vmatmul.bf16.gmra.mxu0 %v2270
    %v5117 = vpop.f32.mrf.mxu0
    %v5118 = vadd.f32 %v5105, %v5117
    %v5119 = vpop.f32.mrf.mxu0
    %5120 = vdwg.mxu0
    %5121 = vmatpush.bf16.msra.mxu0 %v3767
    %5122 = vmatpush.bf16.msra.mxu0 %v3763
    %5123 = vmatpush.bf16.msra.mxu0 %v3759
    %5124 = vmatpush.bf16.msra.mxu0 %v3755
    %5125 = vmatpush.bf16.msra.mxu0 %v3751
    %5126 = vmatpush.bf16.msra.mxu0 %v3747
    %5127 = vmatpush.bf16.msra.mxu0 %v3743
    %5128 = vmatpush.bf16.msra.mxu0 %v3739
    %5129 = vmatmul.bf16.gmra.mxu0 %v2271
    %v5130 = vpop.f32.mrf.mxu0
    %v5131 = vadd.f32 %v5118, %v5130
    %v5132 = vpop.f32.mrf.mxu0
    %5133 = vdwg.mxu0
    %5134 = vmatpush.bf16.msra.mxu0 %v3799
    %5135 = vmatpush.bf16.msra.mxu0 %v3795
    %5136 = vmatpush.bf16.msra.mxu0 %v3791
    %5137 = vmatpush.bf16.msra.mxu0 %v3787
    %5138 = vmatpush.bf16.msra.mxu0 %v3783
    %5139 = vmatpush.bf16.msra.mxu0 %v3779
    %5140 = vmatpush.bf16.msra.mxu0 %v3775
    %5141 = vmatpush.bf16.msra.mxu0 %v3771
    %5142 = vmatmul.bf16.gmra.mxu0 %v2272
    %v5143 = vpop.f32.mrf.mxu0
    %v5144 = vadd.f32 %v5131, %v5143
    %v5145 = vpop.f32.mrf.mxu0
    %5146 = vdwg.mxu0
    %5147 = vmatpush.bf16.msra.mxu0 %v3831
    %5148 = vmatpush.bf16.msra.mxu0 %v3827
    %5149 = vmatpush.bf16.msra.mxu0 %v3823
    %5150 = vmatpush.bf16.msra.mxu0 %v3819
    %5151 = vmatpush.bf16.msra.mxu0 %v3815
    %5152 = vmatpush.bf16.msra.mxu0 %v3811
    %5153 = vmatpush.bf16.msra.mxu0 %v3807
    %5154 = vmatpush.bf16.msra.mxu0 %v3803
    %5155 = vmatmul.bf16.gmra.mxu0 %v2273
    %v5156 = vpop.f32.mrf.mxu0
    %v5157 = vadd.f32 %v5144, %v5156
    %v5158 = vpop.f32.mrf.mxu0
    %5159 = vdwg.mxu0
    %5160 = vmatpush.bf16.msra.mxu0 %v3863
    %5161 = vmatpush.bf16.msra.mxu0 %v3859
    %5162 = vmatpush.bf16.msra.mxu0 %v3855
    %5163 = vmatpush.bf16.msra.mxu0 %v3851
    %5164 = vmatpush.bf16.msra.mxu0 %v3847
    %5165 = vmatpush.bf16.msra.mxu0 %v3843
    %5166 = vmatpush.bf16.msra.mxu0 %v3839
    %5167 = vmatpush.bf16.msra.mxu0 %v3835
    %5168 = vmatmul.bf16.gmra.mxu0 %v2274
    %v5169 = vpop.f32.mrf.mxu0
    %v5170 = vadd.f32 %v5157, %v5169
    %v5171 = vpop.f32.mrf.mxu0
    %5172 = vdwg.mxu0
    %5173 = vmatpush.bf16.msra.mxu0 %v3895
    %5174 = vmatpush.bf16.msra.mxu0 %v3891
    %5175 = vmatpush.bf16.msra.mxu0 %v3887
    %5176 = vmatpush.bf16.msra.mxu0 %v3883
    %5177 = vmatpush.bf16.msra.mxu0 %v3879
    %5178 = vmatpush.bf16.msra.mxu0 %v3875
    %5179 = vmatpush.bf16.msra.mxu0 %v3871
    %5180 = vmatpush.bf16.msra.mxu0 %v3867
    %5181 = vmatmul.bf16.gmra.mxu0 %v2275
    %v5182 = vpop.f32.mrf.mxu0
    %v5183 = vadd.f32 %v5170, %v5182
    %v5184 = vpop.f32.mrf.mxu0
    %5185 = vdwg.mxu0
    %5186 = vmatpush.bf16.msra.mxu0 %v3927
    %5187 = vmatpush.bf16.msra.mxu0 %v3923
    %5188 = vmatpush.bf16.msra.mxu0 %v3919
    %5189 = vmatpush.bf16.msra.mxu0 %v3915
    %5190 = vmatpush.bf16.msra.mxu0 %v3911
    %5191 = vmatpush.bf16.msra.mxu0 %v3907
    %5192 = vmatpush.bf16.msra.mxu0 %v3903
    %5193 = vmatpush.bf16.msra.mxu0 %v3899
    %5194 = vmatmul.bf16.gmra.mxu0 %v2276
    %v5195 = vpop.f32.mrf.mxu0
    %v5196 = vadd.f32 %v5183, %v5195
    %v5197 = vpop.f32.mrf.mxu0
    %5198 = vdwg.mxu0
    %5199 = vmatpush.bf16.msra.mxu0 %v3959
    %5200 = vmatpush.bf16.msra.mxu0 %v3955
    %5201 = vmatpush.bf16.msra.mxu0 %v3951
    %5202 = vmatpush.bf16.msra.mxu0 %v3947
    %5203 = vmatpush.bf16.msra.mxu0 %v3943
    %5204 = vmatpush.bf16.msra.mxu0 %v3939
    %5205 = vmatpush.bf16.msra.mxu0 %v3935
    %5206 = vmatpush.bf16.msra.mxu0 %v3931
    %5207 = vmatmul.bf16.gmra.mxu0 %v2277
    %v5208 = vpop.f32.mrf.mxu0
    %v5209 = vadd.f32 %v5196, %v5208
    %v5210 = vpop.f32.mrf.mxu0
    %5211 = vdwg.mxu0
    %5212 = vmatpush.bf16.msra.mxu0 %v3991
    %5213 = vmatpush.bf16.msra.mxu0 %v3987
    %5214 = vmatpush.bf16.msra.mxu0 %v3983
    %5215 = vmatpush.bf16.msra.mxu0 %v3979
    %5216 = vmatpush.bf16.msra.mxu0 %v3975
    %5217 = vmatpush.bf16.msra.mxu0 %v3971
    %5218 = vmatpush.bf16.msra.mxu0 %v3967
    %5219 = vmatpush.bf16.msra.mxu0 %v3963
    %5220 = vmatmul.bf16.gmra.mxu0 %v2278
    %v5221 = vpop.f32.mrf.mxu0
    %v5222 = vadd.f32 %v5209, %v5221
    %v5223 = vpop.f32.mrf.mxu0
    %5224 = vdwg.mxu0
    %5225 = vmatpush.bf16.msra.mxu0 %v4023
    %5226 = vmatpush.bf16.msra.mxu0 %v4019
    %5227 = vmatpush.bf16.msra.mxu0 %v4015
    %5228 = vmatpush.bf16.msra.mxu0 %v4011
    %5229 = vmatpush.bf16.msra.mxu0 %v4007
    %5230 = vmatpush.bf16.msra.mxu0 %v4003
    %5231 = vmatpush.bf16.msra.mxu0 %v3999
    %5232 = vmatpush.bf16.msra.mxu0 %v3995
    %5233 = vmatmul.bf16.gmra.mxu0 %v2279
    %v5234 = vpop.f32.mrf.mxu0
    %v5235 = vadd.f32 %v5222, %v5234
    %v5236 = vpop.f32.mrf.mxu0
    %5237 = vdwg.mxu0
    %5238 = vmatpush.bf16.msra.mxu0 %v4055
    %5239 = vmatpush.bf16.msra.mxu0 %v4051
    %5240 = vmatpush.bf16.msra.mxu0 %v4047
    %5241 = vmatpush.bf16.msra.mxu0 %v4043
    %5242 = vmatpush.bf16.msra.mxu0 %v4039
    %5243 = vmatpush.bf16.msra.mxu0 %v4035
    %5244 = vmatpush.bf16.msra.mxu0 %v4031
    %5245 = vmatpush.bf16.msra.mxu0 %v4027
    %5246 = vmatmul.bf16.gmra.mxu0 %v2280
    %v5247 = vpop.f32.mrf.mxu0
    %v5248 = vadd.f32 %v5235, %v5247
    %v5249 = vpop.f32.mrf.mxu0
    %5250 = vdwg.mxu0
    %5251 = vmatpush.bf16.msra.mxu0 %v4087
    %5252 = vmatpush.bf16.msra.mxu0 %v4083
    %5253 = vmatpush.bf16.msra.mxu0 %v4079
    %5254 = vmatpush.bf16.msra.mxu0 %v4075
    %5255 = vmatpush.bf16.msra.mxu0 %v4071
    %5256 = vmatpush.bf16.msra.mxu0 %v4067
    %5257 = vmatpush.bf16.msra.mxu0 %v4063
    %5258 = vmatpush.bf16.msra.mxu0 %v4059
    %5259 = vmatmul.bf16.gmra.mxu0 %v2281
    %v5260 = vpop.f32.mrf.mxu0
    %v5261 = vadd.f32 %v5248, %v5260
    %v5262 = vpop.f32.mrf.mxu0
    %5263 = vdwg.mxu0
    %v5264 = vmul.f32 %v4715, %v4715
    %v5265 = vmul.f32 %v4897, %v4897
    %v5266 = vmul.f32 %v5079, %v5079
    %v5267 = vmul.f32 %v5261, %v5261
    %v5268 = vadd.f32 %v5264, %v5265
    %v5269 = vadd.f32 %v5268, %v5266
    %v5270 = vadd.f32 %v5269, %v5267
    %5271 = vadd.xlane.f32.xlu0 %v5270
    %v5272 = vpop.xlane.xlu0 %5271
    %v5273 = vmax.f32 %v5272, 1e-24
    %v5274 = vrsqrt.pop %v5273
    %v5275 = vmul.f32 %v5274, %v5273
    %v5276 = vmul.f32 %v5275, %v5274
    %v5277 = vmul.f32 0.5, %v5276
    %v5278 = vsub.f32 1.5, %v5277
    %v5279 = vmul.f32 %v5274, %v5278
    %vm5280 = vweird.f32 %v5273
    %vm5281 = vweird.f32 %v5274
    %vm5282 = vmor %vm5280, %vm5281
    %v5283 = vsel %vm5282, %v5274, %v5279
    %v5284 = vmul.f32 %v4715, %v5283
    %v5285 = vmul.f32 %v4897, %v5283
    %v5286 = vmul.f32 %v5079, %v5283
    %v5287 = vmul.f32 %v5261, %v5283
    %v5288 = vpack.c.bf16 %v5284, %v5284
    %v5289 = vpack.c.bf16 %v5285, %v5285
    %v5290 = vpack.c.bf16 %v5286, %v5286
    %v5291 = vpack.c.bf16 %v5287, %v5287
    %v5292 = vld [vmem:[#allocation8] sm:$0xff]
    %v5293 = vld [vmem:[#allocation8 + $0x8] sm:$0xff]
    %v5294 = vld [vmem:[#allocation8 + $0x10] sm:$0xff]
    %v5295 = vld [vmem:[#allocation8 + $0x18] sm:$0xff]
    %v5296 = vld [vmem:[#allocation8 + $0x20] sm:$0xff]
    %v5297 = vld [vmem:[#allocation8 + $0x28] sm:$0xff]
    %v5298 = vld [vmem:[#allocation8 + $0x30] sm:$0xff]
    %v5299 = vld [vmem:[#allocation8 + $0x38] sm:$0xff]
    %v5300 = vld [vmem:[#allocation8 + $0x40] sm:$0xff]
    %v5301 = vld [vmem:[#allocation8 + $0x48] sm:$0xff]
    %v5302 = vld [vmem:[#allocation8 + $0x50] sm:$0xff]
    %v5303 = vld [vmem:[#allocation8 + $0x58] sm:$0xff]
    %v5304 = vld [vmem:[#allocation8 + $0x60] sm:$0xff]
    %v5305 = vld [vmem:[#allocation8 + $0x68] sm:$0xff]
    %v5306 = vld [vmem:[#allocation8 + $0x70] sm:$0xff]
    %v5307 = vld [vmem:[#allocation8 + $0x78] sm:$0xff]
    %v5308 = vld [vmem:[#allocation8 + $0x80] sm:$0xff]
    %v5309 = vld [vmem:[#allocation8 + $0x88] sm:$0xff]
    %v5310 = vld [vmem:[#allocation8 + $0x90] sm:$0xff]
    %v5311 = vld [vmem:[#allocation8 + $0x98] sm:$0xff]
    %v5312 = vld [vmem:[#allocation8 + $0xa0] sm:$0xff]
    %v5313 = vld [vmem:[#allocation8 + $0xa8] sm:$0xff]
    %v5314 = vld [vmem:[#allocation8 + $0xb0] sm:$0xff]
    %v5315 = vld [vmem:[#allocation8 + $0xb8] sm:$0xff]
    %v5316 = vld [vmem:[#allocation8 + $0xc0] sm:$0xff]
    %v5317 = vld [vmem:[#allocation8 + $0xc8] sm:$0xff]
    %v5318 = vld [vmem:[#allocation8 + $0xd0] sm:$0xff]
    %v5319 = vld [vmem:[#allocation8 + $0xd8] sm:$0xff]
    %v5320 = vld [vmem:[#allocation8 + $0xe0] sm:$0xff]
    %v5321 = vld [vmem:[#allocation8 + $0xe8] sm:$0xff]
    %v5322 = vld [vmem:[#allocation8 + $0xf0] sm:$0xff]
    %v5323 = vld [vmem:[#allocation8 + $0xf8] sm:$0xff]
    %v5324 = vld [vmem:[#allocation8 + $0x100] sm:$0xff]
    %v5325 = vld [vmem:[#allocation8 + $0x108] sm:$0xff]
    %v5326 = vld [vmem:[#allocation8 + $0x110] sm:$0xff]
    %v5327 = vld [vmem:[#allocation8 + $0x118] sm:$0xff]
    %v5328 = vld [vmem:[#allocation8 + $0x120] sm:$0xff]
    %v5329 = vld [vmem:[#allocation8 + $0x128] sm:$0xff]
    %v5330 = vld [vmem:[#allocation8 + $0x130] sm:$0xff]
    %v5331 = vld [vmem:[#allocation8 + $0x138] sm:$0xff]
    %v5332 = vld [vmem:[#allocation8 + $0x140] sm:$0xff]
    %v5333 = vld [vmem:[#allocation8 + $0x148] sm:$0xff]
    %v5334 = vld [vmem:[#allocation8 + $0x150] sm:$0xff]
    %v5335 = vld [vmem:[#allocation8 + $0x158] sm:$0xff]
    %v5336 = vld [vmem:[#allocation8 + $0x160] sm:$0xff]
    %v5337 = vld [vmem:[#allocation8 + $0x168] sm:$0xff]
    %v5338 = vld [vmem:[#allocation8 + $0x170] sm:$0xff]
    %v5339 = vld [vmem:[#allocation8 + $0x178] sm:$0xff]
    %v5340 = vld [vmem:[#allocation8 + $0x180] sm:$0xff]
    %v5341 = vld [vmem:[#allocation8 + $0x188] sm:$0xff]
    %v5342 = vld [vmem:[#allocation8 + $0x190] sm:$0xff]
    %v5343 = vld [vmem:[#allocation8 + $0x198] sm:$0xff]
    %v5344 = vld [vmem:[#allocation8 + $0x1a0] sm:$0xff]
    %v5345 = vld [vmem:[#allocation8 + $0x1a8] sm:$0xff]
    %v5346 = vld [vmem:[#allocation8 + $0x1b0] sm:$0xff]
    %v5347 = vld [vmem:[#allocation8 + $0x1b8] sm:$0xff]
    %v5348 = vld [vmem:[#allocation8 + $0x1c0] sm:$0xff]
    %v5349 = vld [vmem:[#allocation8 + $0x1c8] sm:$0xff]
    %v5350 = vld [vmem:[#allocation8 + $0x1d0] sm:$0xff]
    %v5351 = vld [vmem:[#allocation8 + $0x1d8] sm:$0xff]
    %v5352 = vld [vmem:[#allocation8 + $0x1e0] sm:$0xff]
    %v5353 = vld [vmem:[#allocation8 + $0x1e8] sm:$0xff]
    %v5354 = vld [vmem:[#allocation8 + $0x1f0] sm:$0xff]
    %v5355 = vld [vmem:[#allocation8 + $0x1f8] sm:$0xff]
    %v5356 = vld [vmem:[#allocation8 + $0x200] sm:$0xff]
    %v5357 = vld [vmem:[#allocation8 + $0x208] sm:$0xff]
    %v5358 = vld [vmem:[#allocation8 + $0x210] sm:$0xff]
    %v5359 = vld [vmem:[#allocation8 + $0x218] sm:$0xff]
    %v5360 = vld [vmem:[#allocation8 + $0x220] sm:$0xff]
    %v5361 = vld [vmem:[#allocation8 + $0x228] sm:$0xff]
    %v5362 = vld [vmem:[#allocation8 + $0x230] sm:$0xff]
    %v5363 = vld [vmem:[#allocation8 + $0x238] sm:$0xff]
    %v5364 = vld [vmem:[#allocation8 + $0x240] sm:$0xff]
    %v5365 = vld [vmem:[#allocation8 + $0x248] sm:$0xff]
    %v5366 = vld [vmem:[#allocation8 + $0x250] sm:$0xff]
    %v5367 = vld [vmem:[#allocation8 + $0x258] sm:$0xff]
    %v5368 = vld [vmem:[#allocation8 + $0x260] sm:$0xff]
    %v5369 = vld [vmem:[#allocation8 + $0x268] sm:$0xff]
    %v5370 = vld [vmem:[#allocation8 + $0x270] sm:$0xff]
    %v5371 = vld [vmem:[#allocation8 + $0x278] sm:$0xff]
    %v5372 = vld [vmem:[#allocation8 + $0x280] sm:$0xff]
    %v5373 = vld [vmem:[#allocation8 + $0x288] sm:$0xff]
    %v5374 = vld [vmem:[#allocation8 + $0x290] sm:$0xff]
    %v5375 = vld [vmem:[#allocation8 + $0x298] sm:$0xff]
    %v5376 = vld [vmem:[#allocation8 + $0x2a0] sm:$0xff]
    %v5377 = vld [vmem:[#allocation8 + $0x2a8] sm:$0xff]
    %v5378 = vld [vmem:[#allocation8 + $0x2b0] sm:$0xff]
    %v5379 = vld [vmem:[#allocation8 + $0x2b8] sm:$0xff]
    %v5380 = vld [vmem:[#allocation8 + $0x2c0] sm:$0xff]
    %v5381 = vld [vmem:[#allocation8 + $0x2c8] sm:$0xff]
    %v5382 = vld [vmem:[#allocation8 + $0x2d0] sm:$0xff]
    %v5383 = vld [vmem:[#allocation8 + $0x2d8] sm:$0xff]
    %v5384 = vld [vmem:[#allocation8 + $0x2e0] sm:$0xff]
    %v5385 = vld [vmem:[#allocation8 + $0x2e8] sm:$0xff]
    %v5386 = vld [vmem:[#allocation8 + $0x2f0] sm:$0xff]
    %v5387 = vld [vmem:[#allocation8 + $0x2f8] sm:$0xff]
    %v5388 = vld [vmem:[#allocation8 + $0x300] sm:$0xff]
    %v5389 = vld [vmem:[#allocation8 + $0x308] sm:$0xff]
    %v5390 = vld [vmem:[#allocation8 + $0x310] sm:$0xff]
    %v5391 = vld [vmem:[#allocation8 + $0x318] sm:$0xff]
    %v5392 = vld [vmem:[#allocation8 + $0x320] sm:$0xff]
    %v5393 = vld [vmem:[#allocation8 + $0x328] sm:$0xff]
    %v5394 = vld [vmem:[#allocation8 + $0x330] sm:$0xff]
    %v5395 = vld [vmem:[#allocation8 + $0x338] sm:$0xff]
    %v5396 = vld [vmem:[#allocation8 + $0x340] sm:$0xff]
    %v5397 = vld [vmem:[#allocation8 + $0x348] sm:$0xff]
    %v5398 = vld [vmem:[#allocation8 + $0x350] sm:$0xff]
    %v5399 = vld [vmem:[#allocation8 + $0x358] sm:$0xff]
    %v5400 = vld [vmem:[#allocation8 + $0x360] sm:$0xff]
    %v5401 = vld [vmem:[#allocation8 + $0x368] sm:$0xff]
    %v5402 = vld [vmem:[#allocation8 + $0x370] sm:$0xff]
    %v5403 = vld [vmem:[#allocation8 + $0x378] sm:$0xff]
    %v5404 = vld [vmem:[#allocation8 + $0x380] sm:$0xff]
    %v5405 = vld [vmem:[#allocation8 + $0x388] sm:$0xff]
    %v5406 = vld [vmem:[#allocation8 + $0x390] sm:$0xff]
    %v5407 = vld [vmem:[#allocation8 + $0x398] sm:$0xff]
    %v5408 = vld [vmem:[#allocation8 + $0x3a0] sm:$0xff]
    %v5409 = vld [vmem:[#allocation8 + $0x3a8] sm:$0xff]
    %v5410 = vld [vmem:[#allocation8 + $0x3b0] sm:$0xff]
    %v5411 = vld [vmem:[#allocation8 + $0x3b8] sm:$0xff]
    %v5412 = vld [vmem:[#allocation8 + $0x3c0] sm:$0xff]
    %v5413 = vld [vmem:[#allocation8 + $0x3c8] sm:$0xff]
    %v5414 = vld [vmem:[#allocation8 + $0x3d0] sm:$0xff]
    %v5415 = vld [vmem:[#allocation8 + $0x3d8] sm:$0xff]
    %v5416 = vld [vmem:[#allocation8 + $0x3e0] sm:$0xff]
    %v5417 = vld [vmem:[#allocation8 + $0x3e8] sm:$0xff]
    %v5418 = vld [vmem:[#allocation8 + $0x3f0] sm:$0xff]
    %v5419 = vld [vmem:[#allocation8 + $0x3f8] sm:$0xff]
    %v5420 = vld [vmem:[#allocation9] sm:$0xf]
    %v5422 = vperm.slane %v5420, 0
    %v5423 = vperm.slane %v5420, 1
    %v5424 = vperm.slane %v5420, 2
    %v5425 = vperm.slane %v5420, 3
    %v5558 = vunpack.c.l.b16 %v5292
    %v5559 = vunpack.c.h.b16 %v5292
    %v5560 = vunpack.c.l.b16 %v5293
    %v5561 = vunpack.c.h.b16 %v5293
    %v5562 = vunpack.c.l.b16 %v5294
    %v5563 = vunpack.c.h.b16 %v5294
    %v5564 = vunpack.c.l.b16 %v5295
    %v5565 = vunpack.c.h.b16 %v5295
    %v5566 = vunpack.c.l.b16 %v5296
    %v5567 = vunpack.c.h.b16 %v5296
    %v5568 = vunpack.c.l.b16 %v5297
    %v5569 = vunpack.c.h.b16 %v5297
    %v5570 = vunpack.c.l.b16 %v5298
    %v5571 = vunpack.c.h.b16 %v5298
    %v5572 = vunpack.c.l.b16 %v5299
    %v5573 = vunpack.c.h.b16 %v5299
    %v5574 = vunpack.c.l.b16 %v5300
    %v5575 = vunpack.c.h.b16 %v5300
    %v5576 = vunpack.c.l.b16 %v5301
    %v5577 = vunpack.c.h.b16 %v5301
    %v5578 = vunpack.c.l.b16 %v5302
    %v5579 = vunpack.c.h.b16 %v5302
    %v5580 = vunpack.c.l.b16 %v5303
    %v5581 = vunpack.c.h.b16 %v5303
    %v5582 = vunpack.c.l.b16 %v5304
    %v5583 = vunpack.c.h.b16 %v5304
    %v5584 = vunpack.c.l.b16 %v5305
    %v5585 = vunpack.c.h.b16 %v5305
    %v5586 = vunpack.c.l.b16 %v5306
    %v5587 = vunpack.c.h.b16 %v5306
    %v5588 = vunpack.c.l.b16 %v5307
    %v5589 = vunpack.c.h.b16 %v5307
    %v5590 = vunpack.c.l.b16 %v5308
    %v5591 = vunpack.c.h.b16 %v5308
    %v5592 = vunpack.c.l.b16 %v5309
    %v5593 = vunpack.c.h.b16 %v5309
    %v5594 = vunpack.c.l.b16 %v5310
    %v5595 = vunpack.c.h.b16 %v5310
    %v5596 = vunpack.c.l.b16 %v5311
    %v5597 = vunpack.c.h.b16 %v5311
    %v5598 = vunpack.c.l.b16 %v5312
    %v5599 = vunpack.c.h.b16 %v5312
    %v5600 = vunpack.c.l.b16 %v5313
    %v5601 = vunpack.c.h.b16 %v5313
    %v5602 = vunpack.c.l.b16 %v5314
    %v5603 = vunpack.c.h.b16 %v5314
    %v5604 = vunpack.c.l.b16 %v5315
    %v5605 = vunpack.c.h.b16 %v5315
    %v5606 = vunpack.c.l.b16 %v5316
    %v5607 = vunpack.c.h.b16 %v5316
    %v5608 = vunpack.c.l.b16 %v5317
    %v5609 = vunpack.c.h.b16 %v5317
    %v5610 = vunpack.c.l.b16 %v5318
    %v5611 = vunpack.c.h.b16 %v5318
    %v5612 = vunpack.c.l.b16 %v5319
    %v5613 = vunpack.c.h.b16 %v5319
    %v5614 = vunpack.c.l.b16 %v5320
    %v5615 = vunpack.c.h.b16 %v5320
    %v5616 = vunpack.c.l.b16 %v5321
    %v5617 = vunpack.c.h.b16 %v5321
    %v5618 = vunpack.c.l.b16 %v5322
    %v5619 = vunpack.c.h.b16 %v5322
    %v5620 = vunpack.c.l.b16 %v5323
    %v5621 = vunpack.c.h.b16 %v5323
    %v5622 = vunpack.c.l.b16 %v5324
    %v5623 = vunpack.c.h.b16 %v5324
    %v5624 = vunpack.c.l.b16 %v5325
    %v5625 = vunpack.c.h.b16 %v5325
    %v5626 = vunpack.c.l.b16 %v5326
    %v5627 = vunpack.c.h.b16 %v5326
    %v5628 = vunpack.c.l.b16 %v5327
    %v5629 = vunpack.c.h.b16 %v5327
    %v5630 = vunpack.c.l.b16 %v5328
    %v5631 = vunpack.c.h.b16 %v5328
    %v5632 = vunpack.c.l.b16 %v5329
    %v5633 = vunpack.c.h.b16 %v5329
    %v5634 = vunpack.c.l.b16 %v5330
    %v5635 = vunpack.c.h.b16 %v5330
    %v5636 = vunpack.c.l.b16 %v5331
    %v5637 = vunpack.c.h.b16 %v5331
    %v5638 = vunpack.c.l.b16 %v5332
    %v5639 = vunpack.c.h.b16 %v5332
    %v5640 = vunpack.c.l.b16 %v5333
    %v5641 = vunpack.c.h.b16 %v5333
    %v5642 = vunpack.c.l.b16 %v5334
    %v5643 = vunpack.c.h.b16 %v5334
    %v5644 = vunpack.c.l.b16 %v5335
    %v5645 = vunpack.c.h.b16 %v5335
    %v5646 = vunpack.c.l.b16 %v5336
    %v5647 = vunpack.c.h.b16 %v5336
    %v5648 = vunpack.c.l.b16 %v5337
    %v5649 = vunpack.c.h.b16 %v5337
    %v5650 = vunpack.c.l.b16 %v5338
    %v5651 = vunpack.c.h.b16 %v5338
    %v5652 = vunpack.c.l.b16 %v5339
    %v5653 = vunpack.c.h.b16 %v5339
    %v5654 = vunpack.c.l.b16 %v5340
    %v5655 = vunpack.c.h.b16 %v5340
    %v5656 = vunpack.c.l.b16 %v5341
    %v5657 = vunpack.c.h.b16 %v5341
    %v5658 = vunpack.c.l.b16 %v5342
    %v5659 = vunpack.c.h.b16 %v5342
    %v5660 = vunpack.c.l.b16 %v5343
    %v5661 = vunpack.c.h.b16 %v5343
    %v5662 = vunpack.c.l.b16 %v5344
    %v5663 = vunpack.c.h.b16 %v5344
    %v5664 = vunpack.c.l.b16 %v5345
    %v5665 = vunpack.c.h.b16 %v5345
    %v5666 = vunpack.c.l.b16 %v5346
    %v5667 = vunpack.c.h.b16 %v5346
    %v5668 = vunpack.c.l.b16 %v5347
    %v5669 = vunpack.c.h.b16 %v5347
    %v5670 = vunpack.c.l.b16 %v5348
    %v5671 = vunpack.c.h.b16 %v5348
    %v5672 = vunpack.c.l.b16 %v5349
    %v5673 = vunpack.c.h.b16 %v5349
    %v5674 = vunpack.c.l.b16 %v5350
    %v5675 = vunpack.c.h.b16 %v5350
    %v5676 = vunpack.c.l.b16 %v5351
    %v5677 = vunpack.c.h.b16 %v5351
    %v5678 = vunpack.c.l.b16 %v5352
    %v5679 = vunpack.c.h.b16 %v5352
    %v5680 = vunpack.c.l.b16 %v5353
    %v5681 = vunpack.c.h.b16 %v5353
    %v5682 = vunpack.c.l.b16 %v5354
    %v5683 = vunpack.c.h.b16 %v5354
    %v5684 = vunpack.c.l.b16 %v5355
    %v5685 = vunpack.c.h.b16 %v5355
    %v5686 = vunpack.c.l.b16 %v5356
    %v5687 = vunpack.c.h.b16 %v5356
    %v5688 = vunpack.c.l.b16 %v5357
    %v5689 = vunpack.c.h.b16 %v5357
    %v5690 = vunpack.c.l.b16 %v5358
    %v5691 = vunpack.c.h.b16 %v5358
    %v5692 = vunpack.c.l.b16 %v5359
    %v5693 = vunpack.c.h.b16 %v5359
    %v5694 = vunpack.c.l.b16 %v5360
    %v5695 = vunpack.c.h.b16 %v5360
    %v5696 = vunpack.c.l.b16 %v5361
    %v5697 = vunpack.c.h.b16 %v5361
    %v5698 = vunpack.c.l.b16 %v5362
    %v5699 = vunpack.c.h.b16 %v5362
    %v5700 = vunpack.c.l.b16 %v5363
    %v5701 = vunpack.c.h.b16 %v5363
    %v5702 = vunpack.c.l.b16 %v5364
    %v5703 = vunpack.c.h.b16 %v5364
    %v5704 = vunpack.c.l.b16 %v5365
    %v5705 = vunpack.c.h.b16 %v5365
    %v5706 = vunpack.c.l.b16 %v5366
    %v5707 = vunpack.c.h.b16 %v5366
    %v5708 = vunpack.c.l.b16 %v5367
    %v5709 = vunpack.c.h.b16 %v5367
    %v5710 = vunpack.c.l.b16 %v5368
    %v5711 = vunpack.c.h.b16 %v5368
    %v5712 = vunpack.c.l.b16 %v5369
    %v5713 = vunpack.c.h.b16 %v5369
    %v5714 = vunpack.c.l.b16 %v5370
    %v5715 = vunpack.c.h.b16 %v5370
    %v5716 = vunpack.c.l.b16 %v5371
    %v5717 = vunpack.c.h.b16 %v5371
    %v5718 = vunpack.c.l.b16 %v5372
    %v5719 = vunpack.c.h.b16 %v5372
    %v5720 = vunpack.c.l.b16 %v5373
    %v5721 = vunpack.c.h.b16 %v5373
    %v5722 = vunpack.c.l.b16 %v5374
    %v5723 = vunpack.c.h.b16 %v5374
    %v5724 = vunpack.c.l.b16 %v5375
    %v5725 = vunpack.c.h.b16 %v5375
    %v5726 = vunpack.c.l.b16 %v5376
    %v5727 = vunpack.c.h.b16 %v5376
    %v5728 = vunpack.c.l.b16 %v5377
    %v5729 = vunpack.c.h.b16 %v5377
    %v5730 = vunpack.c.l.b16 %v5378
    %v5731 = vunpack.c.h.b16 %v5378
    %v5732 = vunpack.c.l.b16 %v5379
    %v5733 = vunpack.c.h.b16 %v5379
    %v5734 = vunpack.c.l.b16 %v5380
    %v5735 = vunpack.c.h.b16 %v5380
    %v5736 = vunpack.c.l.b16 %v5381
    %v5737 = vunpack.c.h.b16 %v5381
    %v5738 = vunpack.c.l.b16 %v5382
    %v5739 = vunpack.c.h.b16 %v5382
    %v5740 = vunpack.c.l.b16 %v5383
    %v5741 = vunpack.c.h.b16 %v5383
    %v5742 = vunpack.c.l.b16 %v5384
    %v5743 = vunpack.c.h.b16 %v5384
    %v5744 = vunpack.c.l.b16 %v5385
    %v5745 = vunpack.c.h.b16 %v5385
    %v5746 = vunpack.c.l.b16 %v5386
    %v5747 = vunpack.c.h.b16 %v5386
    %v5748 = vunpack.c.l.b16 %v5387
    %v5749 = vunpack.c.h.b16 %v5387
    %v5750 = vunpack.c.l.b16 %v5388
    %v5751 = vunpack.c.h.b16 %v5388
    %v5752 = vunpack.c.l.b16 %v5389
    %v5753 = vunpack.c.h.b16 %v5389
    %v5754 = vunpack.c.l.b16 %v5390
    %v5755 = vunpack.c.h.b16 %v5390
    %v5756 = vunpack.c.l.b16 %v5391
    %v5757 = vunpack.c.h.b16 %v5391
    %v5758 = vunpack.c.l.b16 %v5392
    %v5759 = vunpack.c.h.b16 %v5392
    %v5760 = vunpack.c.l.b16 %v5393
    %v5761 = vunpack.c.h.b16 %v5393
    %v5762 = vunpack.c.l.b16 %v5394
    %v5763 = vunpack.c.h.b16 %v5394
    %v5764 = vunpack.c.l.b16 %v5395
    %v5765 = vunpack.c.h.b16 %v5395
    %v5766 = vunpack.c.l.b16 %v5396
    %v5767 = vunpack.c.h.b16 %v5396
    %v5768 = vunpack.c.l.b16 %v5397
    %v5769 = vunpack.c.h.b16 %v5397
    %v5770 = vunpack.c.l.b16 %v5398
    %v5771 = vunpack.c.h.b16 %v5398
    %v5772 = vunpack.c.l.b16 %v5399
    %v5773 = vunpack.c.h.b16 %v5399
    %v5774 = vunpack.c.l.b16 %v5400
    %v5775 = vunpack.c.h.b16 %v5400
    %v5776 = vunpack.c.l.b16 %v5401
    %v5777 = vunpack.c.h.b16 %v5401
    %v5778 = vunpack.c.l.b16 %v5402
    %v5779 = vunpack.c.h.b16 %v5402
    %v5780 = vunpack.c.l.b16 %v5403
    %v5781 = vunpack.c.h.b16 %v5403
    %v5782 = vunpack.c.l.b16 %v5404
    %v5783 = vunpack.c.h.b16 %v5404
    %v5784 = vunpack.c.l.b16 %v5405
    %v5785 = vunpack.c.h.b16 %v5405
    %v5786 = vunpack.c.l.b16 %v5406
    %v5787 = vunpack.c.h.b16 %v5406
    %v5788 = vunpack.c.l.b16 %v5407
    %v5789 = vunpack.c.h.b16 %v5407
    %v5790 = vunpack.c.l.b16 %v5408
    %v5791 = vunpack.c.h.b16 %v5408
    %v5792 = vunpack.c.l.b16 %v5409
    %v5793 = vunpack.c.h.b16 %v5409
    %v5794 = vunpack.c.l.b16 %v5410
    %v5795 = vunpack.c.h.b16 %v5410
    %v5796 = vunpack.c.l.b16 %v5411
    %v5797 = vunpack.c.h.b16 %v5411
    %v5798 = vunpack.c.l.b16 %v5412
    %v5799 = vunpack.c.h.b16 %v5412
    %v5800 = vunpack.c.l.b16 %v5413
    %v5801 = vunpack.c.h.b16 %v5413
    %v5802 = vunpack.c.l.b16 %v5414
    %v5803 = vunpack.c.h.b16 %v5414
    %v5804 = vunpack.c.l.b16 %v5415
    %v5805 = vunpack.c.h.b16 %v5415
    %v5806 = vunpack.c.l.b16 %v5416
    %v5807 = vunpack.c.h.b16 %v5416
    %v5808 = vunpack.c.l.b16 %v5417
    %v5809 = vunpack.c.h.b16 %v5417
    %v5810 = vunpack.c.l.b16 %v5418
    %v5811 = vunpack.c.h.b16 %v5418
    %v5812 = vunpack.c.l.b16 %v5419
    %v5813 = vunpack.c.h.b16 %v5419
    %v5814 = vpack.c.b16 %v5562, %v5558
    %v5815 = vpack.c.b16 %v5563, %v5559
    %v5816 = vpack.c.b16 %v5564, %v5560
    %v5817 = vpack.c.b16 %v5565, %v5561
    %v5818 = vpack.c.b16 %v5570, %v5566
    %v5819 = vpack.c.b16 %v5571, %v5567
    %v5820 = vpack.c.b16 %v5572, %v5568
    %v5821 = vpack.c.b16 %v5573, %v5569
    %v5822 = vpack.c.b16 %v5578, %v5574
    %v5823 = vpack.c.b16 %v5579, %v5575
    %v5824 = vpack.c.b16 %v5580, %v5576
    %v5825 = vpack.c.b16 %v5581, %v5577
    %v5826 = vpack.c.b16 %v5586, %v5582
    %v5827 = vpack.c.b16 %v5587, %v5583
    %v5828 = vpack.c.b16 %v5588, %v5584
    %v5829 = vpack.c.b16 %v5589, %v5585
    %v5830 = vpack.c.b16 %v5594, %v5590
    %v5831 = vpack.c.b16 %v5595, %v5591
    %v5832 = vpack.c.b16 %v5596, %v5592
    %v5833 = vpack.c.b16 %v5597, %v5593
    %v5834 = vpack.c.b16 %v5602, %v5598
    %v5835 = vpack.c.b16 %v5603, %v5599
    %v5836 = vpack.c.b16 %v5604, %v5600
    %v5837 = vpack.c.b16 %v5605, %v5601
    %v5838 = vpack.c.b16 %v5610, %v5606
    %v5839 = vpack.c.b16 %v5611, %v5607
    %v5840 = vpack.c.b16 %v5612, %v5608
    %v5841 = vpack.c.b16 %v5613, %v5609
    %v5842 = vpack.c.b16 %v5618, %v5614
    %v5843 = vpack.c.b16 %v5619, %v5615
    %v5844 = vpack.c.b16 %v5620, %v5616
    %v5845 = vpack.c.b16 %v5621, %v5617
    %v5846 = vpack.c.b16 %v5626, %v5622
    %v5847 = vpack.c.b16 %v5627, %v5623
    %v5848 = vpack.c.b16 %v5628, %v5624
    %v5849 = vpack.c.b16 %v5629, %v5625
    %v5850 = vpack.c.b16 %v5634, %v5630
    %v5851 = vpack.c.b16 %v5635, %v5631
    %v5852 = vpack.c.b16 %v5636, %v5632
    %v5853 = vpack.c.b16 %v5637, %v5633
    %v5854 = vpack.c.b16 %v5642, %v5638
    %v5855 = vpack.c.b16 %v5643, %v5639
    %v5856 = vpack.c.b16 %v5644, %v5640
    %v5857 = vpack.c.b16 %v5645, %v5641
    %v5858 = vpack.c.b16 %v5650, %v5646
    %v5859 = vpack.c.b16 %v5651, %v5647
    %v5860 = vpack.c.b16 %v5652, %v5648
    %v5861 = vpack.c.b16 %v5653, %v5649
    %v5862 = vpack.c.b16 %v5658, %v5654
    %v5863 = vpack.c.b16 %v5659, %v5655
    %v5864 = vpack.c.b16 %v5660, %v5656
    %v5865 = vpack.c.b16 %v5661, %v5657
    %v5866 = vpack.c.b16 %v5666, %v5662
    %v5867 = vpack.c.b16 %v5667, %v5663
    %v5868 = vpack.c.b16 %v5668, %v5664
    %v5869 = vpack.c.b16 %v5669, %v5665
    %v5870 = vpack.c.b16 %v5674, %v5670
    %v5871 = vpack.c.b16 %v5675, %v5671
    %v5872 = vpack.c.b16 %v5676, %v5672
    %v5873 = vpack.c.b16 %v5677, %v5673
    %v5874 = vpack.c.b16 %v5682, %v5678
    %v5875 = vpack.c.b16 %v5683, %v5679
    %v5876 = vpack.c.b16 %v5684, %v5680
    %v5877 = vpack.c.b16 %v5685, %v5681
    %v5878 = vpack.c.b16 %v5690, %v5686
    %v5879 = vpack.c.b16 %v5691, %v5687
    %v5880 = vpack.c.b16 %v5692, %v5688
    %v5881 = vpack.c.b16 %v5693, %v5689
    %v5882 = vpack.c.b16 %v5698, %v5694
    %v5883 = vpack.c.b16 %v5699, %v5695
    %v5884 = vpack.c.b16 %v5700, %v5696
    %v5885 = vpack.c.b16 %v5701, %v5697
    %v5886 = vpack.c.b16 %v5706, %v5702
    %v5887 = vpack.c.b16 %v5707, %v5703
    %v5888 = vpack.c.b16 %v5708, %v5704
    %v5889 = vpack.c.b16 %v5709, %v5705
    %v5890 = vpack.c.b16 %v5714, %v5710
    %v5891 = vpack.c.b16 %v5715, %v5711
    %v5892 = vpack.c.b16 %v5716, %v5712
    %v5893 = vpack.c.b16 %v5717, %v5713
    %v5894 = vpack.c.b16 %v5722, %v5718
    %v5895 = vpack.c.b16 %v5723, %v5719
    %v5896 = vpack.c.b16 %v5724, %v5720
    %v5897 = vpack.c.b16 %v5725, %v5721
    %v5898 = vpack.c.b16 %v5730, %v5726
    %v5899 = vpack.c.b16 %v5731, %v5727
    %v5900 = vpack.c.b16 %v5732, %v5728
    %v5901 = vpack.c.b16 %v5733, %v5729
    %v5902 = vpack.c.b16 %v5738, %v5734
    %v5903 = vpack.c.b16 %v5739, %v5735
    %v5904 = vpack.c.b16 %v5740, %v5736
    %v5905 = vpack.c.b16 %v5741, %v5737
    %v5906 = vpack.c.b16 %v5746, %v5742
    %v5907 = vpack.c.b16 %v5747, %v5743
    %v5908 = vpack.c.b16 %v5748, %v5744
    %v5909 = vpack.c.b16 %v5749, %v5745
    %v5910 = vpack.c.b16 %v5754, %v5750
    %v5911 = vpack.c.b16 %v5755, %v5751
    %v5912 = vpack.c.b16 %v5756, %v5752
    %v5913 = vpack.c.b16 %v5757, %v5753
    %v5914 = vpack.c.b16 %v5762, %v5758
    %v5915 = vpack.c.b16 %v5763, %v5759
    %v5916 = vpack.c.b16 %v5764, %v5760
    %v5917 = vpack.c.b16 %v5765, %v5761
    %v5918 = vpack.c.b16 %v5770, %v5766
    %v5919 = vpack.c.b16 %v5771, %v5767
    %v5920 = vpack.c.b16 %v5772, %v5768
    %v5921 = vpack.c.b16 %v5773, %v5769
    %v5922 = vpack.c.b16 %v5778, %v5774
    %v5923 = vpack.c.b16 %v5779, %v5775
    %v5924 = vpack.c.b16 %v5780, %v5776
    %v5925 = vpack.c.b16 %v5781, %v5777
    %v5926 = vpack.c.b16 %v5786, %v5782
    %v5927 = vpack.c.b16 %v5787, %v5783
    %v5928 = vpack.c.b16 %v5788, %v5784
    %v5929 = vpack.c.b16 %v5789, %v5785
    %v5930 = vpack.c.b16 %v5794, %v5790
    %v5931 = vpack.c.b16 %v5795, %v5791
    %v5932 = vpack.c.b16 %v5796, %v5792
    %v5933 = vpack.c.b16 %v5797, %v5793
    %v5934 = vpack.c.b16 %v5802, %v5798
    %v5935 = vpack.c.b16 %v5803, %v5799
    %v5936 = vpack.c.b16 %v5804, %v5800
    %v5937 = vpack.c.b16 %v5805, %v5801
    %v5938 = vpack.c.b16 %v5810, %v5806
    %v5939 = vpack.c.b16 %v5811, %v5807
    %v5940 = vpack.c.b16 %v5812, %v5808
    %v5941 = vpack.c.b16 %v5813, %v5809
    %6070 = vmatpush.bf16.msra.mxu0 %v5842
    %6071 = vmatpush.bf16.msra.mxu0 %v5838
    %6072 = vmatpush.bf16.msra.mxu0 %v5834
    %6073 = vmatpush.bf16.msra.mxu0 %v5830
    %6074 = vmatpush.bf16.msra.mxu0 %v5826
    %6075 = vmatpush.bf16.msra.mxu0 %v5822
    %6076 = vmatpush.bf16.msra.mxu0 %v5818
    %6077 = vmatpush.bf16.msra.mxu0 %v5814
    %6078 = vmatmul.bf16.gmra.mxu0 %v5288
    %v6079 = vpop.f32.mrf.mxu0
    %v6080 = vadd.f32 %v5422, %v6079
    %v6081 = vpop.f32.mrf.mxu0
    %6082 = vdwg.mxu0
    %6083 = vmatpush.bf16.msra.mxu0 %v5874
    %6084 = vmatpush.bf16.msra.mxu0 %v5870
    %6085 = vmatpush.bf16.msra.mxu0 %v5866
    %6086 = vmatpush.bf16.msra.mxu0 %v5862
    %6087 = vmatpush.bf16.msra.mxu0 %v5858
    %6088 = vmatpush.bf16.msra.mxu0 %v5854
    %6089 = vmatpush.bf16.msra.mxu0 %v5850
    %6090 = vmatpush.bf16.msra.mxu0 %v5846
    %6091 = vmatmul.bf16.gmra.mxu0 %v5289
    %v6092 = vpop.f32.mrf.mxu0
    %v6093 = vadd.f32 %v6080, %v6092
    %v6094 = vpop.f32.mrf.mxu0
    %6095 = vdwg.mxu0
    %6096 = vmatpush.bf16.msra.mxu0 %v5906
    %6097 = vmatpush.bf16.msra.mxu0 %v5902
    %6098 = vmatpush.bf16.msra.mxu0 %v5898
    %6099 = vmatpush.bf16.msra.mxu0 %v5894
    %6100 = vmatpush.bf16.msra.mxu0 %v5890
    %6101 = vmatpush.bf16.msra.mxu0 %v5886
    %6102 = vmatpush.bf16.msra.mxu0 %v5882
    %6103 = vmatpush.bf16.msra.mxu0 %v5878
    %6104 = vmatmul.bf16.gmra.mxu0 %v5290
    %v6105 = vpop.f32.mrf.mxu0
    %v6106 = vadd.f32 %v6093, %v6105
    %v6107 = vpop.f32.mrf.mxu0
    %6108 = vdwg.mxu0
    %6109 = vmatpush.bf16.msra.mxu0 %v5938
    %6110 = vmatpush.bf16.msra.mxu0 %v5934
    %6111 = vmatpush.bf16.msra.mxu0 %v5930
    %6112 = vmatpush.bf16.msra.mxu0 %v5926
    %6113 = vmatpush.bf16.msra.mxu0 %v5922
    %6114 = vmatpush.bf16.msra.mxu0 %v5918
    %6115 = vmatpush.bf16.msra.mxu0 %v5914
    %6116 = vmatpush.bf16.msra.mxu0 %v5910
    %6117 = vmatmul.bf16.gmra.mxu0 %v5291
    %v6118 = vpop.f32.mrf.mxu0
    %v6119 = vadd.f32 %v6106, %v6118
    %v6120 = vpop.f32.mrf.mxu0
    %6121 = vdwg.mxu0
    %6122 = vmatpush.bf16.msra.mxu0 %v5843
    %6123 = vmatpush.bf16.msra.mxu0 %v5839
    %6124 = vmatpush.bf16.msra.mxu0 %v5835
    %6125 = vmatpush.bf16.msra.mxu0 %v5831
    %6126 = vmatpush.bf16.msra.mxu0 %v5827
    %6127 = vmatpush.bf16.msra.mxu0 %v5823
    %6128 = vmatpush.bf16.msra.mxu0 %v5819
    %6129 = vmatpush.bf16.msra.mxu0 %v5815
    %6130 = vmatmul.bf16.gmra.mxu0 %v5288
    %v6131 = vpop.f32.mrf.mxu0
    %v6132 = vadd.f32 %v5423, %v6131
    %v6133 = vpop.f32.mrf.mxu0
    %6134 = vdwg.mxu0
    %6135 = vmatpush.bf16.msra.mxu0 %v5875
    %6136 = vmatpush.bf16.msra.mxu0 %v5871
    %6137 = vmatpush.bf16.msra.mxu0 %v5867
    %6138 = vmatpush.bf16.msra.mxu0 %v5863
    %6139 = vmatpush.bf16.msra.mxu0 %v5859
    %6140 = vmatpush.bf16.msra.mxu0 %v5855
    %6141 = vmatpush.bf16.msra.mxu0 %v5851
    %6142 = vmatpush.bf16.msra.mxu0 %v5847
    %6143 = vmatmul.bf16.gmra.mxu0 %v5289
    %v6144 = vpop.f32.mrf.mxu0
    %v6145 = vadd.f32 %v6132, %v6144
    %v6146 = vpop.f32.mrf.mxu0
    %6147 = vdwg.mxu0
    %6148 = vmatpush.bf16.msra.mxu0 %v5907
    %6149 = vmatpush.bf16.msra.mxu0 %v5903
    %6150 = vmatpush.bf16.msra.mxu0 %v5899
    %6151 = vmatpush.bf16.msra.mxu0 %v5895
    %6152 = vmatpush.bf16.msra.mxu0 %v5891
    %6153 = vmatpush.bf16.msra.mxu0 %v5887
    %6154 = vmatpush.bf16.msra.mxu0 %v5883
    %6155 = vmatpush.bf16.msra.mxu0 %v5879
    %6156 = vmatmul.bf16.gmra.mxu0 %v5290
    %v6157 = vpop.f32.mrf.mxu0
    %v6158 = vadd.f32 %v6145, %v6157
    %v6159 = vpop.f32.mrf.mxu0
    %6160 = vdwg.mxu0
    %6161 = vmatpush.bf16.msra.mxu0 %v5939
    %6162 = vmatpush.bf16.msra.mxu0 %v5935
    %6163 = vmatpush.bf16.msra.mxu0 %v5931
    %6164 = vmatpush.bf16.msra.mxu0 %v5927
    %6165 = vmatpush.bf16.msra.mxu0 %v5923
    %6166 = vmatpush.bf16.msra.mxu0 %v5919
    %6167 = vmatpush.bf16.msra.mxu0 %v5915
    %6168 = vmatpush.bf16.msra.mxu0 %v5911
    %6169 = vmatmul.bf16.gmra.mxu0 %v5291
    %v6170 = vpop.f32.mrf.mxu0
    %v6171 = vadd.f32 %v6158, %v6170
    %v6172 = vpop.f32.mrf.mxu0
    %6173 = vdwg.mxu0
    %6174 = vmatpush.bf16.msra.mxu0 %v5844
    %6175 = vmatpush.bf16.msra.mxu0 %v5840
    %6176 = vmatpush.bf16.msra.mxu0 %v5836
    %6177 = vmatpush.bf16.msra.mxu0 %v5832
    %6178 = vmatpush.bf16.msra.mxu0 %v5828
    %6179 = vmatpush.bf16.msra.mxu0 %v5824
    %6180 = vmatpush.bf16.msra.mxu0 %v5820
    %6181 = vmatpush.bf16.msra.mxu0 %v5816
    %6182 = vmatmul.bf16.gmra.mxu0 %v5288
    %v6183 = vpop.f32.mrf.mxu0
    %v6184 = vadd.f32 %v5424, %v6183
    %v6185 = vpop.f32.mrf.mxu0
    %6186 = vdwg.mxu0
    %6187 = vmatpush.bf16.msra.mxu0 %v5876
    %6188 = vmatpush.bf16.msra.mxu0 %v5872
    %6189 = vmatpush.bf16.msra.mxu0 %v5868
    %6190 = vmatpush.bf16.msra.mxu0 %v5864
    %6191 = vmatpush.bf16.msra.mxu0 %v5860
    %6192 = vmatpush.bf16.msra.mxu0 %v5856
    %6193 = vmatpush.bf16.msra.mxu0 %v5852
    %6194 = vmatpush.bf16.msra.mxu0 %v5848
    %6195 = vmatmul.bf16.gmra.mxu0 %v5289
    %v6196 = vpop.f32.mrf.mxu0
    %v6197 = vadd.f32 %v6184, %v6196
    %v6198 = vpop.f32.mrf.mxu0
    %6199 = vdwg.mxu0
    %6200 = vmatpush.bf16.msra.mxu0 %v5908
    %6201 = vmatpush.bf16.msra.mxu0 %v5904
    %6202 = vmatpush.bf16.msra.mxu0 %v5900
    %6203 = vmatpush.bf16.msra.mxu0 %v5896
    %6204 = vmatpush.bf16.msra.mxu0 %v5892
    %6205 = vmatpush.bf16.msra.mxu0 %v5888
    %6206 = vmatpush.bf16.msra.mxu0 %v5884
    %6207 = vmatpush.bf16.msra.mxu0 %v5880
    %6208 = vmatmul.bf16.gmra.mxu0 %v5290
    %v6209 = vpop.f32.mrf.mxu0
    %v6210 = vadd.f32 %v6197, %v6209
    %v6211 = vpop.f32.mrf.mxu0
    %6212 = vdwg.mxu0
    %6213 = vmatpush.bf16.msra.mxu0 %v5940
    %6214 = vmatpush.bf16.msra.mxu0 %v5936
    %6215 = vmatpush.bf16.msra.mxu0 %v5932
    %6216 = vmatpush.bf16.msra.mxu0 %v5928
    %6217 = vmatpush.bf16.msra.mxu0 %v5924
    %6218 = vmatpush.bf16.msra.mxu0 %v5920
    %6219 = vmatpush.bf16.msra.mxu0 %v5916
    %6220 = vmatpush.bf16.msra.mxu0 %v5912
    %6221 = vmatmul.bf16.gmra.mxu0 %v5291
    %v6222 = vpop.f32.mrf.mxu0
    %v6223 = vadd.f32 %v6210, %v6222
    %v6224 = vpop.f32.mrf.mxu0
    %6225 = vdwg.mxu0
    %6226 = vmatpush.bf16.msra.mxu0 %v5845
    %6227 = vmatpush.bf16.msra.mxu0 %v5841
    %6228 = vmatpush.bf16.msra.mxu0 %v5837
    %6229 = vmatpush.bf16.msra.mxu0 %v5833
    %6230 = vmatpush.bf16.msra.mxu0 %v5829
    %6231 = vmatpush.bf16.msra.mxu0 %v5825
    %6232 = vmatpush.bf16.msra.mxu0 %v5821
    %6233 = vmatpush.bf16.msra.mxu0 %v5817
    %6234 = vmatmul.bf16.gmra.mxu0 %v5288
    %v6235 = vpop.f32.mrf.mxu0
    %v6236 = vadd.f32 %v5425, %v6235
    %v6237 = vpop.f32.mrf.mxu0
    %6238 = vdwg.mxu0
    %6239 = vmatpush.bf16.msra.mxu0 %v5877
    %6240 = vmatpush.bf16.msra.mxu0 %v5873
    %6241 = vmatpush.bf16.msra.mxu0 %v5869
    %6242 = vmatpush.bf16.msra.mxu0 %v5865
    %6243 = vmatpush.bf16.msra.mxu0 %v5861
    %6244 = vmatpush.bf16.msra.mxu0 %v5857
    %6245 = vmatpush.bf16.msra.mxu0 %v5853
    %6246 = vmatpush.bf16.msra.mxu0 %v5849
    %6247 = vmatmul.bf16.gmra.mxu0 %v5289
    %v6248 = vpop.f32.mrf.mxu0
    %v6249 = vadd.f32 %v6236, %v6248
    %v6250 = vpop.f32.mrf.mxu0
    %6251 = vdwg.mxu0
    %6252 = vmatpush.bf16.msra.mxu0 %v5909
    %6253 = vmatpush.bf16.msra.mxu0 %v5905
    %6254 = vmatpush.bf16.msra.mxu0 %v5901
    %6255 = vmatpush.bf16.msra.mxu0 %v5897
    %6256 = vmatpush.bf16.msra.mxu0 %v5893
    %6257 = vmatpush.bf16.msra.mxu0 %v5889
    %6258 = vmatpush.bf16.msra.mxu0 %v5885
    %6259 = vmatpush.bf16.msra.mxu0 %v5881
    %6260 = vmatmul.bf16.gmra.mxu0 %v5290
    %v6261 = vpop.f32.mrf.mxu0
    %v6262 = vadd.f32 %v6249, %v6261
    %v6263 = vpop.f32.mrf.mxu0
    %6264 = vdwg.mxu0
    %6265 = vmatpush.bf16.msra.mxu0 %v5941
    %6266 = vmatpush.bf16.msra.mxu0 %v5937
    %6267 = vmatpush.bf16.msra.mxu0 %v5933
    %6268 = vmatpush.bf16.msra.mxu0 %v5929
    %6269 = vmatpush.bf16.msra.mxu0 %v5925
    %6270 = vmatpush.bf16.msra.mxu0 %v5921
    %6271 = vmatpush.bf16.msra.mxu0 %v5917
    %6272 = vmatpush.bf16.msra.mxu0 %v5913
    %6273 = vmatmul.bf16.gmra.mxu0 %v5291
    %v6274 = vpop.f32.mrf.mxu0
    %v6275 = vadd.f32 %v6262, %v6274
    %v6276 = vpop.f32.mrf.mxu0
    %6277 = vdwg.mxu0
    %v6278 = vmax.f32 %v6119, 0.0
    %v6279 = vmax.f32 %v6171, 0.0
    %v6280 = vmax.f32 %v6223, 0.0
    %v6281 = vmax.f32 %v6275, 0.0
    %v6282 = vpack.c.bf16 %v6278, %v6278
    %v6283 = vpack.c.bf16 %v6279, %v6279
    %v6284 = vpack.c.bf16 %v6280, %v6280
    %v6285 = vpack.c.bf16 %v6281, %v6281
    %v6286 = vld [vmem:[#allocation11] sm:$0xf]
    %v6287 = vld [vmem:[#allocation11 + $0x4] sm:$0xf]
    %v6288 = vld [vmem:[#allocation11 + $0x8] sm:$0xf]
    %v6289 = vld [vmem:[#allocation11 + $0xc] sm:$0xf]
    %v6290 = vld [vmem:[#allocation11 + $0x10] sm:$0xf]
    %v6291 = vld [vmem:[#allocation11 + $0x14] sm:$0xf]
    %v6292 = vld [vmem:[#allocation11 + $0x18] sm:$0xf]
    %v6293 = vld [vmem:[#allocation11 + $0x1c] sm:$0xf]
    %v6294 = vld [vmem:[#allocation11 + $0x20] sm:$0xf]
    %v6295 = vld [vmem:[#allocation11 + $0x24] sm:$0xf]
    %v6296 = vld [vmem:[#allocation11 + $0x28] sm:$0xf]
    %v6297 = vld [vmem:[#allocation11 + $0x2c] sm:$0xf]
    %v6298 = vld [vmem:[#allocation11 + $0x30] sm:$0xf]
    %v6299 = vld [vmem:[#allocation11 + $0x34] sm:$0xf]
    %v6300 = vld [vmem:[#allocation11 + $0x38] sm:$0xf]
    %v6301 = vld [vmem:[#allocation11 + $0x3c] sm:$0xf]
    %v6302 = vld [vmem:[#allocation11 + $0x40] sm:$0xf]
    %v6303 = vld [vmem:[#allocation11 + $0x44] sm:$0xf]
    %v6304 = vld [vmem:[#allocation11 + $0x48] sm:$0xf]
    %v6305 = vld [vmem:[#allocation11 + $0x4c] sm:$0xf]
    %v6306 = vld [vmem:[#allocation11 + $0x50] sm:$0xf]
    %v6307 = vld [vmem:[#allocation11 + $0x54] sm:$0xf]
    %v6308 = vld [vmem:[#allocation11 + $0x58] sm:$0xf]
    %v6309 = vld [vmem:[#allocation11 + $0x5c] sm:$0xf]
    %v6310 = vld [vmem:[#allocation11 + $0x60] sm:$0xf]
    %v6311 = vld [vmem:[#allocation11 + $0x64] sm:$0xf]
    %v6312 = vld [vmem:[#allocation11 + $0x68] sm:$0xf]
    %v6313 = vld [vmem:[#allocation11 + $0x6c] sm:$0xf]
    %v6314 = vld [vmem:[#allocation11 + $0x70] sm:$0xf]
    %v6315 = vld [vmem:[#allocation11 + $0x74] sm:$0xf]
    %v6316 = vld [vmem:[#allocation11 + $0x78] sm:$0xf]
    %v6317 = vld [vmem:[#allocation11 + $0x7c] sm:$0xf]
    %v6318 = vld [vmem:[#allocation11 + $0x80] sm:$0xf]
    %v6319 = vld [vmem:[#allocation11 + $0x84] sm:$0xf]
    %v6320 = vld [vmem:[#allocation11 + $0x88] sm:$0xf]
    %v6321 = vld [vmem:[#allocation11 + $0x8c] sm:$0xf]
    %v6322 = vld [vmem:[#allocation11 + $0x90] sm:$0xf]
    %v6323 = vld [vmem:[#allocation11 + $0x94] sm:$0xf]
    %v6324 = vld [vmem:[#allocation11 + $0x98] sm:$0xf]
    %v6325 = vld [vmem:[#allocation11 + $0x9c] sm:$0xf]
    %v6326 = vld [vmem:[#allocation11 + $0xa0] sm:$0xf]
    %v6327 = vld [vmem:[#allocation11 + $0xa4] sm:$0xf]
    %v6328 = vld [vmem:[#allocation11 + $0xa8] sm:$0xf]
    %v6329 = vld [vmem:[#allocation11 + $0xac] sm:$0xf]
    %v6330 = vld [vmem:[#allocation11 + $0xb0] sm:$0xf]
    %v6331 = vld [vmem:[#allocation11 + $0xb4] sm:$0xf]
    %v6332 = vld [vmem:[#allocation11 + $0xb8] sm:$0xf]
    %v6333 = vld [vmem:[#allocation11 + $0xbc] sm:$0xf]
    %v6334 = vld [vmem:[#allocation11 + $0xc0] sm:$0xf]
    %v6335 = vld [vmem:[#allocation11 + $0xc4] sm:$0xf]
    %v6336 = vld [vmem:[#allocation11 + $0xc8] sm:$0xf]
    %v6337 = vld [vmem:[#allocation11 + $0xcc] sm:$0xf]
    %v6338 = vld [vmem:[#allocation11 + $0xd0] sm:$0xf]
    %v6339 = vld [vmem:[#allocation11 + $0xd4] sm:$0xf]
    %v6340 = vld [vmem:[#allocation11 + $0xd8] sm:$0xf]
    %v6341 = vld [vmem:[#allocation11 + $0xdc] sm:$0xf]
    %v6342 = vld [vmem:[#allocation11 + $0xe0] sm:$0xf]
    %v6343 = vld [vmem:[#allocation11 + $0xe4] sm:$0xf]
    %v6344 = vld [vmem:[#allocation11 + $0xe8] sm:$0xf]
    %v6345 = vld [vmem:[#allocation11 + $0xec] sm:$0xf]
    %v6346 = vld [vmem:[#allocation11 + $0xf0] sm:$0xf]
    %v6347 = vld [vmem:[#allocation11 + $0xf4] sm:$0xf]
    %v6348 = vld [vmem:[#allocation11 + $0xf8] sm:$0xf]
    %v6349 = vld [vmem:[#allocation11 + $0xfc] sm:$0xf]
    %v6350 = vld [vmem:[#allocation12] sm:$0x1]
    %v6352 = vperm.slane %v6350, 0
    %v6418 = vunpack.c.l.b16 %v6286
    %v6419 = vunpack.c.l.b16 %v6287
    %v6420 = vunpack.c.l.b16 %v6288
    %v6421 = vunpack.c.l.b16 %v6289
    %v6422 = vunpack.c.l.b16 %v6290
    %v6423 = vunpack.c.l.b16 %v6291
    %v6424 = vunpack.c.l.b16 %v6292
    %v6425 = vunpack.c.l.b16 %v6293
    %v6426 = vunpack.c.l.b16 %v6294
    %v6427 = vunpack.c.l.b16 %v6295
    %v6428 = vunpack.c.l.b16 %v6296
    %v6429 = vunpack.c.l.b16 %v6297
    %v6430 = vunpack.c.l.b16 %v6298
    %v6431 = vunpack.c.l.b16 %v6299
    %v6432 = vunpack.c.l.b16 %v6300
    %v6433 = vunpack.c.l.b16 %v6301
    %v6434 = vunpack.c.l.b16 %v6302
    %v6435 = vunpack.c.l.b16 %v6303
    %v6436 = vunpack.c.l.b16 %v6304
    %v6437 = vunpack.c.l.b16 %v6305
    %v6438 = vunpack.c.l.b16 %v6306
    %v6439 = vunpack.c.l.b16 %v6307
    %v6440 = vunpack.c.l.b16 %v6308
    %v6441 = vunpack.c.l.b16 %v6309
    %v6442 = vunpack.c.l.b16 %v6310
    %v6443 = vunpack.c.l.b16 %v6311
    %v6444 = vunpack.c.l.b16 %v6312
    %v6445 = vunpack.c.l.b16 %v6313
    %v6446 = vunpack.c.l.b16 %v6314
    %v6447 = vunpack.c.l.b16 %v6315
    %v6448 = vunpack.c.l.b16 %v6316
    %v6449 = vunpack.c.l.b16 %v6317
    %v6450 = vunpack.c.l.b16 %v6318
    %v6451 = vunpack.c.l.b16 %v6319
    %v6452 = vunpack.c.l.b16 %v6320
    %v6453 = vunpack.c.l.b16 %v6321
    %v6454 = vunpack.c.l.b16 %v6322
    %v6455 = vunpack.c.l.b16 %v6323
    %v6456 = vunpack.c.l.b16 %v6324
    %v6457 = vunpack.c.l.b16 %v6325
    %v6458 = vunpack.c.l.b16 %v6326
    %v6459 = vunpack.c.l.b16 %v6327
    %v6460 = vunpack.c.l.b16 %v6328
    %v6461 = vunpack.c.l.b16 %v6329
    %v6462 = vunpack.c.l.b16 %v6330
    %v6463 = vunpack.c.l.b16 %v6331
    %v6464 = vunpack.c.l.b16 %v6332
    %v6465 = vunpack.c.l.b16 %v6333
    %v6466 = vunpack.c.l.b16 %v6334
    %v6467 = vunpack.c.l.b16 %v6335
    %v6468 = vunpack.c.l.b16 %v6336
    %v6469 = vunpack.c.l.b16 %v6337
    %v6470 = vunpack.c.l.b16 %v6338
    %v6471 = vunpack.c.l.b16 %v6339
    %v6472 = vunpack.c.l.b16 %v6340
    %v6473 = vunpack.c.l.b16 %v6341
    %v6474 = vunpack.c.l.b16 %v6342
    %v6475 = vunpack.c.l.b16 %v6343
    %v6476 = vunpack.c.l.b16 %v6344
    %v6477 = vunpack.c.l.b16 %v6345
    %v6478 = vunpack.c.l.b16 %v6346
    %v6479 = vunpack.c.l.b16 %v6347
    %v6480 = vunpack.c.l.b16 %v6348
    %v6481 = vunpack.c.l.b16 %v6349
    %v6482 = vpack.c.b16 %v6419, %v6418
    %v6483 = vpack.c.b16 %v6421, %v6420
    %v6484 = vpack.c.b16 %v6423, %v6422
    %v6485 = vpack.c.b16 %v6425, %v6424
    %v6486 = vpack.c.b16 %v6427, %v6426
    %v6487 = vpack.c.b16 %v6429, %v6428
    %v6488 = vpack.c.b16 %v6431, %v6430
    %v6489 = vpack.c.b16 %v6433, %v6432
    %v6490 = vpack.c.b16 %v6435, %v6434
    %v6491 = vpack.c.b16 %v6437, %v6436
    %v6492 = vpack.c.b16 %v6439, %v6438
    %v6493 = vpack.c.b16 %v6441, %v6440
    %v6494 = vpack.c.b16 %v6443, %v6442
    %v6495 = vpack.c.b16 %v6445, %v6444
    %v6496 = vpack.c.b16 %v6447, %v6446
    %v6497 = vpack.c.b16 %v6449, %v6448
    %v6498 = vpack.c.b16 %v6451, %v6450
    %v6499 = vpack.c.b16 %v6453, %v6452
    %v6500 = vpack.c.b16 %v6455, %v6454
    %v6501 = vpack.c.b16 %v6457, %v6456
    %v6502 = vpack.c.b16 %v6459, %v6458
    %v6503 = vpack.c.b16 %v6461, %v6460
    %v6504 = vpack.c.b16 %v6463, %v6462
    %v6505 = vpack.c.b16 %v6465, %v6464
    %v6506 = vpack.c.b16 %v6467, %v6466
    %v6507 = vpack.c.b16 %v6469, %v6468
    %v6508 = vpack.c.b16 %v6471, %v6470
    %v6509 = vpack.c.b16 %v6473, %v6472
    %v6510 = vpack.c.b16 %v6475, %v6474
    %v6511 = vpack.c.b16 %v6477, %v6476
    %v6512 = vpack.c.b16 %v6479, %v6478
    %v6513 = vpack.c.b16 %v6481, %v6480
    %6546 = vmatpush.bf16.msra.mxu0 %v6489
    %6547 = vmatpush.bf16.msra.mxu0 %v6488
    %6548 = vmatpush.bf16.msra.mxu0 %v6487
    %6549 = vmatpush.bf16.msra.mxu0 %v6486
    %6550 = vmatpush.bf16.msra.mxu0 %v6485
    %6551 = vmatpush.bf16.msra.mxu0 %v6484
    %6552 = vmatpush.bf16.msra.mxu0 %v6483
    %6553 = vmatpush.bf16.msra.mxu0 %v6482
    %6554 = vmatmul.bf16.gmra.mxu0 %v6282
    %v6555 = vpop.f32.mrf.mxu0
    %v6556 = vadd.f32 %v6352, %v6555
    %v6557 = vpop.f32.mrf.mxu0
    %6558 = vdwg.mxu0
    %6559 = vmatpush.bf16.msra.mxu0 %v6497
    %6560 = vmatpush.bf16.msra.mxu0 %v6496
    %6561 = vmatpush.bf16.msra.mxu0 %v6495
    %6562 = vmatpush.bf16.msra.mxu0 %v6494
    %6563 = vmatpush.bf16.msra.mxu0 %v6493
    %6564 = vmatpush.bf16.msra.mxu0 %v6492
    %6565 = vmatpush.bf16.msra.mxu0 %v6491
    %6566 = vmatpush.bf16.msra.mxu0 %v6490
    %6567 = vmatmul.bf16.gmra.mxu0 %v6283
    %v6568 = vpop.f32.mrf.mxu0
    %v6569 = vadd.f32 %v6556, %v6568
    %v6570 = vpop.f32.mrf.mxu0
    %6571 = vdwg.mxu0
    %6572 = vmatpush.bf16.msra.mxu0 %v6505
    %6573 = vmatpush.bf16.msra.mxu0 %v6504
    %6574 = vmatpush.bf16.msra.mxu0 %v6503
    %6575 = vmatpush.bf16.msra.mxu0 %v6502
    %6576 = vmatpush.bf16.msra.mxu0 %v6501
    %6577 = vmatpush.bf16.msra.mxu0 %v6500
    %6578 = vmatpush.bf16.msra.mxu0 %v6499
    %6579 = vmatpush.bf16.msra.mxu0 %v6498
    %6580 = vmatmul.bf16.gmra.mxu0 %v6284
    %v6581 = vpop.f32.mrf.mxu0
    %v6582 = vadd.f32 %v6569, %v6581
    %v6583 = vpop.f32.mrf.mxu0
    %6584 = vdwg.mxu0
    %6585 = vmatpush.bf16.msra.mxu0 %v6513
    %6586 = vmatpush.bf16.msra.mxu0 %v6512
    %6587 = vmatpush.bf16.msra.mxu0 %v6511
    %6588 = vmatpush.bf16.msra.mxu0 %v6510
    %6589 = vmatpush.bf16.msra.mxu0 %v6509
    %6590 = vmatpush.bf16.msra.mxu0 %v6508
    %6591 = vmatpush.bf16.msra.mxu0 %v6507
    %6592 = vmatpush.bf16.msra.mxu0 %v6506
    %6593 = vmatmul.bf16.gmra.mxu0 %v6285
    %v6594 = vpop.f32.mrf.mxu0
    %v6595 = vadd.f32 %v6582, %v6594
    %v6596 = vpop.f32.mrf.mxu0
    %6597 = vdwg.mxu0
    %v6598 = vmax.f32 %v6595, 0.0
    %v6599 = vld [vmem:[#allocation14] sm:$0x1]
    %v6601 = vperm.slane %v6599, 0
    %v6603 = vmul.f32 %v6598, %v6601
    %6604 = vadd.xlane.f32.xlu0 %v6603
    %v6605 = vpop.xlane.xlu0 %6604
    %v6606 = vld [vmem:[#allocation2] sm:$0x1]
    %v6608 = vperm.slane %v6606, 0
    %v6610 = vadd.f32 %v6605, %v6608
    %v6611 = vxor.u32 %v6610, 2147483648
    %v6612 = vmul.f32 %v6611, 1.442695
    %v6613 = vpow.pop %v6612
    %v6614 = vadd.f32 %v6613, 1.0
    %v6615 = vrcp.pop %v6614
    %v6616 = vmul.f32 %v6614, %v6615
    %v6617 = vsub.f32 1.0, %v6616
    %v6618 = vmul.f32 %v6615, %v6617
    %v6619 = vadd.f32 %v6615, %v6618
    %vm6620 = vweird.f32 %v6614
    %vm6621 = vweird.f32 %v6615
    %vm6622 = vmor %vm6620, %vm6621
    %v6623 = vsel %vm6622, %v6615, %v6619
    %v6624 = vand.u32 2147483647, %v6614
    %vm6625 = vcmp.eq.f32.partialorder %v6624, 8.507059e+37
    %v6626 = vand.u32 %v6614, 2147483648
    %v6627 = vor.u32 1.1754944e-38, %v6626
    %v6628 = vsel %vm6625, %v6627, %v6623
    %v6629 = vmul.f32 1.0, %v6628
    %6631 = vset.pattern.permute.xlu0 0
    %6632 = vperm.xlu0 %6631, %v6629
    %v6633 = vpop.permute.xlu0 %6632
    %6635 = vst [vmem:[#allocation15] sm:$0xff] %v6633
    // Predicated region
    $region66: #{tpu_custom_call.1} parent=1 // pred_check
      _
    $region67: #{tpu_custom_call.1} parent=1 // pred_check_branch
      %6637 = sbr.rel (0) target = $region69
    $region68: #{tpu_custom_call.1} parent=1 // pred_region
      %6639 = vsyncadd [#allocation5], 0
      %s6641 = sshll.u32 [#allocation15], 4
      %s6642 = int_to_ptr.vmem [resolvable:$true] %s6641
      %s6643 = sshll.u32 %s9, 4
      %s6644 = int_to_ptr.hbm [resolvable:$true] %s6643
      %6646 = dma.vmem_to_hbm [thread:$0]  %s6642, 128, %s6644, [#allocation5]
    $region69: #{tpu_custom_call.1} parent=1 // pred_fallthru
      _
    // Predicated region
    $region70: #{tpu_custom_call.1} parent=1 // pred_check
      _
    $region71: #{tpu_custom_call.1} parent=1 // pred_check_branch
      %6648 = sbr.rel (0) target = $region73
    $region72: #{tpu_custom_call.1} parent=1 // pred_region
      %6650 = dma.done [#allocation5], 128
    $region73: #{tpu_custom_call.1} parent=1 // pred_fallthru
      _
    %6651 = vsyncpa [#allocation4], 1
    %6652 = vsyncpa [#allocation7], 1
    %6653 = vsyncpa [#allocation10], 1
    %6654 = vsyncpa [#allocation13], 1
    %6655 = vsyncpa [#allocation5], 1

</llo_original>
